<compile_context>
chip_gen: v5e
topology: v5e:2x2
jax: 0.10.0
libtpu: 0.0.40
codegen_flags: <defaults>
</compile_context>

<pallas_src>
import jax
import jax.numpy as jnp
from jax.experimental import pallas as pl
from jax.experimental.pallas import tpu as pltpu

BN_EPS = 1e-5
LANE = 128


def _select_compute_dtype():
    """int8 on generations with an int MXU path (v5*/v6*); bf16 otherwise
    (v7x has no int MXU; +-1 is exact in bf16 too)."""
    try:
        kind = jax.devices()[0].device_kind.lower()
    except Exception:
        return jnp.bfloat16
    if "v5" in kind or "v6" in kind:
        return jnp.int8
    return jnp.bfloat16


def mlp_kernel(x_ref, w1_ref, w2_ref, w3_ref, w4_ref, pv_ref, o_ref):
    """One micro-batch resident in VMEM; weights pre-binarized (in, out)."""
    cdt = w1_ref.dtype
    acc_dt = jnp.int32 if cdt == jnp.int8 else jnp.float32

    def binarize(v):
        # BinarizeSTE.forward: >= 0 -> +1, else -1 (+-1 exact in bf16/int8).
        return jnp.where(v >= 0, 1.0, -1.0).astype(cdt)

    def bn_relu(z, g, be):
        # TODO(synk): bn1/bn2/bn3 are used in forward() but never declared in
        # __init__; assumed BatchNorm1d(hidden) in training mode (batch mean,
        # biased batch variance, learnable gamma/beta).
        mean = jnp.mean(z, axis=0, keepdims=True)
        var = jnp.mean((z - mean) ** 2, axis=0, keepdims=True)
        # Fold into row-vector scale/shift before broadcasting (fewer VALU ops).
        scale = jax.lax.rsqrt(var + BN_EPS) * g
        shift = be - mean * scale
        # htanhN is nn.ReLU() in the spec; Dropout(p=0.0) is the identity.
        return jnp.maximum(z * scale + shift, 0.0)

    h1n = w1_ref.shape[1]
    h2n = w2_ref.shape[1]
    h3n = w3_ref.shape[1]
    ncp = w4_ref.shape[1]

    # Packed row-vector params: [g1; be1; g2|g3; be2|be3; b4_padded].
    g1 = pv_ref[0:1, :h1n]
    be1 = pv_ref[1:2, :h1n]
    g2 = pv_ref[2:3, :h2n]
    g3 = pv_ref[2:3, h2n:h2n + h3n]
    be2 = pv_ref[3:4, :h2n]
    be3 = pv_ref[3:4, h2n:h2n + h3n]
    b4 = pv_ref[4:5, :ncp]

    # l1: binarize the raw f32 input in-kernel (fused; no extra XLA launch).
    # l1/l2/l3 biases omitted: constant per-column bias is exactly cancelled by
    # the BatchNorm batch-mean subtraction that follows.
    z1 = jnp.dot(binarize(x_ref[...]), w1_ref[...],
                 preferred_element_type=acc_dt).astype(jnp.float32)
    h1 = bn_relu(z1, g1, be1)

    z2 = jnp.dot(binarize(h1), w2_ref[...],
                 preferred_element_type=acc_dt).astype(jnp.float32)
    h2 = bn_relu(z2, g2, be2)

    z3 = jnp.dot(binarize(h2), w3_ref[...],
                 preferred_element_type=acc_dt).astype(jnp.float32)
    h3 = bn_relu(z3, g3, be3)

    # l4 (BinarizeLinearSTE, keeps its binarized bias); padded to 128 lanes.
    out = jnp.dot(binarize(h3), w4_ref[...],
                  preferred_element_type=acc_dt).astype(jnp.float32) + b4
    o_ref[...] = out


def prepare_kernel_params(params, compute_dtype=jnp.bfloat16):
    """One-time preprocessing (outside the hot path): binarize + transpose
    weights to (in, out) in the compute dtype, pack all small row-vector params
    into a single f32 slab, zero-pad the classifier to a lane-dense width."""
    (w1, b1, g1, be1,
     w2, b2, g2, be2,
     w3, b3, g3, be3,
     w4, b4) = params
    del b1, b2, b3  # cancelled exactly by the BatchNorm mean subtraction

    def binw(w):  # (out, in) f32 -> (in, out) compute_dtype with values +-1
        return jnp.where(w >= 0, 1.0, -1.0).astype(compute_dtype).T

    h1n, h2n, h3n = g1.shape[0], g2.shape[0], g3.shape[0]
    num_classes = w4.shape[0]
    ncp = LANE * pl.cdiv(num_classes, LANE)

    w4p = jnp.pad(binw(w4), ((0, 0), (0, ncp - num_classes)))
    b4p = jnp.pad(jnp.where(b4 >= 0, 1.0, -1.0).astype(jnp.float32),
                  (0, ncp - num_classes))

    width = max(h1n, h2n + h3n, ncp)
    width = LANE * pl.cdiv(width, LANE)

    def row(*vs):
        v = jnp.concatenate([jnp.asarray(u, jnp.float32).reshape(-1) for u in vs])
        return jnp.pad(v, (0, width - v.shape[0]))

    pvec = jnp.stack([row(g1), row(be1), row(g2, g3), row(be2, be3), row(b4p)])

    kparams = (binw(w1), binw(w2), binw(w3), w4p, pvec)
    return kparams, num_classes


def forward(x, y, kernel_params, *, microbatch=None):
    """Pallas forward of NeuralNetworkSimplifiedSTE. `y` is unused (matches the
    PyTorch forward signature). Returns padded (B, 128) logits; mask/slice
    [:, :num_classes] downstream."""
    del y
    w1, w2, w3, w4p, pvec = kernel_params
    B = x.shape[0]
    D = w1.shape[0]
    ncp = w4p.shape[1]
    x_flat = x.reshape(B, -1).astype(jnp.float32)   # x.view(B, -1); binarized in-kernel

    mb = B if microbatch is None else microbatch
    assert B % mb == 0, "batch must be divisible by the micro-batch size"
    n_steps = B // mb

    def resident(a):  # full array, same block every step -> stays VMEM-resident
        return pl.BlockSpec(a.shape, lambda i: (0, 0))

    out = pl.pallas_call(
        mlp_kernel,
        out_shape=jax.ShapeDtypeStruct((B, ncp), jnp.float32),
        grid=(n_steps,),
        in_specs=[
            pl.BlockSpec((mb, D), lambda i: (i, 0)),
            resident(w1), resident(w2), resident(w3), resident(w4p),
            resident(pvec),
        ],
        out_specs=pl.BlockSpec((mb, ncp), lambda i: (i, 0)),
        compiler_params=pltpu.CompilerParams(
            dimension_semantics=("parallel",)),
    )(x_flat, w1, w2, w3, w4p, pvec)
    return out


def _binarize_f32(v):
    return jnp.where(v >= 0, 1.0, -1.0).astype(jnp.float32)


def reference_forward(x, params):
    """Pure-JAX f32 reference, faithful to the PyTorch module (biases kept)."""
    (w1, b1, g1, be1,
     w2, b2, g2, be2,
     w3, b3, g3, be3,
     w4, b4) = params
    h = x.reshape(x.shape[0], -1).astype(jnp.float32)

    def bin_linear(v, w, b):
        return _binarize_f32(v) @ _binarize_f32(w).T + _binarize_f32(b)

    def bn_relu(z, g, be):
        mean = jnp.mean(z, axis=0, keepdims=True)
        var = jnp.mean((z - mean) ** 2, axis=0, keepdims=True)
        return jnp.maximum((z - mean) / jnp.sqrt(var + BN_EPS) * g + be, 0.0)

    h = bn_relu(bin_linear(h, w1, b1), g1, be1)
    h = bn_relu(bin_linear(h, w2, b2), g2, be2)
    h = bn_relu(bin_linear(h, w3, b3), g3, be3)
    return bin_linear(h, w4, b4)


def init_params(key, input_size, h1, h2, h3, num_classes):
    ks = jax.random.split(key, 4)

    def xavier(k, fan_out, fan_in):
        bound = jnp.sqrt(6.0 / (fan_in + fan_out))
        return jax.random.uniform(k, (fan_out, fan_in), jnp.float32, -bound, bound)

    # BinarizeLinearSTE layers (l1..l4): xavier_uniform_ weights, zero biases.
    w1, b1 = xavier(ks[0], h1, input_size), jnp.zeros((h1,), jnp.float32)
    w2, b2 = xavier(ks[1], h2, h1), jnp.zeros((h2,), jnp.float32)
    w3, b3 = xavier(ks[2], h3, h2), jnp.zeros((h3,), jnp.float32)
    w4, b4 = xavier(ks[3], num_classes, h3), jnp.zeros((num_classes,), jnp.float32)
    # BatchNorm1d defaults: gamma=1, beta=0.
    g1, be1 = jnp.ones((h1,), jnp.float32), jnp.zeros((h1,), jnp.float32)
    g2, be2 = jnp.ones((h2,), jnp.float32), jnp.zeros((h2,), jnp.float32)
    g3, be3 = jnp.ones((h3,), jnp.float32), jnp.zeros((h3,), jnp.float32)
    return (w1, b1, g1, be1, w2, b2, g2, be2, w3, b3, g3, be3, w4, b4)


if __name__ == "__main__":
    key = jax.random.PRNGKey(0)
    k_x, k_p = jax.random.split(key)

    # Small shapes consistent with the module: NCHW spectrogram-like input.
    B, C, H, W = 8, 4, 16, 16
    input_size = C * H * W                       # 1024
    hidden_size1, hidden_size2, hidden_size3 = 256, 128, 128
    num_classes = 10

    x = jax.random.normal(k_x, (B, C, H, W), jnp.float32)
    y = jnp.zeros((B,), jnp.int32)               # unused, matches forward(x, y)

    params = init_params(k_p, input_size, hidden_size1, hidden_size2,
                         hidden_size3, num_classes)

    compute_dtype = _select_compute_dtype()
    kparams, nc = prepare_kernel_params(params, compute_dtype=compute_dtype)
    try:
        out_padded = jax.block_until_ready(forward(x, y, kparams))
    except Exception:
        # Safety net: if the int8 MXU path is unavailable on this generation,
        # fall back to the universally supported bf16 path.
        compute_dtype = jnp.bfloat16
        kparams, nc = prepare_kernel_params(params, compute_dtype=compute_dtype)
        out_padded = jax.block_until_ready(forward(x, y, kparams))

    out = out_padded[:, :nc]                     # slice only for the check
    ref = reference_forward(x, params)
    assert out.shape == (B, num_classes)
    assert jnp.allclose(out, ref, atol=1e-4, rtol=1e-4), "mismatch vs reference"

    # Micro-batch grid: 4 independent 8-row batches in one pallas_call; weights
    # stay VMEM-resident across grid steps (BN stats are per micro-batch).
    B2 = 32
    x2 = jax.random.normal(jax.random.PRNGKey(1), (B2, C, H, W), jnp.float32)
    out2 = jax.block_until_ready(forward(x2, None, kparams, microbatch=B))[:, :nc]
    ref2 = jnp.concatenate(
        [reference_forward(x2[i:i + B], params) for i in range(0, B2, B)])
    assert jnp.allclose(out2, ref2, atol=1e-4, rtol=1e-4), "micro-batch mismatch"

    print("KERNEL_OK")
</pallas_src>

<mosaic_0001>
module attributes {stable_mosaic.version = 11 : i64} {
  func.func @mlp_kernel(%arg0: i32, %arg1: memref<8x1024xf32, #tpu.memory_space<vmem>>, %arg2: memref<1024x256xbf16, #tpu.memory_space<vmem>>, %arg3: memref<256x128xbf16, #tpu.memory_space<vmem>>, %arg4: memref<128x128xbf16, #tpu.memory_space<vmem>>, %arg5: memref<128x128xbf16, #tpu.memory_space<vmem>>, %arg6: memref<5x256xf32, #tpu.memory_space<vmem>>, %arg7: memref<8x128xf32, #tpu.memory_space<vmem>>) attributes {dimension_semantics = [#tpu.dimension_semantics<parallel>], iteration_bounds = array<i64: 1>, scalar_prefetch = 0 : i64, scratch_operands = 0 : i64, tpu.core_type = #tpu.core_type<tc>, window_params = [{transform_indices = @transform_0, window_bounds = array<i64: 8, 1024>}, {pipeline_mode = #tpu.pipeline_mode<synchronous>, transform_indices = @transform_1, window_bounds = array<i64: 1024, 256>}, {pipeline_mode = #tpu.pipeline_mode<synchronous>, transform_indices = @transform_2, window_bounds = array<i64: 256, 128>}, {pipeline_mode = #tpu.pipeline_mode<synchronous>, transform_indices = @transform_3, window_bounds = array<i64: 128, 128>}, {pipeline_mode = #tpu.pipeline_mode<synchronous>, transform_indices = @transform_4, window_bounds = array<i64: 128, 128>}, {pipeline_mode = #tpu.pipeline_mode<synchronous>, transform_indices = @transform_5, window_bounds = array<i64: 5, 256>}, {transform_indices = @transform_6, window_bounds = array<i64: 8, 128>}]} {
    %c0 = arith.constant 0 : index
    %c0_0 = arith.constant 0 : index
    %0 = vector.load %arg6[%c0, %c0_0] : memref<5x256xf32, #tpu.memory_space<vmem>>, vector<1x256xf32>
    %c1 = arith.constant 1 : index
    %c0_1 = arith.constant 0 : index
    %1 = vector.load %arg6[%c1, %c0_1] : memref<5x256xf32, #tpu.memory_space<vmem>>, vector<1x256xf32>
    %c2 = arith.constant 2 : index
    %c0_2 = arith.constant 0 : index
    %2 = vector.load %arg6[%c2, %c0_2] : memref<5x256xf32, #tpu.memory_space<vmem>>, vector<1x128xf32>
    %c2_3 = arith.constant 2 : index
    %c128 = arith.constant 128 : index
    %3 = vector.load %arg6[%c2_3, %c128] : memref<5x256xf32, #tpu.memory_space<vmem>>, vector<1x128xf32>
    %c3 = arith.constant 3 : index
    %c0_4 = arith.constant 0 : index
    %4 = vector.load %arg6[%c3, %c0_4] : memref<5x256xf32, #tpu.memory_space<vmem>>, vector<1x128xf32>
    %c3_5 = arith.constant 3 : index
    %c128_6 = arith.constant 128 : index
    %5 = vector.load %arg6[%c3_5, %c128_6] : memref<5x256xf32, #tpu.memory_space<vmem>>, vector<1x128xf32>
    %c4 = arith.constant 4 : index
    %c0_7 = arith.constant 0 : index
    %6 = vector.load %arg6[%c4, %c0_7] : memref<5x256xf32, #tpu.memory_space<vmem>>, vector<1x128xf32>
    %c0_8 = arith.constant 0 : index
    %c0_9 = arith.constant 0 : index
    %7 = vector.load %arg1[%c0_8, %c0_9] : memref<8x1024xf32, #tpu.memory_space<vmem>>, vector<8x1024xf32>
    %cst = arith.constant 0.000000e+00 : f32
    %8 = vector.broadcast %cst : f32 to vector<8x1024xf32>
    %9 = arith.cmpf oge, %7, %8 : vector<8x1024xf32>
    %cst_10 = arith.constant 1.000000e+00 : f32
    %cst_11 = arith.constant -1.000000e+00 : f32
    %10 = vector.broadcast %cst_10 : f32 to vector<8x1024xf32>
    %11 = vector.broadcast %cst_11 : f32 to vector<8x1024xf32>
    %12 = arith.select %9, %10, %11 : vector<8x1024xi1>, vector<8x1024xf32>
    %13 = arith.truncf %12 : vector<8x1024xf32> to vector<8x1024xbf16>
    %c0_12 = arith.constant 0 : index
    %c0_13 = arith.constant 0 : index
    %14 = vector.load %arg2[%c0_12, %c0_13] : memref<1024x256xbf16, #tpu.memory_space<vmem>>, vector<1024x256xbf16>
    %cst_14 = arith.constant dense<0.000000e+00> : vector<8x256xf32>
    %15 = tpu.matmul %13, %14, %cst_14 {dimension_numbers = #tpu.dot_dimension_numbers<[1], [0], [0], [1], [0, 0, 1, 1], [], []>} : vector<8x1024xbf16>, vector<1024x256xbf16>, vector<8x256xf32> -> vector<8x256xf32>
    %cst_15 = arith.constant dense<0.000000e+00> : vector<256xf32>
    %16 = vector.multi_reduction <add>, %15, %cst_15 [0] : vector<8x256xf32> to vector<256xf32>
    %17 = vector.shape_cast %16 : vector<256xf32> to vector<1x256xf32>
    %cst_16 = arith.constant 8.000000e+00 : f32
    %18 = vector.broadcast %cst_16 : f32 to vector<1x256xf32>
    %19 = arith.divf %17, %18 : vector<1x256xf32>
    %20 = vector.broadcast %19 : vector<1x256xf32> to vector<8x256xf32>
    %21 = arith.subf %15, %20 : vector<8x256xf32>
    %22 = arith.mulf %21, %21 : vector<8x256xf32>
    %cst_17 = arith.constant dense<0.000000e+00> : vector<256xf32>
    %23 = vector.multi_reduction <add>, %22, %cst_17 [0] : vector<8x256xf32> to vector<256xf32>
    %24 = vector.shape_cast %23 : vector<256xf32> to vector<1x256xf32>
    %cst_18 = arith.constant 8.000000e+00 : f32
    %25 = vector.broadcast %cst_18 : f32 to vector<1x256xf32>
    %26 = arith.divf %24, %25 : vector<1x256xf32>
    %cst_19 = arith.constant 9.99999974E-6 : f32
    %27 = vector.broadcast %cst_19 : f32 to vector<1x256xf32>
    %28 = arith.addf %26, %27 : vector<1x256xf32>
    %29 = math.rsqrt %28 : vector<1x256xf32>
    %30 = arith.mulf %29, %0 : vector<1x256xf32>
    %31 = arith.mulf %19, %30 : vector<1x256xf32>
    %32 = arith.subf %1, %31 : vector<1x256xf32>
    %33 = vector.broadcast %30 : vector<1x256xf32> to vector<8x256xf32>
    %34 = arith.mulf %15, %33 : vector<8x256xf32>
    %35 = vector.broadcast %32 : vector<1x256xf32> to vector<8x256xf32>
    %36 = arith.addf %34, %35 : vector<8x256xf32>
    %cst_20 = arith.constant 0.000000e+00 : f32
    %37 = vector.broadcast %cst_20 : f32 to vector<8x256xf32>
    %38 = arith.maximumf %36, %37 : vector<8x256xf32>
    %cst_21 = arith.constant 0.000000e+00 : f32
    %39 = vector.broadcast %cst_21 : f32 to vector<8x256xf32>
    %40 = arith.cmpf oge, %38, %39 : vector<8x256xf32>
    %cst_22 = arith.constant 1.000000e+00 : f32
    %cst_23 = arith.constant -1.000000e+00 : f32
    %41 = vector.broadcast %cst_22 : f32 to vector<8x256xf32>
    %42 = vector.broadcast %cst_23 : f32 to vector<8x256xf32>
    %43 = arith.select %40, %41, %42 : vector<8x256xi1>, vector<8x256xf32>
    %44 = arith.truncf %43 : vector<8x256xf32> to vector<8x256xbf16>
    %c0_24 = arith.constant 0 : index
    %c0_25 = arith.constant 0 : index
    %45 = vector.load %arg3[%c0_24, %c0_25] : memref<256x128xbf16, #tpu.memory_space<vmem>>, vector<256x128xbf16>
    %cst_26 = arith.constant dense<0.000000e+00> : vector<8x128xf32>
    %46 = tpu.matmul %44, %45, %cst_26 {dimension_numbers = #tpu.dot_dimension_numbers<[1], [0], [0], [1], [0, 0, 1, 1], [], []>} : vector<8x256xbf16>, vector<256x128xbf16>, vector<8x128xf32> -> vector<8x128xf32>
    %cst_27 = arith.constant dense<0.000000e+00> : vector<128xf32>
    %47 = vector.multi_reduction <add>, %46, %cst_27 [0] : vector<8x128xf32> to vector<128xf32>
    %48 = vector.shape_cast %47 : vector<128xf32> to vector<1x128xf32>
    %cst_28 = arith.constant 8.000000e+00 : f32
    %49 = vector.broadcast %cst_28 : f32 to vector<1x128xf32>
    %50 = arith.divf %48, %49 : vector<1x128xf32>
    %51 = vector.broadcast %50 : vector<1x128xf32> to vector<8x128xf32>
    %52 = arith.subf %46, %51 : vector<8x128xf32>
    %53 = arith.mulf %52, %52 : vector<8x128xf32>
    %cst_29 = arith.constant dense<0.000000e+00> : vector<128xf32>
    %54 = vector.multi_reduction <add>, %53, %cst_29 [0] : vector<8x128xf32> to vector<128xf32>
    %55 = vector.shape_cast %54 : vector<128xf32> to vector<1x128xf32>
    %cst_30 = arith.constant 8.000000e+00 : f32
    %56 = vector.broadcast %cst_30 : f32 to vector<1x128xf32>
    %57 = arith.divf %55, %56 : vector<1x128xf32>
    %cst_31 = arith.constant 9.99999974E-6 : f32
    %58 = vector.broadcast %cst_31 : f32 to vector<1x128xf32>
    %59 = arith.addf %57, %58 : vector<1x128xf32>
    %60 = math.rsqrt %59 : vector<1x128xf32>
    %61 = arith.mulf %60, %2 : vector<1x128xf32>
    %62 = arith.mulf %50, %61 : vector<1x128xf32>
    %63 = arith.subf %4, %62 : vector<1x128xf32>
    %64 = vector.broadcast %61 : vector<1x128xf32> to vector<8x128xf32>
    %65 = arith.mulf %46, %64 : vector<8x128xf32>
    %66 = vector.broadcast %63 : vector<1x128xf32> to vector<8x128xf32>
    %67 = arith.addf %65, %66 : vector<8x128xf32>
    %cst_32 = arith.constant 0.000000e+00 : f32
    %68 = vector.broadcast %cst_32 : f32 to vector<8x128xf32>
    %69 = arith.maximumf %67, %68 : vector<8x128xf32>
    %cst_33 = arith.constant 0.000000e+00 : f32
    %70 = vector.broadcast %cst_33 : f32 to vector<8x128xf32>
    %71 = arith.cmpf oge, %69, %70 : vector<8x128xf32>
    %cst_34 = arith.constant 1.000000e+00 : f32
    %cst_35 = arith.constant -1.000000e+00 : f32
    %72 = vector.broadcast %cst_34 : f32 to vector<8x128xf32>
    %73 = vector.broadcast %cst_35 : f32 to vector<8x128xf32>
    %74 = arith.select %71, %72, %73 : vector<8x128xi1>, vector<8x128xf32>
    %75 = arith.truncf %74 : vector<8x128xf32> to vector<8x128xbf16>
    %c0_36 = arith.constant 0 : index
    %c0_37 = arith.constant 0 : index
    %76 = vector.load %arg4[%c0_36, %c0_37] : memref<128x128xbf16, #tpu.memory_space<vmem>>, vector<128x128xbf16>
    %cst_38 = arith.constant dense<0.000000e+00> : vector<8x128xf32>
    %77 = tpu.matmul %75, %76, %cst_38 {dimension_numbers = #tpu.dot_dimension_numbers<[1], [0], [0], [1], [0, 0, 1, 1], [], []>} : vector<8x128xbf16>, vector<128x128xbf16>, vector<8x128xf32> -> vector<8x128xf32>
    %cst_39 = arith.constant dense<0.000000e+00> : vector<128xf32>
    %78 = vector.multi_reduction <add>, %77, %cst_39 [0] : vector<8x128xf32> to vector<128xf32>
    %79 = vector.shape_cast %78 : vector<128xf32> to vector<1x128xf32>
    %cst_40 = arith.constant 8.000000e+00 : f32
    %80 = vector.broadcast %cst_40 : f32 to vector<1x128xf32>
    %81 = arith.divf %79, %80 : vector<1x128xf32>
    %82 = vector.broadcast %81 : vector<1x128xf32> to vector<8x128xf32>
    %83 = arith.subf %77, %82 : vector<8x128xf32>
    %84 = arith.mulf %83, %83 : vector<8x128xf32>
    %cst_41 = arith.constant dense<0.000000e+00> : vector<128xf32>
    %85 = vector.multi_reduction <add>, %84, %cst_41 [0] : vector<8x128xf32> to vector<128xf32>
    %86 = vector.shape_cast %85 : vector<128xf32> to vector<1x128xf32>
    %cst_42 = arith.constant 8.000000e+00 : f32
    %87 = vector.broadcast %cst_42 : f32 to vector<1x128xf32>
    %88 = arith.divf %86, %87 : vector<1x128xf32>
    %cst_43 = arith.constant 9.99999974E-6 : f32
    %89 = vector.broadcast %cst_43 : f32 to vector<1x128xf32>
    %90 = arith.addf %88, %89 : vector<1x128xf32>
    %91 = math.rsqrt %90 : vector<1x128xf32>
    %92 = arith.mulf %91, %3 : vector<1x128xf32>
    %93 = arith.mulf %81, %92 : vector<1x128xf32>
    %94 = arith.subf %5, %93 : vector<1x128xf32>
    %95 = vector.broadcast %92 : vector<1x128xf32> to vector<8x128xf32>
    %96 = arith.mulf %77, %95 : vector<8x128xf32>
    %97 = vector.broadcast %94 : vector<1x128xf32> to vector<8x128xf32>
    %98 = arith.addf %96, %97 : vector<8x128xf32>
    %cst_44 = arith.constant 0.000000e+00 : f32
    %99 = vector.broadcast %cst_44 : f32 to vector<8x128xf32>
    %100 = arith.maximumf %98, %99 : vector<8x128xf32>
    %cst_45 = arith.constant 0.000000e+00 : f32
    %101 = vector.broadcast %cst_45 : f32 to vector<8x128xf32>
    %102 = arith.cmpf oge, %100, %101 : vector<8x128xf32>
    %cst_46 = arith.constant 1.000000e+00 : f32
    %cst_47 = arith.constant -1.000000e+00 : f32
    %103 = vector.broadcast %cst_46 : f32 to vector<8x128xf32>
    %104 = vector.broadcast %cst_47 : f32 to vector<8x128xf32>
    %105 = arith.select %102, %103, %104 : vector<8x128xi1>, vector<8x128xf32>
    %106 = arith.truncf %105 : vector<8x128xf32> to vector<8x128xbf16>
    %c0_48 = arith.constant 0 : index
    %c0_49 = arith.constant 0 : index
    %107 = vector.load %arg5[%c0_48, %c0_49] : memref<128x128xbf16, #tpu.memory_space<vmem>>, vector<128x128xbf16>
    %cst_50 = arith.constant dense<0.000000e+00> : vector<8x128xf32>
    %108 = tpu.matmul %106, %107, %cst_50 {dimension_numbers = #tpu.dot_dimension_numbers<[1], [0], [0], [1], [0, 0, 1, 1], [], []>} : vector<8x128xbf16>, vector<128x128xbf16>, vector<8x128xf32> -> vector<8x128xf32>
    %109 = vector.broadcast %6 : vector<1x128xf32> to vector<8x128xf32>
    %110 = arith.addf %108, %109 : vector<8x128xf32>
    %c0_51 = arith.constant 0 : index
    %c0_52 = arith.constant 0 : index
    %111 = vector.load %arg7[%c0_51, %c0_52] : memref<8x128xf32, #tpu.memory_space<vmem>>, vector<8x128xf32>
    tpu.vector_store %arg7[%c0_51, %c0_52], %110 {strides = array<i32>} : memref<8x128xf32, #tpu.memory_space<vmem>>, vector<8x128xf32>,
    return
  }
  func.func @transform_0(%arg0: i32) -> (i32, i32) {
    %c0_i32 = arith.constant 0 : i32
    %c0_i32_0 = arith.constant 0 : i32
    return %arg0, %c0_i32 : i32, i32
  }
  func.func @transform_1(%arg0: i32) -> (i32, i32) {
    %c0_i32 = arith.constant 0 : i32
    %c0_i32_0 = arith.constant 0 : i32
    %c0_i32_1 = arith.constant 0 : i32
    return %c0_i32, %c0_i32_0 : i32, i32
  }
  func.func @transform_2(%arg0: i32) -> (i32, i32) {
    %c0_i32 = arith.constant 0 : i32
    %c0_i32_0 = arith.constant 0 : i32
    %c0_i32_1 = arith.constant 0 : i32
    return %c0_i32, %c0_i32_0 : i32, i32
  }
  func.func @transform_3(%arg0: i32) -> (i32, i32) {
    %c0_i32 = arith.constant 0 : i32
    %c0_i32_0 = arith.constant 0 : i32
    %c0_i32_1 = arith.constant 0 : i32
    return %c0_i32, %c0_i32_0 : i32, i32
  }
  func.func @transform_4(%arg0: i32) -> (i32, i32) {
    %c0_i32 = arith.constant 0 : i32
    %c0_i32_0 = arith.constant 0 : i32
    %c0_i32_1 = arith.constant 0 : i32
    return %c0_i32, %c0_i32_0 : i32, i32
  }
  func.func @transform_5(%arg0: i32) -> (i32, i32) {
    %c0_i32 = arith.constant 0 : i32
    %c0_i32_0 = arith.constant 0 : i32
    %c0_i32_1 = arith.constant 0 : i32
    return %c0_i32, %c0_i32_0 : i32, i32
  }
  func.func @transform_6(%arg0: i32) -> (i32, i32) {
    %c0_i32 = arith.constant 0 : i32
    %c0_i32_0 = arith.constant 0 : i32
    return %arg0, %c0_i32 : i32, i32
  }
}

module attributes {stable_mosaic.version = 11 : i64} {
  func.func @mlp_kernel(%arg0: i32, %arg1: memref<8x1024xf32, #tpu.memory_space<vmem>>, %arg2: memref<1024x256xbf16, #tpu.memory_space<vmem>>, %arg3: memref<256x128xbf16, #tpu.memory_space<vmem>>, %arg4: memref<128x128xbf16, #tpu.memory_space<vmem>>, %arg5: memref<128x128xbf16, #tpu.memory_space<vmem>>, %arg6: memref<5x256xf32, #tpu.memory_space<vmem>>, %arg7: memref<8x128xf32, #tpu.memory_space<vmem>>) attributes {dimension_semantics = [#tpu.dimension_semantics<parallel>], iteration_bounds = array<i64: 1>, scalar_prefetch = 0 : i64, scratch_operands = 0 : i64, tpu.core_type = #tpu.core_type<tc>, window_params = [{transform_indices = @transform_0, window_bounds = array<i64: 8, 1024>}, {pipeline_mode = #tpu.pipeline_mode<synchronous>, transform_indices = @transform_1, window_bounds = array<i64: 1024, 256>}, {pipeline_mode = #tpu.pipeline_mode<synchronous>, transform_indices = @transform_2, window_bounds = array<i64: 256, 128>}, {pipeline_mode = #tpu.pipeline_mode<synchronous>, transform_indices = @transform_3, window_bounds = array<i64: 128, 128>}, {pipeline_mode = #tpu.pipeline_mode<synchronous>, transform_indices = @transform_4, window_bounds = array<i64: 128, 128>}, {pipeline_mode = #tpu.pipeline_mode<synchronous>, transform_indices = @transform_5, window_bounds = array<i64: 5, 256>}, {transform_indices = @transform_6, window_bounds = array<i64: 8, 128>}]} {
    %c0 = arith.constant 0 : index
    %c0_0 = arith.constant 0 : index
    %0 = vector.load %arg6[%c0, %c0_0] : memref<5x256xf32, #tpu.memory_space<vmem>>, vector<1x256xf32>
    %c1 = arith.constant 1 : index
    %c0_1 = arith.constant 0 : index
    %1 = vector.load %arg6[%c1, %c0_1] : memref<5x256xf32, #tpu.memory_space<vmem>>, vector<1x256xf32>
    %c2 = arith.constant 2 : index
    %c0_2 = arith.constant 0 : index
    %2 = vector.load %arg6[%c2, %c0_2] : memref<5x256xf32, #tpu.memory_space<vmem>>, vector<1x128xf32>
    %c2_3 = arith.constant 2 : index
    %c128 = arith.constant 128 : index
    %3 = vector.load %arg6[%c2_3, %c128] : memref<5x256xf32, #tpu.memory_space<vmem>>, vector<1x128xf32>
    %c3 = arith.constant 3 : index
    %c0_4 = arith.constant 0 : index
    %4 = vector.load %arg6[%c3, %c0_4] : memref<5x256xf32, #tpu.memory_space<vmem>>, vector<1x128xf32>
    %c3_5 = arith.constant 3 : index
    %c128_6 = arith.constant 128 : index
    %5 = vector.load %arg6[%c3_5, %c128_6] : memref<5x256xf32, #tpu.memory_space<vmem>>, vector<1x128xf32>
    %c4 = arith.constant 4 : index
    %c0_7 = arith.constant 0 : index
    %6 = vector.load %arg6[%c4, %c0_7] : memref<5x256xf32, #tpu.memory_space<vmem>>, vector<1x128xf32>
    %c0_8 = arith.constant 0 : index
    %c0_9 = arith.constant 0 : index
    %7 = vector.load %arg1[%c0_8, %c0_9] : memref<8x1024xf32, #tpu.memory_space<vmem>>, vector<8x1024xf32>
    %cst = arith.constant 0.000000e+00 : f32
    %8 = vector.broadcast %cst : f32 to vector<8x1024xf32>
    %9 = arith.cmpf oge, %7, %8 : vector<8x1024xf32>
    %cst_10 = arith.constant 1.000000e+00 : f32
    %cst_11 = arith.constant -1.000000e+00 : f32
    %10 = vector.broadcast %cst_10 : f32 to vector<8x1024xf32>
    %11 = vector.broadcast %cst_11 : f32 to vector<8x1024xf32>
    %12 = arith.select %9, %10, %11 : vector<8x1024xi1>, vector<8x1024xf32>
    %13 = arith.truncf %12 : vector<8x1024xf32> to vector<8x1024xbf16>
    %c0_12 = arith.constant 0 : index
    %c0_13 = arith.constant 0 : index
    %14 = vector.load %arg2[%c0_12, %c0_13] : memref<1024x256xbf16, #tpu.memory_space<vmem>>, vector<1024x256xbf16>
    %cst_14 = arith.constant dense<0.000000e+00> : vector<8x256xf32>
    %15 = tpu.matmul %13, %14, %cst_14 {dimension_numbers = #tpu.dot_dimension_numbers<[1], [0], [0], [1], [0, 0, 1, 1], [], []>} : vector<8x1024xbf16>, vector<1024x256xbf16>, vector<8x256xf32> -> vector<8x256xf32>
    %cst_15 = arith.constant dense<0.000000e+00> : vector<256xf32>
    %16 = vector.multi_reduction <add>, %15, %cst_15 [0] : vector<8x256xf32> to vector<256xf32>
    %17 = vector.shape_cast %16 : vector<256xf32> to vector<1x256xf32>
    %cst_16 = arith.constant 8.000000e+00 : f32
    %18 = vector.broadcast %cst_16 : f32 to vector<1x256xf32>
    %19 = arith.divf %17, %18 : vector<1x256xf32>
    %20 = vector.broadcast %19 : vector<1x256xf32> to vector<8x256xf32>
    %21 = arith.subf %15, %20 : vector<8x256xf32>
    %22 = arith.mulf %21, %21 : vector<8x256xf32>
    %cst_17 = arith.constant dense<0.000000e+00> : vector<256xf32>
    %23 = vector.multi_reduction <add>, %22, %cst_17 [0] : vector<8x256xf32> to vector<256xf32>
    %24 = vector.shape_cast %23 : vector<256xf32> to vector<1x256xf32>
    %cst_18 = arith.constant 8.000000e+00 : f32
    %25 = vector.broadcast %cst_18 : f32 to vector<1x256xf32>
    %26 = arith.divf %24, %25 : vector<1x256xf32>
    %cst_19 = arith.constant 9.99999974E-6 : f32
    %27 = vector.broadcast %cst_19 : f32 to vector<1x256xf32>
    %28 = arith.addf %26, %27 : vector<1x256xf32>
    %29 = math.rsqrt %28 : vector<1x256xf32>
    %30 = arith.mulf %29, %0 : vector<1x256xf32>
    %31 = arith.mulf %19, %30 : vector<1x256xf32>
    %32 = arith.subf %1, %31 : vector<1x256xf32>
    %33 = vector.broadcast %30 : vector<1x256xf32> to vector<8x256xf32>
    %34 = arith.mulf %15, %33 : vector<8x256xf32>
    %35 = vector.broadcast %32 : vector<1x256xf32> to vector<8x256xf32>
    %36 = arith.addf %34, %35 : vector<8x256xf32>
    %cst_20 = arith.constant 0.000000e+00 : f32
    %37 = vector.broadcast %cst_20 : f32 to vector<8x256xf32>
    %38 = arith.maximumf %36, %37 : vector<8x256xf32>
    %cst_21 = arith.constant 0.000000e+00 : f32
    %39 = vector.broadcast %cst_21 : f32 to vector<8x256xf32>
    %40 = arith.cmpf oge, %38, %39 : vector<8x256xf32>
    %cst_22 = arith.constant 1.000000e+00 : f32
    %cst_23 = arith.constant -1.000000e+00 : f32
    %41 = vector.broadcast %cst_22 : f32 to vector<8x256xf32>
    %42 = vector.broadcast %cst_23 : f32 to vector<8x256xf32>
    %43 = arith.select %40, %41, %42 : vector<8x256xi1>, vector<8x256xf32>
    %44 = arith.truncf %43 : vector<8x256xf32> to vector<8x256xbf16>
    %c0_24 = arith.constant 0 : index
    %c0_25 = arith.constant 0 : index
    %45 = vector.load %arg3[%c0_24, %c0_25] : memref<256x128xbf16, #tpu.memory_space<vmem>>, vector<256x128xbf16>
    %cst_26 = arith.constant dense<0.000000e+00> : vector<8x128xf32>
    %46 = tpu.matmul %44, %45, %cst_26 {dimension_numbers = #tpu.dot_dimension_numbers<[1], [0], [0], [1], [0, 0, 1, 1], [], []>} : vector<8x256xbf16>, vector<256x128xbf16>, vector<8x128xf32> -> vector<8x128xf32>
    %cst_27 = arith.constant dense<0.000000e+00> : vector<128xf32>
    %47 = vector.multi_reduction <add>, %46, %cst_27 [0] : vector<8x128xf32> to vector<128xf32>
    %48 = vector.shape_cast %47 : vector<128xf32> to vector<1x128xf32>
    %cst_28 = arith.constant 8.000000e+00 : f32
    %49 = vector.broadcast %cst_28 : f32 to vector<1x128xf32>
    %50 = arith.divf %48, %49 : vector<1x128xf32>
    %51 = vector.broadcast %50 : vector<1x128xf32> to vector<8x128xf32>
    %52 = arith.subf %46, %51 : vector<8x128xf32>
    %53 = arith.mulf %52, %52 : vector<8x128xf32>
    %cst_29 = arith.constant dense<0.000000e+00> : vector<128xf32>
    %54 = vector.multi_reduction <add>, %53, %cst_29 [0] : vector<8x128xf32> to vector<128xf32>
    %55 = vector.shape_cast %54 : vector<128xf32> to vector<1x128xf32>
    %cst_30 = arith.constant 8.000000e+00 : f32
    %56 = vector.broadcast %cst_30 : f32 to vector<1x128xf32>
    %57 = arith.divf %55, %56 : vector<1x128xf32>
    %cst_31 = arith.constant 9.99999974E-6 : f32
    %58 = vector.broadcast %cst_31 : f32 to vector<1x128xf32>
    %59 = arith.addf %57, %58 : vector<1x128xf32>
    %60 = math.rsqrt %59 : vector<1x128xf32>
    %61 = arith.mulf %60, %2 : vector<1x128xf32>
    %62 = arith.mulf %50, %61 : vector<1x128xf32>
    %63 = arith.subf %4, %62 : vector<1x128xf32>
    %64 = vector.broadcast %61 : vector<1x128xf32> to vector<8x128xf32>
    %65 = arith.mulf %46, %64 : vector<8x128xf32>
    %66 = vector.broadcast %63 : vector<1x128xf32> to vector<8x128xf32>
    %67 = arith.addf %65, %66 : vector<8x128xf32>
    %cst_32 = arith.constant 0.000000e+00 : f32
    %68 = vector.broadcast %cst_32 : f32 to vector<8x128xf32>
    %69 = arith.maximumf %67, %68 : vector<8x128xf32>
    %cst_33 = arith.constant 0.000000e+00 : f32
    %70 = vector.broadcast %cst_33 : f32 to vector<8x128xf32>
    %71 = arith.cmpf oge, %69, %70 : vector<8x128xf32>
    %cst_34 = arith.constant 1.000000e+00 : f32
    %cst_35 = arith.constant -1.000000e+00 : f32
    %72 = vector.broadcast %cst_34 : f32 to vector<8x128xf32>
    %73 = vector.broadcast %cst_35 : f32 to vector<8x128xf32>
    %74 = arith.select %71, %72, %73 : vector<8x128xi1>, vector<8x128xf32>
    %75 = arith.truncf %74 : vector<8x128xf32> to vector<8x128xbf16>
    %c0_36 = arith.constant 0 : index
    %c0_37 = arith.constant 0 : index
    %76 = vector.load %arg4[%c0_36, %c0_37] : memref<128x128xbf16, #tpu.memory_space<vmem>>, vector<128x128xbf16>
    %cst_38 = arith.constant dense<0.000000e+00> : vector<8x128xf32>
    %77 = tpu.matmul %75, %76, %cst_38 {dimension_numbers = #tpu.dot_dimension_numbers<[1], [0], [0], [1], [0, 0, 1, 1], [], []>} : vector<8x128xbf16>, vector<128x128xbf16>, vector<8x128xf32> -> vector<8x128xf32>
    %cst_39 = arith.constant dense<0.000000e+00> : vector<128xf32>
    %78 = vector.multi_reduction <add>, %77, %cst_39 [0] : vector<8x128xf32> to vector<128xf32>
    %79 = vector.shape_cast %78 : vector<128xf32> to vector<1x128xf32>
    %cst_40 = arith.constant 8.000000e+00 : f32
    %80 = vector.broadcast %cst_40 : f32 to vector<1x128xf32>
    %81 = arith.divf %79, %80 : vector<1x128xf32>
    %82 = vector.broadcast %81 : vector<1x128xf32> to vector<8x128xf32>
    %83 = arith.subf %77, %82 : vector<8x128xf32>
    %84 = arith.mulf %83, %83 : vector<8x128xf32>
    %cst_41 = arith.constant dense<0.000000e+00> : vector<128xf32>
    %85 = vector.multi_reduction <add>, %84, %cst_41 [0] : vector<8x128xf32> to vector<128xf32>
    %86 = vector.shape_cast %85 : vector<128xf32> to vector<1x128xf32>
    %cst_42 = arith.constant 8.000000e+00 : f32
    %87 = vector.broadcast %cst_42 : f32 to vector<1x128xf32>
    %88 = arith.divf %86, %87 : vector<1x128xf32>
    %cst_43 = arith.constant 9.99999974E-6 : f32
    %89 = vector.broadcast %cst_43 : f32 to vector<1x128xf32>
    %90 = arith.addf %88, %89 : vector<1x128xf32>
    %91 = math.rsqrt %90 : vector<1x128xf32>
    %92 = arith.mulf %91, %3 : vector<1x128xf32>
    %93 = arith.mulf %81, %92 : vector<1x128xf32>
    %94 = arith.subf %5, %93 : vector<1x128xf32>
    %95 = vector.broadcast %92 : vector<1x128xf32> to vector<8x128xf32>
    %96 = arith.mulf %77, %95 : vector<8x128xf32>
    %97 = vector.broadcast %94 : vector<1x128xf32> to vector<8x128xf32>
    %98 = arith.addf %96, %97 : vector<8x128xf32>
    %cst_44 = arith.constant 0.000000e+00 : f32
    %99 = vector.broadcast %cst_44 : f32 to vector<8x128xf32>
    %100 = arith.maximumf %98, %99 : vector<8x128xf32>
    %cst_45 = arith.constant 0.000000e+00 : f32
    %101 = vector.broadcast %cst_45 : f32 to vector<8x128xf32>
    %102 = arith.cmpf oge, %100, %101 : vector<8x128xf32>
    %cst_46 = arith.constant 1.000000e+00 : f32
    %cst_47 = arith.constant -1.000000e+00 : f32
    %103 = vector.broadcast %cst_46 : f32 to vector<8x128xf32>
    %104 = vector.broadcast %cst_47 : f32 to vector<8x128xf32>
    %105 = arith.select %102, %103, %104 : vector<8x128xi1>, vector<8x128xf32>
    %106 = arith.truncf %105 : vector<8x128xf32> to vector<8x128xbf16>
    %c0_48 = arith.constant 0 : index
    %c0_49 = arith.constant 0 : index
    %107 = vector.load %arg5[%c0_48, %c0_49] : memref<128x128xbf16, #tpu.memory_space<vmem>>, vector<128x128xbf16>
    %cst_50 = arith.constant dense<0.000000e+00> : vector<8x128xf32>
    %108 = tpu.matmul %106, %107, %cst_50 {dimension_numbers = #tpu.dot_dimension_numbers<[1], [0], [0], [1], [0, 0, 1, 1], [], []>} : vector<8x128xbf16>, vector<128x128xbf16>, vector<8x128xf32> -> vector<8x128xf32>
    %109 = vector.broadcast %6 : vector<1x128xf32> to vector<8x128xf32>
    %110 = arith.addf %108, %109 : vector<8x128xf32>
    %c0_51 = arith.constant 0 : index
    %c0_52 = arith.constant 0 : index
    %111 = vector.load %arg7[%c0_51, %c0_52] : memref<8x128xf32, #tpu.memory_space<vmem>>, vector<8x128xf32>
    tpu.vector_store %arg7[%c0_51, %c0_52], %110 {strides = array<i32>} : memref<8x128xf32, #tpu.memory_space<vmem>>, vector<8x128xf32>,
    return
  }
  func.func @transform_0(%arg0: i32) -> (i32, i32) {
    %c0_i32 = arith.constant 0 : i32
    %c0_i32_0 = arith.constant 0 : i32
    return %arg0, %c0_i32 : i32, i32
  }
  func.func @transform_1(%arg0: i32) -> (i32, i32) {
    %c0_i32 = arith.constant 0 : i32
    %c0_i32_0 = arith.constant 0 : i32
    %c0_i32_1 = arith.constant 0 : i32
    return %c0_i32, %c0_i32_0 : i32, i32
  }
  func.func @transform_2(%arg0: i32) -> (i32, i32) {
    %c0_i32 = arith.constant 0 : i32
    %c0_i32_0 = arith.constant 0 : i32
    %c0_i32_1 = arith.constant 0 : i32
    return %c0_i32, %c0_i32_0 : i32, i32
  }
  func.func @transform_3(%arg0: i32) -> (i32, i32) {
    %c0_i32 = arith.constant 0 : i32
    %c0_i32_0 = arith.constant 0 : i32
    %c0_i32_1 = arith.constant 0 : i32
    return %c0_i32, %c0_i32_0 : i32, i32
  }
  func.func @transform_4(%arg0: i32) -> (i32, i32) {
    %c0_i32 = arith.constant 0 : i32
    %c0_i32_0 = arith.constant 0 : i32
    %c0_i32_1 = arith.constant 0 : i32
    return %c0_i32, %c0_i32_0 : i32, i32
  }
  func.func @transform_5(%arg0: i32) -> (i32, i32) {
    %c0_i32 = arith.constant 0 : i32
    %c0_i32_0 = arith.constant 0 : i32
    %c0_i32_1 = arith.constant 0 : i32
    return %c0_i32, %c0_i32_0 : i32, i32
  }
  func.func @transform_6(%arg0: i32) -> (i32, i32) {
    %c0_i32 = arith.constant 0 : i32
    %c0_i32_0 = arith.constant 0 : i32
    return %arg0, %c0_i32 : i32, i32
  }
}

</mosaic_0001>

<llo_original>
// kernel: tpu_custom_call.1
$region0: #{tpu_custom_call.1}
  #allocation0 [shape = 'u32[]', space=smem, size = 0x4, offset = 0x4, fixed_abs, tag = 'smem constant byte address 0x4 - core index']
  #allocation1 [shape = 'u32[72,128]{1,0:T(1,128)}', space=vmem, size = 0x9000, scoped, tag = 'internal scratch']
  %s0 = inlined_call_operand.hbm [shape: f32[8,1024], index: 0, kind: input, shape index: {}]
  %s1 = inlined_call_operand.hbm [shape: bf16[1024,256], index: 1, kind: input, shape index: {}]
  %s2 = inlined_call_operand.hbm [shape: bf16[256,128], index: 2, kind: input, shape index: {}]
  %s3 = inlined_call_operand.hbm [shape: bf16[128,128], index: 3, kind: input, shape index: {}]
  %s4 = inlined_call_operand.hbm [shape: bf16[128,128], index: 4, kind: input, shape index: {}]
  %s5 = inlined_call_operand.hbm [shape: f32[5,256], index: 5, kind: input, shape index: {}]
  %s6 = inlined_call_operand.hbm [shape: f32[8,128], index: 6, kind: output, shape index: {}]
  %s7 = sld [smem:[#allocation0]]
  $region58: #{tpu_custom_call.1} parent=0
    _
  %s9 = ssub.s32 1, %s7
  %s10 = scalar_select 0, %s9, %s7
  $region1: #{tpu_custom_call.1} parent=0
    #allocation2 [shape = 'u8[32768]{0}', space=vmem, size = 0x8000, scoped, tag = 'input window, operand 0, single buffered']
    #allocation3 [shape = 's32[1]{0}', space=sflag, size = 0x4, scoped, tag = 'scoped memory for tpu_custom_call.1']
    #allocation4 [shape = 's32[1]{0}', space=sflag, size = 0x4, scoped, tag = 'scoped memory for tpu_custom_call.1']
    #allocation5 [shape = 'u8[524288]{0}', space=vmem, size = 0x80000, scoped, tag = 'input window, operand 1, single buffered']
    #allocation6 [shape = 's32[1]{0}', space=sflag, size = 0x4, scoped, tag = 'scoped memory for tpu_custom_call.1']
    #allocation7 [shape = 'u8[65536]{0}', space=vmem, size = 0x10000, scoped, tag = 'input window, operand 2, single buffered']
    #allocation8 [shape = 'u8[32768]{0}', space=vmem, size = 0x8000, scoped, tag = 'input window, operand 3, single buffered']
    #allocation9 [shape = 's32[1]{0}', space=sflag, size = 0x4, scoped, tag = 'scoped memory for tpu_custom_call.1']
    #allocation10 [shape = 'u8[32768]{0}', space=vmem, size = 0x8000, scoped, tag = 'input window, operand 4, single buffered']
    #allocation11 [shape = 'u8[8192]{0}', space=vmem, size = 0x2000, scoped, tag = 'input window, operand 5, single buffered']
    #allocation12 [shape = 's32[1]{0}', space=sflag, size = 0x4, scoped, tag = 'scoped memory for tpu_custom_call.1']
    #allocation13 [shape = 'u8[4096]{0}', space=vmem, size = 0x1000, scoped, tag = 'output window, operand 0, single buffered']
    %11 = vsyncpa [#allocation3], 0
    %12 = vsyncpa [#allocation6], 0
    %13 = vsyncpa [#allocation9], 0
    %14 = vsyncpa [#allocation12], 0
    %15 = vsyncpa [#allocation4], 0
    // Predicated region
    $region2: #{tpu_custom_call.1} parent=1 // pred_check
      _
    $region3: #{tpu_custom_call.1} parent=1 // pred_check_branch
      %17 = sbr.rel (0) target = $region5
    $region4: #{tpu_custom_call.1} parent=1 // pred_region
      %19 = vsyncadd [#allocation3], 0
      %s21 = sshll.u32 %s0, 4
      %s22 = int_to_ptr.hbm [resolvable:$true] %s21
      %s23 = sshll.u32 [#allocation2], 4
      %s24 = int_to_ptr.vmem [resolvable:$true] %s23
      %26 = dma.hbm_to_vmem [thread:$0]  %s22, 1024, %s24, [#allocation3]
    $region5: #{tpu_custom_call.1} parent=1 // pred_fallthru
      _
    // Predicated region
    $region6: #{tpu_custom_call.1} parent=1 // pred_check
      _
    $region7: #{tpu_custom_call.1} parent=1 // pred_check_branch
      %28 = sbr.rel (0) target = $region9
    $region8: #{tpu_custom_call.1} parent=1 // pred_region
      %30 = vsyncadd [#allocation6], 0
      %s31 = sshll.u32 %s1, 4
      %s32 = int_to_ptr.hbm [resolvable:$true] %s31
      %s33 = sshll.u32 [#allocation5], 4
      %s34 = int_to_ptr.vmem [resolvable:$true] %s33
      %39 = dma.hbm_to_vmem [thread:$0]  %s32, 16384, %s34, [#allocation6], 128, 128, 8
    $region9: #{tpu_custom_call.1} parent=1 // pred_fallthru
      _
    // Predicated region
    $region10: #{tpu_custom_call.1} parent=1 // pred_check
      _
    $region11: #{tpu_custom_call.1} parent=1 // pred_check_branch
      %41 = sbr.rel (0) target = $region13
    $region12: #{tpu_custom_call.1} parent=1 // pred_region
      %43 = vsyncadd [#allocation6], 0
      %s44 = sshll.u32 %s2, 4
      %s45 = int_to_ptr.hbm [resolvable:$true] %s44
      %s46 = sshll.u32 [#allocation7], 4
      %s47 = int_to_ptr.vmem [resolvable:$true] %s46
      %52 = dma.hbm_to_vmem [thread:$0]  %s45, 2048, %s47, [#allocation6], 64, 64, 4
    $region13: #{tpu_custom_call.1} parent=1 // pred_fallthru
      _
    // Predicated region
    $region14: #{tpu_custom_call.1} parent=1 // pred_check
      _
    $region15: #{tpu_custom_call.1} parent=1 // pred_check_branch
      %54 = sbr.rel (0) target = $region17
    $region16: #{tpu_custom_call.1} parent=1 // pred_region
      %56 = vsyncadd [#allocation9], 0
      %s57 = sshll.u32 %s3, 4
      %s58 = int_to_ptr.hbm [resolvable:$true] %s57
      %s59 = sshll.u32 [#allocation8], 4
      %s60 = int_to_ptr.vmem [resolvable:$true] %s59
      %65 = dma.hbm_to_vmem [thread:$0]  %s58, 1024, %s60, [#allocation9], 64, 64, 4
    $region17: #{tpu_custom_call.1} parent=1 // pred_fallthru
      _
    // Predicated region
    $region18: #{tpu_custom_call.1} parent=1 // pred_check
      _
    $region19: #{tpu_custom_call.1} parent=1 // pred_check_branch
      %67 = sbr.rel (0) target = $region21
    $region20: #{tpu_custom_call.1} parent=1 // pred_region
      %69 = vsyncadd [#allocation9], 0
      %s70 = sshll.u32 %s4, 4
      %s71 = int_to_ptr.hbm [resolvable:$true] %s70
      %s72 = sshll.u32 [#allocation10], 4
      %s73 = int_to_ptr.vmem [resolvable:$true] %s72
      %78 = dma.hbm_to_vmem [thread:$0]  %s71, 1024, %s73, [#allocation9], 64, 64, 4
    $region21: #{tpu_custom_call.1} parent=1 // pred_fallthru
      _
    // Predicated region
    $region22: #{tpu_custom_call.1} parent=1 // pred_check
      _
    $region23: #{tpu_custom_call.1} parent=1 // pred_check_branch
      %80 = sbr.rel (0) target = $region25
    $region24: #{tpu_custom_call.1} parent=1 // pred_region
      %82 = vsyncadd [#allocation12], 0
      %s84 = sshll.u32 %s5, 4
      %s85 = int_to_ptr.hbm [resolvable:$true] %s84
      %s86 = sshll.u32 [#allocation11], 4
      %s87 = int_to_ptr.vmem [resolvable:$true] %s86
      %89 = dma.hbm_to_vmem [thread:$0]  %s85, 256, %s87, [#allocation12]
    $region25: #{tpu_custom_call.1} parent=1 // pred_fallthru
      _
    // Predicated region
    $region26: #{tpu_custom_call.1} parent=1 // pred_check
      _
    $region27: #{tpu_custom_call.1} parent=1 // pred_check_branch
      %91 = sbr.rel (0) target = $region29
    $region28: #{tpu_custom_call.1} parent=1 // pred_region
      %93 = dma.done [#allocation3], 1024
    $region29: #{tpu_custom_call.1} parent=1 // pred_fallthru
      _
    // Predicated region
    $region30: #{tpu_custom_call.1} parent=1 // pred_check
      _
    $region31: #{tpu_custom_call.1} parent=1 // pred_check_branch
      %95 = sbr.rel (0) target = $region33
    $region32: #{tpu_custom_call.1} parent=1 // pred_region
      %97 = dma.done [#allocation6], 16384
    $region33: #{tpu_custom_call.1} parent=1 // pred_fallthru
      _
    // Predicated region
    $region34: #{tpu_custom_call.1} parent=1 // pred_check
      _
    $region35: #{tpu_custom_call.1} parent=1 // pred_check_branch
      %99 = sbr.rel (0) target = $region37
    $region36: #{tpu_custom_call.1} parent=1 // pred_region
      %101 = dma.done [#allocation6], 2048
    $region37: #{tpu_custom_call.1} parent=1 // pred_fallthru
      _
    // Predicated region
    $region38: #{tpu_custom_call.1} parent=1 // pred_check
      _
    $region39: #{tpu_custom_call.1} parent=1 // pred_check_branch
      %103 = sbr.rel (0) target = $region41
    $region40: #{tpu_custom_call.1} parent=1 // pred_region
      %105 = dma.done [#allocation9], 1024
    $region41: #{tpu_custom_call.1} parent=1 // pred_fallthru
      _
    // Predicated region
    $region42: #{tpu_custom_call.1} parent=1 // pred_check
      _
    $region43: #{tpu_custom_call.1} parent=1 // pred_check_branch
      %107 = sbr.rel (0) target = $region45
    $region44: #{tpu_custom_call.1} parent=1 // pred_region
      %109 = dma.done [#allocation9], 1024
    $region45: #{tpu_custom_call.1} parent=1 // pred_fallthru
      _
    // Predicated region
    $region46: #{tpu_custom_call.1} parent=1 // pred_check
      _
    $region47: #{tpu_custom_call.1} parent=1 // pred_check_branch
      %111 = sbr.rel (0) target = $region49
    $region48: #{tpu_custom_call.1} parent=1 // pred_region
      %113 = dma.done [#allocation12], 256
    $region49: #{tpu_custom_call.1} parent=1 // pred_fallthru
      _
    %v114 = vld [vmem:[#allocation11] ss:$8 sm:$0x3]
    %s115 = scalar_lea.vmem [#allocation11], 1
    %v116 = vld [vmem:[%s115] ss:$8 sm:$0x3]
    %v117 = vld [vmem:[#allocation11 + $0x2] ss:$0 sm:$0xff]
    %v118 = vld [vmem:[#allocation11 + $0xa] ss:$0 sm:$0xff]
    %v119 = vld [vmem:[#allocation11 + $0x3] ss:$0 sm:$0xff]
    %v120 = vld [vmem:[#allocation11 + $0xb] ss:$0 sm:$0xff]
    %v121 = vld [vmem:[#allocation11 + $0x4] ss:$0 sm:$0xff]
    %v122 = vld [vmem:[#allocation2] sm:$0xff]
    %v123 = vld [vmem:[#allocation2 + $0x8] sm:$0xff]
    %v124 = vld [vmem:[#allocation2 + $0x10] sm:$0xff]
    %v125 = vld [vmem:[#allocation2 + $0x18] sm:$0xff]
    %v126 = vld [vmem:[#allocation2 + $0x20] sm:$0xff]
    %v127 = vld [vmem:[#allocation2 + $0x28] sm:$0xff]
    %v128 = vld [vmem:[#allocation2 + $0x30] sm:$0xff]
    %v129 = vld [vmem:[#allocation2 + $0x38] sm:$0xff]
    %vm130 = vcmp.ge.f32.partialorder %v122, 0.0
    %vm131 = vcmp.ge.f32.partialorder %v123, 0.0
    %vm132 = vcmp.ge.f32.partialorder %v124, 0.0
    %vm133 = vcmp.ge.f32.partialorder %v125, 0.0
    %vm134 = vcmp.ge.f32.partialorder %v126, 0.0
    %vm135 = vcmp.ge.f32.partialorder %v127, 0.0
    %vm136 = vcmp.ge.f32.partialorder %v128, 0.0
    %vm137 = vcmp.ge.f32.partialorder %v129, 0.0
    %v138 = vsel %vm130, 1.0, -1.0
    %v139 = vsel %vm131, 1.0, -1.0
    %v140 = vsel %vm132, 1.0, -1.0
    %v141 = vsel %vm133, 1.0, -1.0
    %v142 = vsel %vm134, 1.0, -1.0
    %v143 = vsel %vm135, 1.0, -1.0
    %v144 = vsel %vm136, 1.0, -1.0
    %v145 = vsel %vm137, 1.0, -1.0
    %v146 = vpack.c.bf16 %v138, %v138
    %v147 = vpack.c.bf16 %v139, %v139
    %v148 = vpack.c.bf16 %v140, %v140
    %v149 = vpack.c.bf16 %v141, %v141
    %v150 = vpack.c.bf16 %v142, %v142
    %v151 = vpack.c.bf16 %v143, %v143
    %v152 = vpack.c.bf16 %v144, %v144
    %v153 = vpack.c.bf16 %v145, %v145
    %v154 = vld [vmem:[#allocation5] sm:$0xff]
    %v155 = vld [vmem:[#allocation5 + $0x8] sm:$0xff]
    %v156 = vld [vmem:[#allocation5 + $0x10] sm:$0xff]
    %v157 = vld [vmem:[#allocation5 + $0x18] sm:$0xff]
    %v158 = vld [vmem:[#allocation5 + $0x20] sm:$0xff]
    %v159 = vld [vmem:[#allocation5 + $0x28] sm:$0xff]
    %v160 = vld [vmem:[#allocation5 + $0x30] sm:$0xff]
    %v161 = vld [vmem:[#allocation5 + $0x38] sm:$0xff]
    %v162 = vld [vmem:[#allocation5 + $0x40] sm:$0xff]
    %v163 = vld [vmem:[#allocation5 + $0x48] sm:$0xff]
    %v164 = vld [vmem:[#allocation5 + $0x50] sm:$0xff]
    %v165 = vld [vmem:[#allocation5 + $0x58] sm:$0xff]
    %v166 = vld [vmem:[#allocation5 + $0x60] sm:$0xff]
    %v167 = vld [vmem:[#allocation5 + $0x68] sm:$0xff]
    %v168 = vld [vmem:[#allocation5 + $0x70] sm:$0xff]
    %v169 = vld [vmem:[#allocation5 + $0x78] sm:$0xff]
    %v170 = vld [vmem:[#allocation5 + $0x80] sm:$0xff]
    %v171 = vld [vmem:[#allocation5 + $0x88] sm:$0xff]
    %v172 = vld [vmem:[#allocation5 + $0x90] sm:$0xff]
    %v173 = vld [vmem:[#allocation5 + $0x98] sm:$0xff]
    %v174 = vld [vmem:[#allocation5 + $0xa0] sm:$0xff]
    %v175 = vld [vmem:[#allocation5 + $0xa8] sm:$0xff]
    %v176 = vld [vmem:[#allocation5 + $0xb0] sm:$0xff]
    %v177 = vld [vmem:[#allocation5 + $0xb8] sm:$0xff]
    %v178 = vld [vmem:[#allocation5 + $0xc0] sm:$0xff]
    %v179 = vld [vmem:[#allocation5 + $0xc8] sm:$0xff]
    %v180 = vld [vmem:[#allocation5 + $0xd0] sm:$0xff]
    %v181 = vld [vmem:[#allocation5 + $0xd8] sm:$0xff]
    %v182 = vld [vmem:[#allocation5 + $0xe0] sm:$0xff]
    %v183 = vld [vmem:[#allocation5 + $0xe8] sm:$0xff]
    %v184 = vld [vmem:[#allocation5 + $0xf0] sm:$0xff]
    %v185 = vld [vmem:[#allocation5 + $0xf8] sm:$0xff]
    %v186 = vld [vmem:[#allocation5 + $0x100] sm:$0xff]
    %v187 = vld [vmem:[#allocation5 + $0x108] sm:$0xff]
    %v188 = vld [vmem:[#allocation5 + $0x110] sm:$0xff]
    %v189 = vld [vmem:[#allocation5 + $0x118] sm:$0xff]
    %v190 = vld [vmem:[#allocation5 + $0x120] sm:$0xff]
    %v191 = vld [vmem:[#allocation5 + $0x128] sm:$0xff]
    %v192 = vld [vmem:[#allocation5 + $0x130] sm:$0xff]
    %v193 = vld [vmem:[#allocation5 + $0x138] sm:$0xff]
    %v194 = vld [vmem:[#allocation5 + $0x140] sm:$0xff]
    %v195 = vld [vmem:[#allocation5 + $0x148] sm:$0xff]
    %v196 = vld [vmem:[#allocation5 + $0x150] sm:$0xff]
    %v197 = vld [vmem:[#allocation5 + $0x158] sm:$0xff]
    %v198 = vld [vmem:[#allocation5 + $0x160] sm:$0xff]
    %v199 = vld [vmem:[#allocation5 + $0x168] sm:$0xff]
    %v200 = vld [vmem:[#allocation5 + $0x170] sm:$0xff]
    %v201 = vld [vmem:[#allocation5 + $0x178] sm:$0xff]
    %v202 = vld [vmem:[#allocation5 + $0x180] sm:$0xff]
    %v203 = vld [vmem:[#allocation5 + $0x188] sm:$0xff]
    %v204 = vld [vmem:[#allocation5 + $0x190] sm:$0xff]
    %v205 = vld [vmem:[#allocation5 + $0x198] sm:$0xff]
    %v206 = vld [vmem:[#allocation5 + $0x1a0] sm:$0xff]
    %v207 = vld [vmem:[#allocation5 + $0x1a8] sm:$0xff]
    %v208 = vld [vmem:[#allocation5 + $0x1b0] sm:$0xff]
    %v209 = vld [vmem:[#allocation5 + $0x1b8] sm:$0xff]
    %v210 = vld [vmem:[#allocation5 + $0x1c0] sm:$0xff]
    %v211 = vld [vmem:[#allocation5 + $0x1c8] sm:$0xff]
    %v212 = vld [vmem:[#allocation5 + $0x1d0] sm:$0xff]
    %v213 = vld [vmem:[#allocation5 + $0x1d8] sm:$0xff]
    %v214 = vld [vmem:[#allocation5 + $0x1e0] sm:$0xff]
    %v215 = vld [vmem:[#allocation5 + $0x1e8] sm:$0xff]
    %v216 = vld [vmem:[#allocation5 + $0x1f0] sm:$0xff]
    %v217 = vld [vmem:[#allocation5 + $0x1f8] sm:$0xff]
    %v218 = vld [vmem:[#allocation5 + $0x200] sm:$0xff]
    %v219 = vld [vmem:[#allocation5 + $0x208] sm:$0xff]
    %v220 = vld [vmem:[#allocation5 + $0x210] sm:$0xff]
    %v221 = vld [vmem:[#allocation5 + $0x218] sm:$0xff]
    %v222 = vld [vmem:[#allocation5 + $0x220] sm:$0xff]
    %v223 = vld [vmem:[#allocation5 + $0x228] sm:$0xff]
    %v224 = vld [vmem:[#allocation5 + $0x230] sm:$0xff]
    %v225 = vld [vmem:[#allocation5 + $0x238] sm:$0xff]
    %v226 = vld [vmem:[#allocation5 + $0x240] sm:$0xff]
    %v227 = vld [vmem:[#allocation5 + $0x248] sm:$0xff]
    %v228 = vld [vmem:[#allocation5 + $0x250] sm:$0xff]
    %v229 = vld [vmem:[#allocation5 + $0x258] sm:$0xff]
    %v230 = vld [vmem:[#allocation5 + $0x260] sm:$0xff]
    %v231 = vld [vmem:[#allocation5 + $0x268] sm:$0xff]
    %v232 = vld [vmem:[#allocation5 + $0x270] sm:$0xff]
    %v233 = vld [vmem:[#allocation5 + $0x278] sm:$0xff]
    %v234 = vld [vmem:[#allocation5 + $0x280] sm:$0xff]
    %v235 = vld [vmem:[#allocation5 + $0x288] sm:$0xff]
    %v236 = vld [vmem:[#allocation5 + $0x290] sm:$0xff]
    %v237 = vld [vmem:[#allocation5 + $0x298] sm:$0xff]
    %v238 = vld [vmem:[#allocation5 + $0x2a0] sm:$0xff]
    %v239 = vld [vmem:[#allocation5 + $0x2a8] sm:$0xff]
    %v240 = vld [vmem:[#allocation5 + $0x2b0] sm:$0xff]
    %v241 = vld [vmem:[#allocation5 + $0x2b8] sm:$0xff]
    %v242 = vld [vmem:[#allocation5 + $0x2c0] sm:$0xff]
    %v243 = vld [vmem:[#allocation5 + $0x2c8] sm:$0xff]
    %v244 = vld [vmem:[#allocation5 + $0x2d0] sm:$0xff]
    %v245 = vld [vmem:[#allocation5 + $0x2d8] sm:$0xff]
    %v246 = vld [vmem:[#allocation5 + $0x2e0] sm:$0xff]
    %v247 = vld [vmem:[#allocation5 + $0x2e8] sm:$0xff]
    %v248 = vld [vmem:[#allocation5 + $0x2f0] sm:$0xff]
    %v249 = vld [vmem:[#allocation5 + $0x2f8] sm:$0xff]
    %v250 = vld [vmem:[#allocation5 + $0x300] sm:$0xff]
    %v251 = vld [vmem:[#allocation5 + $0x308] sm:$0xff]
    %v252 = vld [vmem:[#allocation5 + $0x310] sm:$0xff]
    %v253 = vld [vmem:[#allocation5 + $0x318] sm:$0xff]
    %v254 = vld [vmem:[#allocation5 + $0x320] sm:$0xff]
    %v255 = vld [vmem:[#allocation5 + $0x328] sm:$0xff]
    %v256 = vld [vmem:[#allocation5 + $0x330] sm:$0xff]
    %v257 = vld [vmem:[#allocation5 + $0x338] sm:$0xff]
    %v258 = vld [vmem:[#allocation5 + $0x340] sm:$0xff]
    %v259 = vld [vmem:[#allocation5 + $0x348] sm:$0xff]
    %v260 = vld [vmem:[#allocation5 + $0x350] sm:$0xff]
    %v261 = vld [vmem:[#allocation5 + $0x358] sm:$0xff]
    %v262 = vld [vmem:[#allocation5 + $0x360] sm:$0xff]
    %v263 = vld [vmem:[#allocation5 + $0x368] sm:$0xff]
    %v264 = vld [vmem:[#allocation5 + $0x370] sm:$0xff]
    %v265 = vld [vmem:[#allocation5 + $0x378] sm:$0xff]
    %v266 = vld [vmem:[#allocation5 + $0x380] sm:$0xff]
    %v267 = vld [vmem:[#allocation5 + $0x388] sm:$0xff]
    %v268 = vld [vmem:[#allocation5 + $0x390] sm:$0xff]
    %v269 = vld [vmem:[#allocation5 + $0x398] sm:$0xff]
    %v270 = vld [vmem:[#allocation5 + $0x3a0] sm:$0xff]
    %v271 = vld [vmem:[#allocation5 + $0x3a8] sm:$0xff]
    %v272 = vld [vmem:[#allocation5 + $0x3b0] sm:$0xff]
    %v273 = vld [vmem:[#allocation5 + $0x3b8] sm:$0xff]
    %v274 = vld [vmem:[#allocation5 + $0x3c0] sm:$0xff]
    %v275 = vld [vmem:[#allocation5 + $0x3c8] sm:$0xff]
    %v276 = vld [vmem:[#allocation5 + $0x3d0] sm:$0xff]
    %v277 = vld [vmem:[#allocation5 + $0x3d8] sm:$0xff]
    %v278 = vld [vmem:[#allocation5 + $0x3e0] sm:$0xff]
    %v279 = vld [vmem:[#allocation5 + $0x3e8] sm:$0xff]
    %v280 = vld [vmem:[#allocation5 + $0x3f0] sm:$0xff]
    %v281 = vld [vmem:[#allocation5 + $0x3f8] sm:$0xff]
    %v410 = vunpack.c.l.b16 %v154
    %v411 = vunpack.c.h.b16 %v154
    %v412 = vunpack.c.l.b16 %v155
    %v413 = vunpack.c.h.b16 %v155
    %v414 = vunpack.c.l.b16 %v156
    %v415 = vunpack.c.h.b16 %v156
    %v416 = vunpack.c.l.b16 %v157
    %v417 = vunpack.c.h.b16 %v157
    %v418 = vunpack.c.l.b16 %v158
    %v419 = vunpack.c.h.b16 %v158
    %v420 = vunpack.c.l.b16 %v159
    %v421 = vunpack.c.h.b16 %v159
    %v422 = vunpack.c.l.b16 %v160
    %v423 = vunpack.c.h.b16 %v160
    %v424 = vunpack.c.l.b16 %v161
    %v425 = vunpack.c.h.b16 %v161
    %v426 = vunpack.c.l.b16 %v162
    %v427 = vunpack.c.h.b16 %v162
    %v428 = vunpack.c.l.b16 %v163
    %v429 = vunpack.c.h.b16 %v163
    %v430 = vunpack.c.l.b16 %v164
    %v431 = vunpack.c.h.b16 %v164
    %v432 = vunpack.c.l.b16 %v165
    %v433 = vunpack.c.h.b16 %v165
    %v434 = vunpack.c.l.b16 %v166
    %v435 = vunpack.c.h.b16 %v166
    %v436 = vunpack.c.l.b16 %v167
    %v437 = vunpack.c.h.b16 %v167
    %v438 = vunpack.c.l.b16 %v168
    %v439 = vunpack.c.h.b16 %v168
    %v440 = vunpack.c.l.b16 %v169
    %v441 = vunpack.c.h.b16 %v169
    %v442 = vunpack.c.l.b16 %v170
    %v443 = vunpack.c.h.b16 %v170
    %v444 = vunpack.c.l.b16 %v171
    %v445 = vunpack.c.h.b16 %v171
    %v446 = vunpack.c.l.b16 %v172
    %v447 = vunpack.c.h.b16 %v172
    %v448 = vunpack.c.l.b16 %v173
    %v449 = vunpack.c.h.b16 %v173
    %v450 = vunpack.c.l.b16 %v174
    %v451 = vunpack.c.h.b16 %v174
    %v452 = vunpack.c.l.b16 %v175
    %v453 = vunpack.c.h.b16 %v175
    %v454 = vunpack.c.l.b16 %v176
    %v455 = vunpack.c.h.b16 %v176
    %v456 = vunpack.c.l.b16 %v177
    %v457 = vunpack.c.h.b16 %v177
    %v458 = vunpack.c.l.b16 %v178
    %v459 = vunpack.c.h.b16 %v178
    %v460 = vunpack.c.l.b16 %v179
    %v461 = vunpack.c.h.b16 %v179
    %v462 = vunpack.c.l.b16 %v180
    %v463 = vunpack.c.h.b16 %v180
    %v464 = vunpack.c.l.b16 %v181
    %v465 = vunpack.c.h.b16 %v181
    %v466 = vunpack.c.l.b16 %v182
    %v467 = vunpack.c.h.b16 %v182
    %v468 = vunpack.c.l.b16 %v183
    %v469 = vunpack.c.h.b16 %v183
    %v470 = vunpack.c.l.b16 %v184
    %v471 = vunpack.c.h.b16 %v184
    %v472 = vunpack.c.l.b16 %v185
    %v473 = vunpack.c.h.b16 %v185
    %v474 = vunpack.c.l.b16 %v186
    %v475 = vunpack.c.h.b16 %v186
    %v476 = vunpack.c.l.b16 %v187
    %v477 = vunpack.c.h.b16 %v187
    %v478 = vunpack.c.l.b16 %v188
    %v479 = vunpack.c.h.b16 %v188
    %v480 = vunpack.c.l.b16 %v189
    %v481 = vunpack.c.h.b16 %v189
    %v482 = vunpack.c.l.b16 %v190
    %v483 = vunpack.c.h.b16 %v190
    %v484 = vunpack.c.l.b16 %v191
    %v485 = vunpack.c.h.b16 %v191
    %v486 = vunpack.c.l.b16 %v192
    %v487 = vunpack.c.h.b16 %v192
    %v488 = vunpack.c.l.b16 %v193
    %v489 = vunpack.c.h.b16 %v193
    %v490 = vunpack.c.l.b16 %v194
    %v491 = vunpack.c.h.b16 %v194
    %v492 = vunpack.c.l.b16 %v195
    %v493 = vunpack.c.h.b16 %v195
    %v494 = vunpack.c.l.b16 %v196
    %v495 = vunpack.c.h.b16 %v196
    %v496 = vunpack.c.l.b16 %v197
    %v497 = vunpack.c.h.b16 %v197
    %v498 = vunpack.c.l.b16 %v198
    %v499 = vunpack.c.h.b16 %v198
    %v500 = vunpack.c.l.b16 %v199
    %v501 = vunpack.c.h.b16 %v199
    %v502 = vunpack.c.l.b16 %v200
    %v503 = vunpack.c.h.b16 %v200
    %v504 = vunpack.c.l.b16 %v201
    %v505 = vunpack.c.h.b16 %v201
    %v506 = vunpack.c.l.b16 %v202
    %v507 = vunpack.c.h.b16 %v202
    %v508 = vunpack.c.l.b16 %v203
    %v509 = vunpack.c.h.b16 %v203
    %v510 = vunpack.c.l.b16 %v204
    %v511 = vunpack.c.h.b16 %v204
    %v512 = vunpack.c.l.b16 %v205
    %v513 = vunpack.c.h.b16 %v205
    %v514 = vunpack.c.l.b16 %v206
    %v515 = vunpack.c.h.b16 %v206
    %v516 = vunpack.c.l.b16 %v207
    %v517 = vunpack.c.h.b16 %v207
    %v518 = vunpack.c.l.b16 %v208
    %v519 = vunpack.c.h.b16 %v208
    %v520 = vunpack.c.l.b16 %v209
    %v521 = vunpack.c.h.b16 %v209
    %v522 = vunpack.c.l.b16 %v210
    %v523 = vunpack.c.h.b16 %v210
    %v524 = vunpack.c.l.b16 %v211
    %v525 = vunpack.c.h.b16 %v211
    %v526 = vunpack.c.l.b16 %v212
    %v527 = vunpack.c.h.b16 %v212
    %v528 = vunpack.c.l.b16 %v213
    %v529 = vunpack.c.h.b16 %v213
    %v530 = vunpack.c.l.b16 %v214
    %v531 = vunpack.c.h.b16 %v214
    %v532 = vunpack.c.l.b16 %v215
    %v533 = vunpack.c.h.b16 %v215
    %v534 = vunpack.c.l.b16 %v216
    %v535 = vunpack.c.h.b16 %v216
    %v536 = vunpack.c.l.b16 %v217
    %v537 = vunpack.c.h.b16 %v217
    %v538 = vunpack.c.l.b16 %v218
    %v539 = vunpack.c.h.b16 %v218
    %v540 = vunpack.c.l.b16 %v219
    %v541 = vunpack.c.h.b16 %v219
    %v542 = vunpack.c.l.b16 %v220
    %v543 = vunpack.c.h.b16 %v220
    %v544 = vunpack.c.l.b16 %v221
    %v545 = vunpack.c.h.b16 %v221
    %v546 = vunpack.c.l.b16 %v222
    %v547 = vunpack.c.h.b16 %v222
    %v548 = vunpack.c.l.b16 %v223
    %v549 = vunpack.c.h.b16 %v223
    %v550 = vunpack.c.l.b16 %v224
    %v551 = vunpack.c.h.b16 %v224
    %v552 = vunpack.c.l.b16 %v225
    %v553 = vunpack.c.h.b16 %v225
    %v554 = vunpack.c.l.b16 %v226
    %v555 = vunpack.c.h.b16 %v226
    %v556 = vunpack.c.l.b16 %v227
    %v557 = vunpack.c.h.b16 %v227
    %v558 = vunpack.c.l.b16 %v228
    %v559 = vunpack.c.h.b16 %v228
    %v560 = vunpack.c.l.b16 %v229
    %v561 = vunpack.c.h.b16 %v229
    %v562 = vunpack.c.l.b16 %v230
    %v563 = vunpack.c.h.b16 %v230
    %v564 = vunpack.c.l.b16 %v231
    %v565 = vunpack.c.h.b16 %v231
    %v566 = vunpack.c.l.b16 %v232
    %v567 = vunpack.c.h.b16 %v232
    %v568 = vunpack.c.l.b16 %v233
    %v569 = vunpack.c.h.b16 %v233
    %v570 = vunpack.c.l.b16 %v234
    %v571 = vunpack.c.h.b16 %v234
    %v572 = vunpack.c.l.b16 %v235
    %v573 = vunpack.c.h.b16 %v235
    %v574 = vunpack.c.l.b16 %v236
    %v575 = vunpack.c.h.b16 %v236
    %v576 = vunpack.c.l.b16 %v237
    %v577 = vunpack.c.h.b16 %v237
    %v578 = vunpack.c.l.b16 %v238
    %v579 = vunpack.c.h.b16 %v238
    %v580 = vunpack.c.l.b16 %v239
    %v581 = vunpack.c.h.b16 %v239
    %v582 = vunpack.c.l.b16 %v240
    %v583 = vunpack.c.h.b16 %v240
    %v584 = vunpack.c.l.b16 %v241
    %v585 = vunpack.c.h.b16 %v241
    %v586 = vunpack.c.l.b16 %v242
    %v587 = vunpack.c.h.b16 %v242
    %v588 = vunpack.c.l.b16 %v243
    %v589 = vunpack.c.h.b16 %v243
    %v590 = vunpack.c.l.b16 %v244
    %v591 = vunpack.c.h.b16 %v244
    %v592 = vunpack.c.l.b16 %v245
    %v593 = vunpack.c.h.b16 %v245
    %v594 = vunpack.c.l.b16 %v246
    %v595 = vunpack.c.h.b16 %v246
    %v596 = vunpack.c.l.b16 %v247
    %v597 = vunpack.c.h.b16 %v247
    %v598 = vunpack.c.l.b16 %v248
    %v599 = vunpack.c.h.b16 %v248
    %v600 = vunpack.c.l.b16 %v249
    %v601 = vunpack.c.h.b16 %v249
    %v602 = vunpack.c.l.b16 %v250
    %v603 = vunpack.c.h.b16 %v250
    %v604 = vunpack.c.l.b16 %v251
    %v605 = vunpack.c.h.b16 %v251
    %v606 = vunpack.c.l.b16 %v252
    %v607 = vunpack.c.h.b16 %v252
    %v608 = vunpack.c.l.b16 %v253
    %v609 = vunpack.c.h.b16 %v253
    %v610 = vunpack.c.l.b16 %v254
    %v611 = vunpack.c.h.b16 %v254
    %v612 = vunpack.c.l.b16 %v255
    %v613 = vunpack.c.h.b16 %v255
    %v614 = vunpack.c.l.b16 %v256
    %v615 = vunpack.c.h.b16 %v256
    %v616 = vunpack.c.l.b16 %v257
    %v617 = vunpack.c.h.b16 %v257
    %v618 = vunpack.c.l.b16 %v258
    %v619 = vunpack.c.h.b16 %v258
    %v620 = vunpack.c.l.b16 %v259
    %v621 = vunpack.c.h.b16 %v259
    %v622 = vunpack.c.l.b16 %v260
    %v623 = vunpack.c.h.b16 %v260
    %v624 = vunpack.c.l.b16 %v261
    %v625 = vunpack.c.h.b16 %v261
    %v626 = vunpack.c.l.b16 %v262
    %v627 = vunpack.c.h.b16 %v262
    %v628 = vunpack.c.l.b16 %v263
    %v629 = vunpack.c.h.b16 %v263
    %v630 = vunpack.c.l.b16 %v264
    %v631 = vunpack.c.h.b16 %v264
    %v632 = vunpack.c.l.b16 %v265
    %v633 = vunpack.c.h.b16 %v265
    %v634 = vunpack.c.l.b16 %v266
    %v635 = vunpack.c.h.b16 %v266
    %v636 = vunpack.c.l.b16 %v267
    %v637 = vunpack.c.h.b16 %v267
    %v638 = vunpack.c.l.b16 %v268
    %v639 = vunpack.c.h.b16 %v268
    %v640 = vunpack.c.l.b16 %v269
    %v641 = vunpack.c.h.b16 %v269
    %v642 = vunpack.c.l.b16 %v270
    %v643 = vunpack.c.h.b16 %v270
    %v644 = vunpack.c.l.b16 %v271
    %v645 = vunpack.c.h.b16 %v271
    %v646 = vunpack.c.l.b16 %v272
    %v647 = vunpack.c.h.b16 %v272
    %v648 = vunpack.c.l.b16 %v273
    %v649 = vunpack.c.h.b16 %v273
    %v650 = vunpack.c.l.b16 %v274
    %v651 = vunpack.c.h.b16 %v274
    %v652 = vunpack.c.l.b16 %v275
    %v653 = vunpack.c.h.b16 %v275
    %v654 = vunpack.c.l.b16 %v276
    %v655 = vunpack.c.h.b16 %v276
    %v656 = vunpack.c.l.b16 %v277
    %v657 = vunpack.c.h.b16 %v277
    %v658 = vunpack.c.l.b16 %v278
    %v659 = vunpack.c.h.b16 %v278
    %v660 = vunpack.c.l.b16 %v279
    %v661 = vunpack.c.h.b16 %v279
    %v662 = vunpack.c.l.b16 %v280
    %v663 = vunpack.c.h.b16 %v280
    %v664 = vunpack.c.l.b16 %v281
    %v665 = vunpack.c.h.b16 %v281
    %v666 = vpack.c.b16 %v412, %v410
    %v667 = vpack.c.b16 %v413, %v411
    %v668 = vpack.c.b16 %v416, %v414
    %v669 = vpack.c.b16 %v417, %v415
    %v670 = vpack.c.b16 %v420, %v418
    %v671 = vpack.c.b16 %v421, %v419
    %v672 = vpack.c.b16 %v424, %v422
    %v673 = vpack.c.b16 %v425, %v423
    %v674 = vpack.c.b16 %v428, %v426
    %v675 = vpack.c.b16 %v429, %v427
    %v676 = vpack.c.b16 %v432, %v430
    %v677 = vpack.c.b16 %v433, %v431
    %v678 = vpack.c.b16 %v436, %v434
    %v679 = vpack.c.b16 %v437, %v435
    %v680 = vpack.c.b16 %v440, %v438
    %v681 = vpack.c.b16 %v441, %v439
    %v682 = vpack.c.b16 %v444, %v442
    %v683 = vpack.c.b16 %v445, %v443
    %v684 = vpack.c.b16 %v448, %v446
    %v685 = vpack.c.b16 %v449, %v447
    %v686 = vpack.c.b16 %v452, %v450
    %v687 = vpack.c.b16 %v453, %v451
    %v688 = vpack.c.b16 %v456, %v454
    %v689 = vpack.c.b16 %v457, %v455
    %v690 = vpack.c.b16 %v460, %v458
    %v691 = vpack.c.b16 %v461, %v459
    %v692 = vpack.c.b16 %v464, %v462
    %v693 = vpack.c.b16 %v465, %v463
    %v694 = vpack.c.b16 %v468, %v466
    %v695 = vpack.c.b16 %v469, %v467
    %v696 = vpack.c.b16 %v472, %v470
    %v697 = vpack.c.b16 %v473, %v471
    %v698 = vpack.c.b16 %v476, %v474
    %v699 = vpack.c.b16 %v477, %v475
    %v700 = vpack.c.b16 %v480, %v478
    %v701 = vpack.c.b16 %v481, %v479
    %v702 = vpack.c.b16 %v484, %v482
    %v703 = vpack.c.b16 %v485, %v483
    %v704 = vpack.c.b16 %v488, %v486
    %v705 = vpack.c.b16 %v489, %v487
    %v706 = vpack.c.b16 %v492, %v490
    %v707 = vpack.c.b16 %v493, %v491
    %v708 = vpack.c.b16 %v496, %v494
    %v709 = vpack.c.b16 %v497, %v495
    %v710 = vpack.c.b16 %v500, %v498
    %v711 = vpack.c.b16 %v501, %v499
    %v712 = vpack.c.b16 %v504, %v502
    %v713 = vpack.c.b16 %v505, %v503
    %v714 = vpack.c.b16 %v508, %v506
    %v715 = vpack.c.b16 %v509, %v507
    %v716 = vpack.c.b16 %v512, %v510
    %v717 = vpack.c.b16 %v513, %v511
    %v718 = vpack.c.b16 %v516, %v514
    %v719 = vpack.c.b16 %v517, %v515
    %v720 = vpack.c.b16 %v520, %v518
    %v721 = vpack.c.b16 %v521, %v519
    %v722 = vpack.c.b16 %v524, %v522
    %v723 = vpack.c.b16 %v525, %v523
    %v724 = vpack.c.b16 %v528, %v526
    %v725 = vpack.c.b16 %v529, %v527
    %v726 = vpack.c.b16 %v532, %v530
    %v727 = vpack.c.b16 %v533, %v531
    %v728 = vpack.c.b16 %v536, %v534
    %v729 = vpack.c.b16 %v537, %v535
    %v730 = vpack.c.b16 %v540, %v538
    %v731 = vpack.c.b16 %v541, %v539
    %v732 = vpack.c.b16 %v544, %v542
    %v733 = vpack.c.b16 %v545, %v543
    %v734 = vpack.c.b16 %v548, %v546
    %v735 = vpack.c.b16 %v549, %v547
    %v736 = vpack.c.b16 %v552, %v550
    %v737 = vpack.c.b16 %v553, %v551
    %v738 = vpack.c.b16 %v556, %v554
    %v739 = vpack.c.b16 %v557, %v555
    %v740 = vpack.c.b16 %v560, %v558
    %v741 = vpack.c.b16 %v561, %v559
    %v742 = vpack.c.b16 %v564, %v562
    %v743 = vpack.c.b16 %v565, %v563
    %v744 = vpack.c.b16 %v568, %v566
    %v745 = vpack.c.b16 %v569, %v567
    %v746 = vpack.c.b16 %v572, %v570
    %v747 = vpack.c.b16 %v573, %v571
    %v748 = vpack.c.b16 %v576, %v574
    %v749 = vpack.c.b16 %v577, %v575
    %v750 = vpack.c.b16 %v580, %v578
    %v751 = vpack.c.b16 %v581, %v579
    %v752 = vpack.c.b16 %v584, %v582
    %v753 = vpack.c.b16 %v585, %v583
    %v754 = vpack.c.b16 %v588, %v586
    %v755 = vpack.c.b16 %v589, %v587
    %v756 = vpack.c.b16 %v592, %v590
    %v757 = vpack.c.b16 %v593, %v591
    %v758 = vpack.c.b16 %v596, %v594
    %v759 = vpack.c.b16 %v597, %v595
    %v760 = vpack.c.b16 %v600, %v598
    %v761 = vpack.c.b16 %v601, %v599
    %v762 = vpack.c.b16 %v604, %v602
    %v763 = vpack.c.b16 %v605, %v603
    %v764 = vpack.c.b16 %v608, %v606
    %v765 = vpack.c.b16 %v609, %v607
    %v766 = vpack.c.b16 %v612, %v610
    %v767 = vpack.c.b16 %v613, %v611
    %v768 = vpack.c.b16 %v616, %v614
    %v769 = vpack.c.b16 %v617, %v615
    %v770 = vpack.c.b16 %v620, %v618
    %v771 = vpack.c.b16 %v621, %v619
    %v772 = vpack.c.b16 %v624, %v622
    %v773 = vpack.c.b16 %v625, %v623
    %v774 = vpack.c.b16 %v628, %v626
    %v775 = vpack.c.b16 %v629, %v627
    %v776 = vpack.c.b16 %v632, %v630
    %v777 = vpack.c.b16 %v633, %v631
    %v778 = vpack.c.b16 %v636, %v634
    %v779 = vpack.c.b16 %v637, %v635
    %v780 = vpack.c.b16 %v640, %v638
    %v781 = vpack.c.b16 %v641, %v639
    %v782 = vpack.c.b16 %v644, %v642
    %v783 = vpack.c.b16 %v645, %v643
    %v784 = vpack.c.b16 %v648, %v646
    %v785 = vpack.c.b16 %v649, %v647
    %v786 = vpack.c.b16 %v652, %v650
    %v787 = vpack.c.b16 %v653, %v651
    %v788 = vpack.c.b16 %v656, %v654
    %v789 = vpack.c.b16 %v657, %v655
    %v790 = vpack.c.b16 %v660, %v658
    %v791 = vpack.c.b16 %v661, %v659
    %v792 = vpack.c.b16 %v664, %v662
    %v793 = vpack.c.b16 %v665, %v663
    %922 = vmatpush.bf16.msra.mxu0 %v680
    %923 = vmatpush.bf16.msra.mxu0 %v678
    %924 = vmatpush.bf16.msra.mxu0 %v676
    %925 = vmatpush.bf16.msra.mxu0 %v674
    %926 = vmatpush.bf16.msra.mxu0 %v672
    %927 = vmatpush.bf16.msra.mxu0 %v670
    %928 = vmatpush.bf16.msra.mxu0 %v668
    %929 = vmatpush.bf16.msra.mxu0 %v666
    %930 = vmatmul.bf16.gmra.mxu0 %v146
    %v931 = vpop.f32.mrf.mxu0
    %v932 = vadd.f32 0.0, %v931
    %v933 = vpop.f32.mrf.mxu0
    %934 = vdwg.mxu0
    %935 = vmatpush.bf16.msra.mxu0 %v696
    %936 = vmatpush.bf16.msra.mxu0 %v694
    %937 = vmatpush.bf16.msra.mxu0 %v692
    %938 = vmatpush.bf16.msra.mxu0 %v690
    %939 = vmatpush.bf16.msra.mxu0 %v688
    %940 = vmatpush.bf16.msra.mxu0 %v686
    %941 = vmatpush.bf16.msra.mxu0 %v684
    %942 = vmatpush.bf16.msra.mxu0 %v682
    %943 = vmatmul.bf16.gmra.mxu0 %v147
    %v944 = vpop.f32.mrf.mxu0
    %v945 = vadd.f32 %v932, %v944
    %v946 = vpop.f32.mrf.mxu0
    %947 = vdwg.mxu0
    %948 = vmatpush.bf16.msra.mxu0 %v712
    %949 = vmatpush.bf16.msra.mxu0 %v710
    %950 = vmatpush.bf16.msra.mxu0 %v708
    %951 = vmatpush.bf16.msra.mxu0 %v706
    %952 = vmatpush.bf16.msra.mxu0 %v704
    %953 = vmatpush.bf16.msra.mxu0 %v702
    %954 = vmatpush.bf16.msra.mxu0 %v700
    %955 = vmatpush.bf16.msra.mxu0 %v698
    %956 = vmatmul.bf16.gmra.mxu0 %v148
    %v957 = vpop.f32.mrf.mxu0
    %v958 = vadd.f32 %v945, %v957
    %v959 = vpop.f32.mrf.mxu0
    %960 = vdwg.mxu0
    %961 = vmatpush.bf16.msra.mxu0 %v728
    %962 = vmatpush.bf16.msra.mxu0 %v726
    %963 = vmatpush.bf16.msra.mxu0 %v724
    %964 = vmatpush.bf16.msra.mxu0 %v722
    %965 = vmatpush.bf16.msra.mxu0 %v720
    %966 = vmatpush.bf16.msra.mxu0 %v718
    %967 = vmatpush.bf16.msra.mxu0 %v716
    %968 = vmatpush.bf16.msra.mxu0 %v714
    %969 = vmatmul.bf16.gmra.mxu0 %v149
    %v970 = vpop.f32.mrf.mxu0
    %v971 = vadd.f32 %v958, %v970
    %v972 = vpop.f32.mrf.mxu0
    %973 = vdwg.mxu0
    %974 = vmatpush.bf16.msra.mxu0 %v744
    %975 = vmatpush.bf16.msra.mxu0 %v742
    %976 = vmatpush.bf16.msra.mxu0 %v740
    %977 = vmatpush.bf16.msra.mxu0 %v738
    %978 = vmatpush.bf16.msra.mxu0 %v736
    %979 = vmatpush.bf16.msra.mxu0 %v734
    %980 = vmatpush.bf16.msra.mxu0 %v732
    %981 = vmatpush.bf16.msra.mxu0 %v730
    %982 = vmatmul.bf16.gmra.mxu0 %v150
    %v983 = vpop.f32.mrf.mxu0
    %v984 = vadd.f32 %v971, %v983
    %v985 = vpop.f32.mrf.mxu0
    %986 = vdwg.mxu0
    %987 = vmatpush.bf16.msra.mxu0 %v760
    %988 = vmatpush.bf16.msra.mxu0 %v758
    %989 = vmatpush.bf16.msra.mxu0 %v756
    %990 = vmatpush.bf16.msra.mxu0 %v754
    %991 = vmatpush.bf16.msra.mxu0 %v752
    %992 = vmatpush.bf16.msra.mxu0 %v750
    %993 = vmatpush.bf16.msra.mxu0 %v748
    %994 = vmatpush.bf16.msra.mxu0 %v746
    %995 = vmatmul.bf16.gmra.mxu0 %v151
    %v996 = vpop.f32.mrf.mxu0
    %v997 = vadd.f32 %v984, %v996
    %v998 = vpop.f32.mrf.mxu0
    %999 = vdwg.mxu0
    %1000 = vmatpush.bf16.msra.mxu0 %v776
    %1001 = vmatpush.bf16.msra.mxu0 %v774
    %1002 = vmatpush.bf16.msra.mxu0 %v772
    %1003 = vmatpush.bf16.msra.mxu0 %v770
    %1004 = vmatpush.bf16.msra.mxu0 %v768
    %1005 = vmatpush.bf16.msra.mxu0 %v766
    %1006 = vmatpush.bf16.msra.mxu0 %v764
    %1007 = vmatpush.bf16.msra.mxu0 %v762
    %1008 = vmatmul.bf16.gmra.mxu0 %v152
    %v1009 = vpop.f32.mrf.mxu0
    %v1010 = vadd.f32 %v997, %v1009
    %v1011 = vpop.f32.mrf.mxu0
    %1012 = vdwg.mxu0
    %1013 = vmatpush.bf16.msra.mxu0 %v792
    %1014 = vmatpush.bf16.msra.mxu0 %v790
    %1015 = vmatpush.bf16.msra.mxu0 %v788
    %1016 = vmatpush.bf16.msra.mxu0 %v786
    %1017 = vmatpush.bf16.msra.mxu0 %v784
    %1018 = vmatpush.bf16.msra.mxu0 %v782
    %1019 = vmatpush.bf16.msra.mxu0 %v780
    %1020 = vmatpush.bf16.msra.mxu0 %v778
    %1021 = vmatmul.bf16.gmra.mxu0 %v153
    %v1022 = vpop.f32.mrf.mxu0
    %v1023 = vadd.f32 %v1010, %v1022
    %v1024 = vpop.f32.mrf.mxu0
    %1025 = vdwg.mxu0
    %1026 = vmatpush.bf16.msra.mxu0 %v681
    %1027 = vmatpush.bf16.msra.mxu0 %v679
    %1028 = vmatpush.bf16.msra.mxu0 %v677
    %1029 = vmatpush.bf16.msra.mxu0 %v675
    %1030 = vmatpush.bf16.msra.mxu0 %v673
    %1031 = vmatpush.bf16.msra.mxu0 %v671
    %1032 = vmatpush.bf16.msra.mxu0 %v669
    %1033 = vmatpush.bf16.msra.mxu0 %v667
    %1034 = vmatmul.bf16.gmra.mxu0 %v146
    %v1035 = vpop.f32.mrf.mxu0
    %v1036 = vadd.f32 0.0, %v1035
    %v1037 = vpop.f32.mrf.mxu0
    %1038 = vdwg.mxu0
    %1039 = vmatpush.bf16.msra.mxu0 %v697
    %1040 = vmatpush.bf16.msra.mxu0 %v695
    %1041 = vmatpush.bf16.msra.mxu0 %v693
    %1042 = vmatpush.bf16.msra.mxu0 %v691
    %1043 = vmatpush.bf16.msra.mxu0 %v689
    %1044 = vmatpush.bf16.msra.mxu0 %v687
    %1045 = vmatpush.bf16.msra.mxu0 %v685
    %1046 = vmatpush.bf16.msra.mxu0 %v683
    %1047 = vmatmul.bf16.gmra.mxu0 %v147
    %v1048 = vpop.f32.mrf.mxu0
    %v1049 = vadd.f32 %v1036, %v1048
    %v1050 = vpop.f32.mrf.mxu0
    %1051 = vdwg.mxu0
    %1052 = vmatpush.bf16.msra.mxu0 %v713
    %1053 = vmatpush.bf16.msra.mxu0 %v711
    %1054 = vmatpush.bf16.msra.mxu0 %v709
    %1055 = vmatpush.bf16.msra.mxu0 %v707
    %1056 = vmatpush.bf16.msra.mxu0 %v705
    %1057 = vmatpush.bf16.msra.mxu0 %v703
    %1058 = vmatpush.bf16.msra.mxu0 %v701
    %1059 = vmatpush.bf16.msra.mxu0 %v699
    %1060 = vmatmul.bf16.gmra.mxu0 %v148
    %v1061 = vpop.f32.mrf.mxu0
    %v1062 = vadd.f32 %v1049, %v1061
    %v1063 = vpop.f32.mrf.mxu0
    %1064 = vdwg.mxu0
    %1065 = vmatpush.bf16.msra.mxu0 %v729
    %1066 = vmatpush.bf16.msra.mxu0 %v727
    %1067 = vmatpush.bf16.msra.mxu0 %v725
    %1068 = vmatpush.bf16.msra.mxu0 %v723
    %1069 = vmatpush.bf16.msra.mxu0 %v721
    %1070 = vmatpush.bf16.msra.mxu0 %v719
    %1071 = vmatpush.bf16.msra.mxu0 %v717
    %1072 = vmatpush.bf16.msra.mxu0 %v715
    %1073 = vmatmul.bf16.gmra.mxu0 %v149
    %v1074 = vpop.f32.mrf.mxu0
    %v1075 = vadd.f32 %v1062, %v1074
    %v1076 = vpop.f32.mrf.mxu0
    %1077 = vdwg.mxu0
    %1078 = vmatpush.bf16.msra.mxu0 %v745
    %1079 = vmatpush.bf16.msra.mxu0 %v743
    %1080 = vmatpush.bf16.msra.mxu0 %v741
    %1081 = vmatpush.bf16.msra.mxu0 %v739
    %1082 = vmatpush.bf16.msra.mxu0 %v737
    %1083 = vmatpush.bf16.msra.mxu0 %v735
    %1084 = vmatpush.bf16.msra.mxu0 %v733
    %1085 = vmatpush.bf16.msra.mxu0 %v731
    %1086 = vmatmul.bf16.gmra.mxu0 %v150
    %v1087 = vpop.f32.mrf.mxu0
    %v1088 = vadd.f32 %v1075, %v1087
    %v1089 = vpop.f32.mrf.mxu0
    %1090 = vdwg.mxu0
    %1091 = vmatpush.bf16.msra.mxu0 %v761
    %1092 = vmatpush.bf16.msra.mxu0 %v759
    %1093 = vmatpush.bf16.msra.mxu0 %v757
    %1094 = vmatpush.bf16.msra.mxu0 %v755
    %1095 = vmatpush.bf16.msra.mxu0 %v753
    %1096 = vmatpush.bf16.msra.mxu0 %v751
    %1097 = vmatpush.bf16.msra.mxu0 %v749
    %1098 = vmatpush.bf16.msra.mxu0 %v747
    %1099 = vmatmul.bf16.gmra.mxu0 %v151
    %v1100 = vpop.f32.mrf.mxu0
    %v1101 = vadd.f32 %v1088, %v1100
    %v1102 = vpop.f32.mrf.mxu0
    %1103 = vdwg.mxu0
    %1104 = vmatpush.bf16.msra.mxu0 %v777
    %1105 = vmatpush.bf16.msra.mxu0 %v775
    %1106 = vmatpush.bf16.msra.mxu0 %v773
    %1107 = vmatpush.bf16.msra.mxu0 %v771
    %1108 = vmatpush.bf16.msra.mxu0 %v769
    %1109 = vmatpush.bf16.msra.mxu0 %v767
    %1110 = vmatpush.bf16.msra.mxu0 %v765
    %1111 = vmatpush.bf16.msra.mxu0 %v763
    %1112 = vmatmul.bf16.gmra.mxu0 %v152
    %v1113 = vpop.f32.mrf.mxu0
    %v1114 = vadd.f32 %v1101, %v1113
    %v1115 = vpop.f32.mrf.mxu0
    %1116 = vdwg.mxu0
    %1117 = vmatpush.bf16.msra.mxu0 %v793
    %1118 = vmatpush.bf16.msra.mxu0 %v791
    %1119 = vmatpush.bf16.msra.mxu0 %v789
    %1120 = vmatpush.bf16.msra.mxu0 %v787
    %1121 = vmatpush.bf16.msra.mxu0 %v785
    %1122 = vmatpush.bf16.msra.mxu0 %v783
    %1123 = vmatpush.bf16.msra.mxu0 %v781
    %1124 = vmatpush.bf16.msra.mxu0 %v779
    %1125 = vmatmul.bf16.gmra.mxu0 %v153
    %v1126 = vpop.f32.mrf.mxu0
    %v1127 = vadd.f32 %v1114, %v1126
    %v1128 = vpop.f32.mrf.mxu0
    %1129 = vdwg.mxu0
    %v1130 = vrot.slane %v1023, 4
    %v1131 = vadd.f32 %v1023, %v1130
    %v1132 = vrot.slane %v1131, 2
    %v1133 = vadd.f32 %v1131, %v1132
    %v1134 = vrot.slane %v1133, 1
    %v1135 = vadd.f32 %v1133, %v1134
    %v1136 = vrot.slane %v1127, 4
    %v1137 = vadd.f32 %v1127, %v1136
    %v1138 = vrot.slane %v1137, 2
    %v1139 = vadd.f32 %v1137, %v1138
    %v1140 = vrot.slane %v1139, 1
    %v1141 = vadd.f32 %v1139, %v1140
    %v1142 = vrcp.pop 8.0
    %v1143 = vmul.f32 8.0, %v1142
    %v1144 = vsub.f32 1.0, %v1143
    %v1145 = vmul.f32 %v1142, %v1144
    %v1146 = vadd.f32 %v1142, %v1145
    %vm1147 = vweird.f32 %v1142
    %v1148 = vsel %vm1147, %v1142, %v1146
    %v1149 = vmul.f32 %v1135, %v1148
    %v1150 = vmul.f32 %v1141, %v1148
    %v1151 = vsub.f32 %v1023, %v1149
    %v1152 = vsub.f32 %v1127, %v1150
    %v1153 = vmul.f32 %v1151, %v1151
    %v1154 = vmul.f32 %v1152, %v1152
    %v1155 = vrot.slane %v1153, 4
    %v1156 = vadd.f32 %v1153, %v1155
    %v1157 = vrot.slane %v1156, 2
    %v1158 = vadd.f32 %v1156, %v1157
    %v1159 = vrot.slane %v1158, 1
    %v1160 = vadd.f32 %v1158, %v1159
    %v1161 = vrot.slane %v1154, 4
    %v1162 = vadd.f32 %v1154, %v1161
    %v1163 = vrot.slane %v1162, 2
    %v1164 = vadd.f32 %v1162, %v1163
    %v1165 = vrot.slane %v1164, 1
    %v1166 = vadd.f32 %v1164, %v1165
    %v1167 = vmul.f32 %v1160, %v1148
    %v1168 = vmul.f32 %v1166, %v1148
    %v1169 = vadd.f32 %v1167, 1e-05
    %v1170 = vadd.f32 %v1168, 1e-05
    %v1171 = vrsqrt.pop %v1169
    %v1172 = vmul.f32 %v1171, %v1169
    %v1173 = vmul.f32 %v1172, %v1171
    %v1174 = vmul.f32 0.5, %v1173
    %v1175 = vsub.f32 1.5, %v1174
    %v1176 = vmul.f32 %v1171, %v1175
    %vm1177 = vweird.f32 %v1169
    %vm1178 = vweird.f32 %v1171
    %vm1179 = vmor %vm1177, %vm1178
    %v1180 = vsel %vm1179, %v1171, %v1176
    %v1181 = vrsqrt.pop %v1170
    %v1182 = vmul.f32 %v1181, %v1170
    %v1183 = vmul.f32 %v1182, %v1181
    %v1184 = vmul.f32 0.5, %v1183
    %v1185 = vsub.f32 1.5, %v1184
    %v1186 = vmul.f32 %v1181, %v1185
    %vm1187 = vweird.f32 %v1170
    %vm1188 = vweird.f32 %v1181
    %vm1189 = vmor %vm1187, %vm1188
    %v1190 = vsel %vm1189, %v1181, %v1186
    %v1192 = vperm.slane %v114, 0
    %v1193 = vperm.slane %v114, 1
    %v1196 = vmul.f32 %v1180, %v1192
    %v1197 = vmul.f32 %v1190, %v1193
    %v1198 = vmul.f32 %v1149, %v1196
    %v1199 = vmul.f32 %v1150, %v1197
    %v1202 = vrot.slane %v1199, 7
    %vm1203 = vcmask 1040384
    %v1204 = vsel %vm1203, %v1198, %v1202
    %v1206 = vsub.f32 %v116, %v1204
    %v1207 = vperm.slane %v1196, 0
    %v1208 = vperm.slane %v1197, 0
    %v1209 = vmul.f32 %v1023, %v1207
    %v1210 = vmul.f32 %v1127, %v1208
    %v1212 = vperm.slane %v1206, 0
    %v1213 = vperm.slane %v1206, 1
    %v1216 = vadd.f32 %v1209, %v1212
    %v1217 = vadd.f32 %v1210, %v1213
    %v1218 = vmax.f32 %v1216, 0.0
    %v1219 = vmax.f32 %v1217, 0.0
    %vm1220 = vcmp.ge.f32.partialorder %v1218, 0.0
    %vm1221 = vcmp.ge.f32.partialorder %v1219, 0.0
    %v1222 = vsel %vm1220, 1.0, -1.0
    %v1223 = vsel %vm1221, 1.0, -1.0
    %v1224 = vpack.c.bf16 %v1222, %v1222
    %v1225 = vpack.c.bf16 %v1223, %v1223
    %v1226 = vld [vmem:[#allocation7] sm:$0xf]
    %v1227 = vld [vmem:[#allocation7 + $0x4] sm:$0xf]
    %v1228 = vld [vmem:[#allocation7 + $0x8] sm:$0xf]
    %v1229 = vld [vmem:[#allocation7 + $0xc] sm:$0xf]
    %v1230 = vld [vmem:[#allocation7 + $0x10] sm:$0xf]
    %v1231 = vld [vmem:[#allocation7 + $0x14] sm:$0xf]
    %v1232 = vld [vmem:[#allocation7 + $0x18] sm:$0xf]
    %v1233 = vld [vmem:[#allocation7 + $0x1c] sm:$0xf]
    %v1234 = vld [vmem:[#allocation7 + $0x20] sm:$0xf]
    %v1235 = vld [vmem:[#allocation7 + $0x24] sm:$0xf]
    %v1236 = vld [vmem:[#allocation7 + $0x28] sm:$0xf]
    %v1237 = vld [vmem:[#allocation7 + $0x2c] sm:$0xf]
    %v1238 = vld [vmem:[#allocation7 + $0x30] sm:$0xf]
    %v1239 = vld [vmem:[#allocation7 + $0x34] sm:$0xf]
    %v1240 = vld [vmem:[#allocation7 + $0x38] sm:$0xf]
    %v1241 = vld [vmem:[#allocation7 + $0x3c] sm:$0xf]
    %v1242 = vld [vmem:[#allocation7 + $0x40] sm:$0xf]
    %v1243 = vld [vmem:[#allocation7 + $0x44] sm:$0xf]
    %v1244 = vld [vmem:[#allocation7 + $0x48] sm:$0xf]
    %v1245 = vld [vmem:[#allocation7 + $0x4c] sm:$0xf]
    %v1246 = vld [vmem:[#allocation7 + $0x50] sm:$0xf]
    %v1247 = vld [vmem:[#allocation7 + $0x54] sm:$0xf]
    %v1248 = vld [vmem:[#allocation7 + $0x58] sm:$0xf]
    %v1249 = vld [vmem:[#allocation7 + $0x5c] sm:$0xf]
    %v1250 = vld [vmem:[#allocation7 + $0x60] sm:$0xf]
    %v1251 = vld [vmem:[#allocation7 + $0x64] sm:$0xf]
    %v1252 = vld [vmem:[#allocation7 + $0x68] sm:$0xf]
    %v1253 = vld [vmem:[#allocation7 + $0x6c] sm:$0xf]
    %v1254 = vld [vmem:[#allocation7 + $0x70] sm:$0xf]
    %v1255 = vld [vmem:[#allocation7 + $0x74] sm:$0xf]
    %v1256 = vld [vmem:[#allocation7 + $0x78] sm:$0xf]
    %v1257 = vld [vmem:[#allocation7 + $0x7c] sm:$0xf]
    %v1290 = vunpack.c.l.b16 %v1226
    %v1291 = vunpack.c.l.b16 %v1227
    %v1292 = vunpack.c.l.b16 %v1228
    %v1293 = vunpack.c.l.b16 %v1229
    %v1294 = vunpack.c.l.b16 %v1230
    %v1295 = vunpack.c.l.b16 %v1231
    %v1296 = vunpack.c.l.b16 %v1232
    %v1297 = vunpack.c.l.b16 %v1233
    %v1298 = vunpack.c.l.b16 %v1234
    %v1299 = vunpack.c.l.b16 %v1235
    %v1300 = vunpack.c.l.b16 %v1236
    %v1301 = vunpack.c.l.b16 %v1237
    %v1302 = vunpack.c.l.b16 %v1238
    %v1303 = vunpack.c.l.b16 %v1239
    %v1304 = vunpack.c.l.b16 %v1240
    %v1305 = vunpack.c.l.b16 %v1241
    %v1306 = vunpack.c.l.b16 %v1242
    %v1307 = vunpack.c.l.b16 %v1243
    %v1308 = vunpack.c.l.b16 %v1244
    %v1309 = vunpack.c.l.b16 %v1245
    %v1310 = vunpack.c.l.b16 %v1246
    %v1311 = vunpack.c.l.b16 %v1247
    %v1312 = vunpack.c.l.b16 %v1248
    %v1313 = vunpack.c.l.b16 %v1249
    %v1314 = vunpack.c.l.b16 %v1250
    %v1315 = vunpack.c.l.b16 %v1251
    %v1316 = vunpack.c.l.b16 %v1252
    %v1317 = vunpack.c.l.b16 %v1253
    %v1318 = vunpack.c.l.b16 %v1254
    %v1319 = vunpack.c.l.b16 %v1255
    %v1320 = vunpack.c.l.b16 %v1256
    %v1321 = vunpack.c.l.b16 %v1257
    %v1322 = vpack.c.b16 %v1291, %v1290
    %v1323 = vpack.c.b16 %v1293, %v1292
    %v1324 = vpack.c.b16 %v1295, %v1294
    %v1325 = vpack.c.b16 %v1297, %v1296
    %v1326 = vpack.c.b16 %v1299, %v1298
    %v1327 = vpack.c.b16 %v1301, %v1300
    %v1328 = vpack.c.b16 %v1303, %v1302
    %v1329 = vpack.c.b16 %v1305, %v1304
    %v1330 = vpack.c.b16 %v1307, %v1306
    %v1331 = vpack.c.b16 %v1309, %v1308
    %v1332 = vpack.c.b16 %v1311, %v1310
    %v1333 = vpack.c.b16 %v1313, %v1312
    %v1334 = vpack.c.b16 %v1315, %v1314
    %v1335 = vpack.c.b16 %v1317, %v1316
    %v1336 = vpack.c.b16 %v1319, %v1318
    %v1337 = vpack.c.b16 %v1321, %v1320
    %1354 = vmatpush.bf16.msra.mxu0 %v1329
    %1355 = vmatpush.bf16.msra.mxu0 %v1328
    %1356 = vmatpush.bf16.msra.mxu0 %v1327
    %1357 = vmatpush.bf16.msra.mxu0 %v1326
    %1358 = vmatpush.bf16.msra.mxu0 %v1325
    %1359 = vmatpush.bf16.msra.mxu0 %v1324
    %1360 = vmatpush.bf16.msra.mxu0 %v1323
    %1361 = vmatpush.bf16.msra.mxu0 %v1322
    %1362 = vmatmul.bf16.gmra.mxu0 %v1224
    %v1363 = vpop.f32.mrf.mxu0
    %v1364 = vadd.f32 0.0, %v1363
    %v1365 = vpop.f32.mrf.mxu0
    %1366 = vdwg.mxu0
    %1367 = vmatpush.bf16.msra.mxu0 %v1337
    %1368 = vmatpush.bf16.msra.mxu0 %v1336
    %1369 = vmatpush.bf16.msra.mxu0 %v1335
    %1370 = vmatpush.bf16.msra.mxu0 %v1334
    %1371 = vmatpush.bf16.msra.mxu0 %v1333
    %1372 = vmatpush.bf16.msra.mxu0 %v1332
    %1373 = vmatpush.bf16.msra.mxu0 %v1331
    %1374 = vmatpush.bf16.msra.mxu0 %v1330
    %1375 = vmatmul.bf16.gmra.mxu0 %v1225
    %v1376 = vpop.f32.mrf.mxu0
    %v1377 = vadd.f32 %v1364, %v1376
    %v1378 = vpop.f32.mrf.mxu0
    %1379 = vdwg.mxu0
    %v1380 = vrot.slane %v1377, 4
    %v1381 = vadd.f32 %v1377, %v1380
    %v1382 = vrot.slane %v1381, 2
    %v1383 = vadd.f32 %v1381, %v1382
    %v1384 = vrot.slane %v1383, 1
    %v1385 = vadd.f32 %v1383, %v1384
    %v1386 = vmul.f32 %v1385, %v1148
    %v1387 = vsub.f32 %v1377, %v1386
    %v1388 = vmul.f32 %v1387, %v1387
    %v1389 = vrot.slane %v1388, 4
    %v1390 = vadd.f32 %v1388, %v1389
    %v1391 = vrot.slane %v1390, 2
    %v1392 = vadd.f32 %v1390, %v1391
    %v1393 = vrot.slane %v1392, 1
    %v1394 = vadd.f32 %v1392, %v1393
    %v1395 = vmul.f32 %v1394, %v1148
    %v1396 = vadd.f32 %v1395, 1e-05
    %v1397 = vrsqrt.pop %v1396
    %v1398 = vmul.f32 %v1397, %v1396
    %v1399 = vmul.f32 %v1398, %v1397
    %v1400 = vmul.f32 0.5, %v1399
    %v1401 = vsub.f32 1.5, %v1400
    %v1402 = vmul.f32 %v1397, %v1401
    %vm1403 = vweird.f32 %v1396
    %vm1404 = vweird.f32 %v1397
    %vm1405 = vmor %vm1403, %vm1404
    %v1406 = vsel %vm1405, %v1397, %v1402
    %v1407 = vmul.f32 %v1406, %v117
    %v1408 = vmul.f32 %v1386, %v1407
    %v1409 = vsub.f32 %v119, %v1408
    %v1410 = vmul.f32 %v1377, %v1407
    %v1411 = vadd.f32 %v1410, %v1409
    %v1412 = vmax.f32 %v1411, 0.0
    %vm1413 = vcmp.ge.f32.partialorder %v1412, 0.0
    %v1414 = vsel %vm1413, 1.0, -1.0
    %v1415 = vpack.c.bf16 %v1414, %v1414
    %v1416 = vld [vmem:[#allocation8] sm:$0xf]
    %v1417 = vld [vmem:[#allocation8 + $0x4] sm:$0xf]
    %v1418 = vld [vmem:[#allocation8 + $0x8] sm:$0xf]
    %v1419 = vld [vmem:[#allocation8 + $0xc] sm:$0xf]
    %v1420 = vld [vmem:[#allocation8 + $0x10] sm:$0xf]
    %v1421 = vld [vmem:[#allocation8 + $0x14] sm:$0xf]
    %v1422 = vld [vmem:[#allocation8 + $0x18] sm:$0xf]
    %v1423 = vld [vmem:[#allocation8 + $0x1c] sm:$0xf]
    %v1424 = vld [vmem:[#allocation8 + $0x20] sm:$0xf]
    %v1425 = vld [vmem:[#allocation8 + $0x24] sm:$0xf]
    %v1426 = vld [vmem:[#allocation8 + $0x28] sm:$0xf]
    %v1427 = vld [vmem:[#allocation8 + $0x2c] sm:$0xf]
    %v1428 = vld [vmem:[#allocation8 + $0x30] sm:$0xf]
    %v1429 = vld [vmem:[#allocation8 + $0x34] sm:$0xf]
    %v1430 = vld [vmem:[#allocation8 + $0x38] sm:$0xf]
    %v1431 = vld [vmem:[#allocation8 + $0x3c] sm:$0xf]
    %v1448 = vunpack.c.l.b16 %v1416
    %v1449 = vunpack.c.l.b16 %v1417
    %v1450 = vunpack.c.l.b16 %v1418
    %v1451 = vunpack.c.l.b16 %v1419
    %v1452 = vunpack.c.l.b16 %v1420
    %v1453 = vunpack.c.l.b16 %v1421
    %v1454 = vunpack.c.l.b16 %v1422
    %v1455 = vunpack.c.l.b16 %v1423
    %v1456 = vunpack.c.l.b16 %v1424
    %v1457 = vunpack.c.l.b16 %v1425
    %v1458 = vunpack.c.l.b16 %v1426
    %v1459 = vunpack.c.l.b16 %v1427
    %v1460 = vunpack.c.l.b16 %v1428
    %v1461 = vunpack.c.l.b16 %v1429
    %v1462 = vunpack.c.l.b16 %v1430
    %v1463 = vunpack.c.l.b16 %v1431
    %v1464 = vpack.c.b16 %v1449, %v1448
    %v1465 = vpack.c.b16 %v1451, %v1450
    %v1466 = vpack.c.b16 %v1453, %v1452
    %v1467 = vpack.c.b16 %v1455, %v1454
    %v1468 = vpack.c.b16 %v1457, %v1456
    %v1469 = vpack.c.b16 %v1459, %v1458
    %v1470 = vpack.c.b16 %v1461, %v1460
    %v1471 = vpack.c.b16 %v1463, %v1462
    %1480 = vmatpush.bf16.msra.mxu0 %v1471
    %1481 = vmatpush.bf16.msra.mxu0 %v1470
    %1482 = vmatpush.bf16.msra.mxu0 %v1469
    %1483 = vmatpush.bf16.msra.mxu0 %v1468
    %1484 = vmatpush.bf16.msra.mxu0 %v1467
    %1485 = vmatpush.bf16.msra.mxu0 %v1466
    %1486 = vmatpush.bf16.msra.mxu0 %v1465
    %1487 = vmatpush.bf16.msra.mxu0 %v1464
    %1488 = vmatmul.bf16.gmra.mxu0 %v1415
    %v1489 = vpop.f32.mrf.mxu0
    %v1490 = vadd.f32 0.0, %v1489
    %v1491 = vpop.f32.mrf.mxu0
    %1492 = vdwg.mxu0
    %v1493 = vrot.slane %v1490, 4
    %v1494 = vadd.f32 %v1490, %v1493
    %v1495 = vrot.slane %v1494, 2
    %v1496 = vadd.f32 %v1494, %v1495
    %v1497 = vrot.slane %v1496, 1
    %v1498 = vadd.f32 %v1496, %v1497
    %v1499 = vmul.f32 %v1498, %v1148
    %v1500 = vsub.f32 %v1490, %v1499
    %v1501 = vmul.f32 %v1500, %v1500
    %v1502 = vrot.slane %v1501, 4
    %v1503 = vadd.f32 %v1501, %v1502
    %v1504 = vrot.slane %v1503, 2
    %v1505 = vadd.f32 %v1503, %v1504
    %v1506 = vrot.slane %v1505, 1
    %v1507 = vadd.f32 %v1505, %v1506
    %v1508 = vmul.f32 %v1507, %v1148
    %v1509 = vadd.f32 %v1508, 1e-05
    %v1510 = vrsqrt.pop %v1509
    %v1511 = vmul.f32 %v1510, %v1509
    %v1512 = vmul.f32 %v1511, %v1510
    %v1513 = vmul.f32 0.5, %v1512
    %v1514 = vsub.f32 1.5, %v1513
    %v1515 = vmul.f32 %v1510, %v1514
    %vm1516 = vweird.f32 %v1509
    %vm1517 = vweird.f32 %v1510
    %vm1518 = vmor %vm1516, %vm1517
    %v1519 = vsel %vm1518, %v1510, %v1515
    %v1520 = vmul.f32 %v1519, %v118
    %v1521 = vmul.f32 %v1499, %v1520
    %v1522 = vsub.f32 %v120, %v1521
    %v1523 = vmul.f32 %v1490, %v1520
    %v1524 = vadd.f32 %v1523, %v1522
    %v1525 = vmax.f32 %v1524, 0.0
    %vm1526 = vcmp.ge.f32.partialorder %v1525, 0.0
    %v1527 = vsel %vm1526, 1.0, -1.0
    %v1528 = vpack.c.bf16 %v1527, %v1527
    %v1529 = vld [vmem:[#allocation10] sm:$0xf]
    %v1530 = vld [vmem:[#allocation10 + $0x4] sm:$0xf]
    %v1531 = vld [vmem:[#allocation10 + $0x8] sm:$0xf]
    %v1532 = vld [vmem:[#allocation10 + $0xc] sm:$0xf]
    %v1533 = vld [vmem:[#allocation10 + $0x10] sm:$0xf]
    %v1534 = vld [vmem:[#allocation10 + $0x14] sm:$0xf]
    %v1535 = vld [vmem:[#allocation10 + $0x18] sm:$0xf]
    %v1536 = vld [vmem:[#allocation10 + $0x1c] sm:$0xf]
    %v1537 = vld [vmem:[#allocation10 + $0x20] sm:$0xf]
    %v1538 = vld [vmem:[#allocation10 + $0x24] sm:$0xf]
    %v1539 = vld [vmem:[#allocation10 + $0x28] sm:$0xf]
    %v1540 = vld [vmem:[#allocation10 + $0x2c] sm:$0xf]
    %v1541 = vld [vmem:[#allocation10 + $0x30] sm:$0xf]
    %v1542 = vld [vmem:[#allocation10 + $0x34] sm:$0xf]
    %v1543 = vld [vmem:[#allocation10 + $0x38] sm:$0xf]
    %v1544 = vld [vmem:[#allocation10 + $0x3c] sm:$0xf]
    %v1561 = vunpack.c.l.b16 %v1529
    %v1562 = vunpack.c.l.b16 %v1530
    %v1563 = vunpack.c.l.b16 %v1531
    %v1564 = vunpack.c.l.b16 %v1532
    %v1565 = vunpack.c.l.b16 %v1533
    %v1566 = vunpack.c.l.b16 %v1534
    %v1567 = vunpack.c.l.b16 %v1535
    %v1568 = vunpack.c.l.b16 %v1536
    %v1569 = vunpack.c.l.b16 %v1537
    %v1570 = vunpack.c.l.b16 %v1538
    %v1571 = vunpack.c.l.b16 %v1539
    %v1572 = vunpack.c.l.b16 %v1540
    %v1573 = vunpack.c.l.b16 %v1541
    %v1574 = vunpack.c.l.b16 %v1542
    %v1575 = vunpack.c.l.b16 %v1543
    %v1576 = vunpack.c.l.b16 %v1544
    %v1577 = vpack.c.b16 %v1562, %v1561
    %v1578 = vpack.c.b16 %v1564, %v1563
    %v1579 = vpack.c.b16 %v1566, %v1565
    %v1580 = vpack.c.b16 %v1568, %v1567
    %v1581 = vpack.c.b16 %v1570, %v1569
    %v1582 = vpack.c.b16 %v1572, %v1571
    %v1583 = vpack.c.b16 %v1574, %v1573
    %v1584 = vpack.c.b16 %v1576, %v1575
    %1593 = vmatpush.bf16.msra.mxu0 %v1584
    %1594 = vmatpush.bf16.msra.mxu0 %v1583
    %1595 = vmatpush.bf16.msra.mxu0 %v1582
    %1596 = vmatpush.bf16.msra.mxu0 %v1581
    %1597 = vmatpush.bf16.msra.mxu0 %v1580
    %1598 = vmatpush.bf16.msra.mxu0 %v1579
    %1599 = vmatpush.bf16.msra.mxu0 %v1578
    %1600 = vmatpush.bf16.msra.mxu0 %v1577
    %1601 = vmatmul.bf16.gmra.mxu0 %v1528
    %v1602 = vpop.f32.mrf.mxu0
    %v1603 = vadd.f32 %v121, %v1602
    %v1604 = vpop.f32.mrf.mxu0
    %1605 = vdwg.mxu0
    %1606 = vst [vmem:[#allocation13] sm:$0xff] %v1603
    // Predicated region
    $region50: #{tpu_custom_call.1} parent=1 // pred_check
      _
    $region51: #{tpu_custom_call.1} parent=1 // pred_check_branch
      %1608 = sbr.rel (0) target = $region53
    $region52: #{tpu_custom_call.1} parent=1 // pred_region
      %1610 = vsyncadd [#allocation4], 0
      %s1612 = sshll.u32 [#allocation13], 4
      %s1613 = int_to_ptr.vmem [resolvable:$true] %s1612
      %s1614 = sshll.u32 %s6, 4
      %s1615 = int_to_ptr.hbm [resolvable:$true] %s1614
      %1617 = dma.vmem_to_hbm [thread:$0]  %s1613, 128, %s1615, [#allocation4]
    $region53: #{tpu_custom_call.1} parent=1 // pred_fallthru
      _
    // Predicated region
    $region54: #{tpu_custom_call.1} parent=1 // pred_check
      _
    $region55: #{tpu_custom_call.1} parent=1 // pred_check_branch
      %1619 = sbr.rel (0) target = $region57
    $region56: #{tpu_custom_call.1} parent=1 // pred_region
      %1621 = dma.done [#allocation4], 128
    $region57: #{tpu_custom_call.1} parent=1 // pred_fallthru
      _
    %1622 = vsyncpa [#allocation3], 1
    %1623 = vsyncpa [#allocation6], 1
    %1624 = vsyncpa [#allocation9], 1
    %1625 = vsyncpa [#allocation12], 1
    %1626 = vsyncpa [#allocation4], 1

// kernel: tpu_custom_call.1
$region0: #{tpu_custom_call.1}
  #allocation0 [shape = 'u32[]', space=smem, size = 0x4, offset = 0x4, fixed_abs, tag = 'smem constant byte address 0x4 - core index']
  #allocation1 [shape = 'u32[72,128]{1,0:T(1,128)}', space=vmem, size = 0x9000, scoped, tag = 'internal scratch']
  %s0 = inlined_call_operand.hbm [shape: f32[8,1024], index: 0, kind: input, shape index: {}]
  %s1 = inlined_call_operand.hbm [shape: bf16[1024,256], index: 1, kind: input, shape index: {}]
  %s2 = inlined_call_operand.hbm [shape: bf16[256,128], index: 2, kind: input, shape index: {}]
  %s3 = inlined_call_operand.hbm [shape: bf16[128,128], index: 3, kind: input, shape index: {}]
  %s4 = inlined_call_operand.hbm [shape: bf16[128,128], index: 4, kind: input, shape index: {}]
  %s5 = inlined_call_operand.hbm [shape: f32[5,256], index: 5, kind: input, shape index: {}]
  %s6 = inlined_call_operand.hbm [shape: f32[8,128], index: 6, kind: output, shape index: {}]
  %s7 = sld [smem:[#allocation0]]
  $region58: #{tpu_custom_call.1} parent=0
    _
  %s9 = ssub.s32 1, %s7
  %s10 = scalar_select 0, %s9, %s7
  $region1: #{tpu_custom_call.1} parent=0
    #allocation2 [shape = 'u8[32768]{0}', space=vmem, size = 0x8000, scoped, tag = 'input window, operand 0, single buffered']
    #allocation3 [shape = 's32[1]{0}', space=sflag, size = 0x4, scoped, tag = 'scoped memory for tpu_custom_call.1']
    #allocation4 [shape = 's32[1]{0}', space=sflag, size = 0x4, scoped, tag = 'scoped memory for tpu_custom_call.1']
    #allocation5 [shape = 'u8[524288]{0}', space=vmem, size = 0x80000, scoped, tag = 'input window, operand 1, single buffered']
    #allocation6 [shape = 's32[1]{0}', space=sflag, size = 0x4, scoped, tag = 'scoped memory for tpu_custom_call.1']
    #allocation7 [shape = 'u8[65536]{0}', space=vmem, size = 0x10000, scoped, tag = 'input window, operand 2, single buffered']
    #allocation8 [shape = 'u8[32768]{0}', space=vmem, size = 0x8000, scoped, tag = 'input window, operand 3, single buffered']
    #allocation9 [shape = 's32[1]{0}', space=sflag, size = 0x4, scoped, tag = 'scoped memory for tpu_custom_call.1']
    #allocation10 [shape = 'u8[32768]{0}', space=vmem, size = 0x8000, scoped, tag = 'input window, operand 4, single buffered']
    #allocation11 [shape = 'u8[8192]{0}', space=vmem, size = 0x2000, scoped, tag = 'input window, operand 5, single buffered']
    #allocation12 [shape = 's32[1]{0}', space=sflag, size = 0x4, scoped, tag = 'scoped memory for tpu_custom_call.1']
    #allocation13 [shape = 'u8[4096]{0}', space=vmem, size = 0x1000, scoped, tag = 'output window, operand 0, single buffered']
    %11 = vsyncpa [#allocation3], 0
    %12 = vsyncpa [#allocation6], 0
    %13 = vsyncpa [#allocation9], 0
    %14 = vsyncpa [#allocation12], 0
    %15 = vsyncpa [#allocation4], 0
    // Predicated region
    $region2: #{tpu_custom_call.1} parent=1 // pred_check
      _
    $region3: #{tpu_custom_call.1} parent=1 // pred_check_branch
      %17 = sbr.rel (0) target = $region5
    $region4: #{tpu_custom_call.1} parent=1 // pred_region
      %19 = vsyncadd [#allocation3], 0
      %s21 = sshll.u32 %s0, 4
      %s22 = int_to_ptr.hbm [resolvable:$true] %s21
      %s23 = sshll.u32 [#allocation2], 4
      %s24 = int_to_ptr.vmem [resolvable:$true] %s23
      %26 = dma.hbm_to_vmem [thread:$0]  %s22, 1024, %s24, [#allocation3]
    $region5: #{tpu_custom_call.1} parent=1 // pred_fallthru
      _
    // Predicated region
    $region6: #{tpu_custom_call.1} parent=1 // pred_check
      _
    $region7: #{tpu_custom_call.1} parent=1 // pred_check_branch
      %28 = sbr.rel (0) target = $region9
    $region8: #{tpu_custom_call.1} parent=1 // pred_region
      %30 = vsyncadd [#allocation6], 0
      %s31 = sshll.u32 %s1, 4
      %s32 = int_to_ptr.hbm [resolvable:$true] %s31
      %s33 = sshll.u32 [#allocation5], 4
      %s34 = int_to_ptr.vmem [resolvable:$true] %s33
      %39 = dma.hbm_to_vmem [thread:$0]  %s32, 16384, %s34, [#allocation6], 128, 128, 8
    $region9: #{tpu_custom_call.1} parent=1 // pred_fallthru
      _
    // Predicated region
    $region10: #{tpu_custom_call.1} parent=1 // pred_check
      _
    $region11: #{tpu_custom_call.1} parent=1 // pred_check_branch
      %41 = sbr.rel (0) target = $region13
    $region12: #{tpu_custom_call.1} parent=1 // pred_region
      %43 = vsyncadd [#allocation6], 0
      %s44 = sshll.u32 %s2, 4
      %s45 = int_to_ptr.hbm [resolvable:$true] %s44
      %s46 = sshll.u32 [#allocation7], 4
      %s47 = int_to_ptr.vmem [resolvable:$true] %s46
      %52 = dma.hbm_to_vmem [thread:$0]  %s45, 2048, %s47, [#allocation6], 64, 64, 4
    $region13: #{tpu_custom_call.1} parent=1 // pred_fallthru
      _
    // Predicated region
    $region14: #{tpu_custom_call.1} parent=1 // pred_check
      _
    $region15: #{tpu_custom_call.1} parent=1 // pred_check_branch
      %54 = sbr.rel (0) target = $region17
    $region16: #{tpu_custom_call.1} parent=1 // pred_region
      %56 = vsyncadd [#allocation9], 0
      %s57 = sshll.u32 %s3, 4
      %s58 = int_to_ptr.hbm [resolvable:$true] %s57
      %s59 = sshll.u32 [#allocation8], 4
      %s60 = int_to_ptr.vmem [resolvable:$true] %s59
      %65 = dma.hbm_to_vmem [thread:$0]  %s58, 1024, %s60, [#allocation9], 64, 64, 4
    $region17: #{tpu_custom_call.1} parent=1 // pred_fallthru
      _
    // Predicated region
    $region18: #{tpu_custom_call.1} parent=1 // pred_check
      _
    $region19: #{tpu_custom_call.1} parent=1 // pred_check_branch
      %67 = sbr.rel (0) target = $region21
    $region20: #{tpu_custom_call.1} parent=1 // pred_region
      %69 = vsyncadd [#allocation9], 0
      %s70 = sshll.u32 %s4, 4
      %s71 = int_to_ptr.hbm [resolvable:$true] %s70
      %s72 = sshll.u32 [#allocation10], 4
      %s73 = int_to_ptr.vmem [resolvable:$true] %s72
      %78 = dma.hbm_to_vmem [thread:$0]  %s71, 1024, %s73, [#allocation9], 64, 64, 4
    $region21: #{tpu_custom_call.1} parent=1 // pred_fallthru
      _
    // Predicated region
    $region22: #{tpu_custom_call.1} parent=1 // pred_check
      _
    $region23: #{tpu_custom_call.1} parent=1 // pred_check_branch
      %80 = sbr.rel (0) target = $region25
    $region24: #{tpu_custom_call.1} parent=1 // pred_region
      %82 = vsyncadd [#allocation12], 0
      %s84 = sshll.u32 %s5, 4
      %s85 = int_to_ptr.hbm [resolvable:$true] %s84
      %s86 = sshll.u32 [#allocation11], 4
      %s87 = int_to_ptr.vmem [resolvable:$true] %s86
      %89 = dma.hbm_to_vmem [thread:$0]  %s85, 256, %s87, [#allocation12]
    $region25: #{tpu_custom_call.1} parent=1 // pred_fallthru
      _
    // Predicated region
    $region26: #{tpu_custom_call.1} parent=1 // pred_check
      _
    $region27: #{tpu_custom_call.1} parent=1 // pred_check_branch
      %91 = sbr.rel (0) target = $region29
    $region28: #{tpu_custom_call.1} parent=1 // pred_region
      %93 = dma.done [#allocation3], 1024
    $region29: #{tpu_custom_call.1} parent=1 // pred_fallthru
      _
    // Predicated region
    $region30: #{tpu_custom_call.1} parent=1 // pred_check
      _
    $region31: #{tpu_custom_call.1} parent=1 // pred_check_branch
      %95 = sbr.rel (0) target = $region33
    $region32: #{tpu_custom_call.1} parent=1 // pred_region
      %97 = dma.done [#allocation6], 16384
    $region33: #{tpu_custom_call.1} parent=1 // pred_fallthru
      _
    // Predicated region
    $region34: #{tpu_custom_call.1} parent=1 // pred_check
      _
    $region35: #{tpu_custom_call.1} parent=1 // pred_check_branch
      %99 = sbr.rel (0) target = $region37
    $region36: #{tpu_custom_call.1} parent=1 // pred_region
      %101 = dma.done [#allocation6], 2048
    $region37: #{tpu_custom_call.1} parent=1 // pred_fallthru
      _
    // Predicated region
    $region38: #{tpu_custom_call.1} parent=1 // pred_check
      _
    $region39: #{tpu_custom_call.1} parent=1 // pred_check_branch
      %103 = sbr.rel (0) target = $region41
    $region40: #{tpu_custom_call.1} parent=1 // pred_region
      %105 = dma.done [#allocation9], 1024
    $region41: #{tpu_custom_call.1} parent=1 // pred_fallthru
      _
    // Predicated region
    $region42: #{tpu_custom_call.1} parent=1 // pred_check
      _
    $region43: #{tpu_custom_call.1} parent=1 // pred_check_branch
      %107 = sbr.rel (0) target = $region45
    $region44: #{tpu_custom_call.1} parent=1 // pred_region
      %109 = dma.done [#allocation9], 1024
    $region45: #{tpu_custom_call.1} parent=1 // pred_fallthru
      _
    // Predicated region
    $region46: #{tpu_custom_call.1} parent=1 // pred_check
      _
    $region47: #{tpu_custom_call.1} parent=1 // pred_check_branch
      %111 = sbr.rel (0) target = $region49
    $region48: #{tpu_custom_call.1} parent=1 // pred_region
      %113 = dma.done [#allocation12], 256
    $region49: #{tpu_custom_call.1} parent=1 // pred_fallthru
      _
    %v114 = vld [vmem:[#allocation11] ss:$8 sm:$0x3]
    %s115 = scalar_lea.vmem [#allocation11], 1
    %v116 = vld [vmem:[%s115] ss:$8 sm:$0x3]
    %v117 = vld [vmem:[#allocation11 + $0x2] ss:$0 sm:$0xff]
    %v118 = vld [vmem:[#allocation11 + $0xa] ss:$0 sm:$0xff]
    %v119 = vld [vmem:[#allocation11 + $0x3] ss:$0 sm:$0xff]
    %v120 = vld [vmem:[#allocation11 + $0xb] ss:$0 sm:$0xff]
    %v121 = vld [vmem:[#allocation11 + $0x4] ss:$0 sm:$0xff]
    %v122 = vld [vmem:[#allocation2] sm:$0xff]
    %v123 = vld [vmem:[#allocation2 + $0x8] sm:$0xff]
    %v124 = vld [vmem:[#allocation2 + $0x10] sm:$0xff]
    %v125 = vld [vmem:[#allocation2 + $0x18] sm:$0xff]
    %v126 = vld [vmem:[#allocation2 + $0x20] sm:$0xff]
    %v127 = vld [vmem:[#allocation2 + $0x28] sm:$0xff]
    %v128 = vld [vmem:[#allocation2 + $0x30] sm:$0xff]
    %v129 = vld [vmem:[#allocation2 + $0x38] sm:$0xff]
    %vm130 = vcmp.ge.f32.partialorder %v122, 0.0
    %vm131 = vcmp.ge.f32.partialorder %v123, 0.0
    %vm132 = vcmp.ge.f32.partialorder %v124, 0.0
    %vm133 = vcmp.ge.f32.partialorder %v125, 0.0
    %vm134 = vcmp.ge.f32.partialorder %v126, 0.0
    %vm135 = vcmp.ge.f32.partialorder %v127, 0.0
    %vm136 = vcmp.ge.f32.partialorder %v128, 0.0
    %vm137 = vcmp.ge.f32.partialorder %v129, 0.0
    %v138 = vsel %vm130, 1.0, -1.0
    %v139 = vsel %vm131, 1.0, -1.0
    %v140 = vsel %vm132, 1.0, -1.0
    %v141 = vsel %vm133, 1.0, -1.0
    %v142 = vsel %vm134, 1.0, -1.0
    %v143 = vsel %vm135, 1.0, -1.0
    %v144 = vsel %vm136, 1.0, -1.0
    %v145 = vsel %vm137, 1.0, -1.0
    %v146 = vpack.c.bf16 %v138, %v138
    %v147 = vpack.c.bf16 %v139, %v139
    %v148 = vpack.c.bf16 %v140, %v140
    %v149 = vpack.c.bf16 %v141, %v141
    %v150 = vpack.c.bf16 %v142, %v142
    %v151 = vpack.c.bf16 %v143, %v143
    %v152 = vpack.c.bf16 %v144, %v144
    %v153 = vpack.c.bf16 %v145, %v145
    %v154 = vld [vmem:[#allocation5] sm:$0xff]
    %v155 = vld [vmem:[#allocation5 + $0x8] sm:$0xff]
    %v156 = vld [vmem:[#allocation5 + $0x10] sm:$0xff]
    %v157 = vld [vmem:[#allocation5 + $0x18] sm:$0xff]
    %v158 = vld [vmem:[#allocation5 + $0x20] sm:$0xff]
    %v159 = vld [vmem:[#allocation5 + $0x28] sm:$0xff]
    %v160 = vld [vmem:[#allocation5 + $0x30] sm:$0xff]
    %v161 = vld [vmem:[#allocation5 + $0x38] sm:$0xff]
    %v162 = vld [vmem:[#allocation5 + $0x40] sm:$0xff]
    %v163 = vld [vmem:[#allocation5 + $0x48] sm:$0xff]
    %v164 = vld [vmem:[#allocation5 + $0x50] sm:$0xff]
    %v165 = vld [vmem:[#allocation5 + $0x58] sm:$0xff]
    %v166 = vld [vmem:[#allocation5 + $0x60] sm:$0xff]
    %v167 = vld [vmem:[#allocation5 + $0x68] sm:$0xff]
    %v168 = vld [vmem:[#allocation5 + $0x70] sm:$0xff]
    %v169 = vld [vmem:[#allocation5 + $0x78] sm:$0xff]
    %v170 = vld [vmem:[#allocation5 + $0x80] sm:$0xff]
    %v171 = vld [vmem:[#allocation5 + $0x88] sm:$0xff]
    %v172 = vld [vmem:[#allocation5 + $0x90] sm:$0xff]
    %v173 = vld [vmem:[#allocation5 + $0x98] sm:$0xff]
    %v174 = vld [vmem:[#allocation5 + $0xa0] sm:$0xff]
    %v175 = vld [vmem:[#allocation5 + $0xa8] sm:$0xff]
    %v176 = vld [vmem:[#allocation5 + $0xb0] sm:$0xff]
    %v177 = vld [vmem:[#allocation5 + $0xb8] sm:$0xff]
    %v178 = vld [vmem:[#allocation5 + $0xc0] sm:$0xff]
    %v179 = vld [vmem:[#allocation5 + $0xc8] sm:$0xff]
    %v180 = vld [vmem:[#allocation5 + $0xd0] sm:$0xff]
    %v181 = vld [vmem:[#allocation5 + $0xd8] sm:$0xff]
    %v182 = vld [vmem:[#allocation5 + $0xe0] sm:$0xff]
    %v183 = vld [vmem:[#allocation5 + $0xe8] sm:$0xff]
    %v184 = vld [vmem:[#allocation5 + $0xf0] sm:$0xff]
    %v185 = vld [vmem:[#allocation5 + $0xf8] sm:$0xff]
    %v186 = vld [vmem:[#allocation5 + $0x100] sm:$0xff]
    %v187 = vld [vmem:[#allocation5 + $0x108] sm:$0xff]
    %v188 = vld [vmem:[#allocation5 + $0x110] sm:$0xff]
    %v189 = vld [vmem:[#allocation5 + $0x118] sm:$0xff]
    %v190 = vld [vmem:[#allocation5 + $0x120] sm:$0xff]
    %v191 = vld [vmem:[#allocation5 + $0x128] sm:$0xff]
    %v192 = vld [vmem:[#allocation5 + $0x130] sm:$0xff]
    %v193 = vld [vmem:[#allocation5 + $0x138] sm:$0xff]
    %v194 = vld [vmem:[#allocation5 + $0x140] sm:$0xff]
    %v195 = vld [vmem:[#allocation5 + $0x148] sm:$0xff]
    %v196 = vld [vmem:[#allocation5 + $0x150] sm:$0xff]
    %v197 = vld [vmem:[#allocation5 + $0x158] sm:$0xff]
    %v198 = vld [vmem:[#allocation5 + $0x160] sm:$0xff]
    %v199 = vld [vmem:[#allocation5 + $0x168] sm:$0xff]
    %v200 = vld [vmem:[#allocation5 + $0x170] sm:$0xff]
    %v201 = vld [vmem:[#allocation5 + $0x178] sm:$0xff]
    %v202 = vld [vmem:[#allocation5 + $0x180] sm:$0xff]
    %v203 = vld [vmem:[#allocation5 + $0x188] sm:$0xff]
    %v204 = vld [vmem:[#allocation5 + $0x190] sm:$0xff]
    %v205 = vld [vmem:[#allocation5 + $0x198] sm:$0xff]
    %v206 = vld [vmem:[#allocation5 + $0x1a0] sm:$0xff]
    %v207 = vld [vmem:[#allocation5 + $0x1a8] sm:$0xff]
    %v208 = vld [vmem:[#allocation5 + $0x1b0] sm:$0xff]
    %v209 = vld [vmem:[#allocation5 + $0x1b8] sm:$0xff]
    %v210 = vld [vmem:[#allocation5 + $0x1c0] sm:$0xff]
    %v211 = vld [vmem:[#allocation5 + $0x1c8] sm:$0xff]
    %v212 = vld [vmem:[#allocation5 + $0x1d0] sm:$0xff]
    %v213 = vld [vmem:[#allocation5 + $0x1d8] sm:$0xff]
    %v214 = vld [vmem:[#allocation5 + $0x1e0] sm:$0xff]
    %v215 = vld [vmem:[#allocation5 + $0x1e8] sm:$0xff]
    %v216 = vld [vmem:[#allocation5 + $0x1f0] sm:$0xff]
    %v217 = vld [vmem:[#allocation5 + $0x1f8] sm:$0xff]
    %v218 = vld [vmem:[#allocation5 + $0x200] sm:$0xff]
    %v219 = vld [vmem:[#allocation5 + $0x208] sm:$0xff]
    %v220 = vld [vmem:[#allocation5 + $0x210] sm:$0xff]
    %v221 = vld [vmem:[#allocation5 + $0x218] sm:$0xff]
    %v222 = vld [vmem:[#allocation5 + $0x220] sm:$0xff]
    %v223 = vld [vmem:[#allocation5 + $0x228] sm:$0xff]
    %v224 = vld [vmem:[#allocation5 + $0x230] sm:$0xff]
    %v225 = vld [vmem:[#allocation5 + $0x238] sm:$0xff]
    %v226 = vld [vmem:[#allocation5 + $0x240] sm:$0xff]
    %v227 = vld [vmem:[#allocation5 + $0x248] sm:$0xff]
    %v228 = vld [vmem:[#allocation5 + $0x250] sm:$0xff]
    %v229 = vld [vmem:[#allocation5 + $0x258] sm:$0xff]
    %v230 = vld [vmem:[#allocation5 + $0x260] sm:$0xff]
    %v231 = vld [vmem:[#allocation5 + $0x268] sm:$0xff]
    %v232 = vld [vmem:[#allocation5 + $0x270] sm:$0xff]
    %v233 = vld [vmem:[#allocation5 + $0x278] sm:$0xff]
    %v234 = vld [vmem:[#allocation5 + $0x280] sm:$0xff]
    %v235 = vld [vmem:[#allocation5 + $0x288] sm:$0xff]
    %v236 = vld [vmem:[#allocation5 + $0x290] sm:$0xff]
    %v237 = vld [vmem:[#allocation5 + $0x298] sm:$0xff]
    %v238 = vld [vmem:[#allocation5 + $0x2a0] sm:$0xff]
    %v239 = vld [vmem:[#allocation5 + $0x2a8] sm:$0xff]
    %v240 = vld [vmem:[#allocation5 + $0x2b0] sm:$0xff]
    %v241 = vld [vmem:[#allocation5 + $0x2b8] sm:$0xff]
    %v242 = vld [vmem:[#allocation5 + $0x2c0] sm:$0xff]
    %v243 = vld [vmem:[#allocation5 + $0x2c8] sm:$0xff]
    %v244 = vld [vmem:[#allocation5 + $0x2d0] sm:$0xff]
    %v245 = vld [vmem:[#allocation5 + $0x2d8] sm:$0xff]
    %v246 = vld [vmem:[#allocation5 + $0x2e0] sm:$0xff]
    %v247 = vld [vmem:[#allocation5 + $0x2e8] sm:$0xff]
    %v248 = vld [vmem:[#allocation5 + $0x2f0] sm:$0xff]
    %v249 = vld [vmem:[#allocation5 + $0x2f8] sm:$0xff]
    %v250 = vld [vmem:[#allocation5 + $0x300] sm:$0xff]
    %v251 = vld [vmem:[#allocation5 + $0x308] sm:$0xff]
    %v252 = vld [vmem:[#allocation5 + $0x310] sm:$0xff]
    %v253 = vld [vmem:[#allocation5 + $0x318] sm:$0xff]
    %v254 = vld [vmem:[#allocation5 + $0x320] sm:$0xff]
    %v255 = vld [vmem:[#allocation5 + $0x328] sm:$0xff]
    %v256 = vld [vmem:[#allocation5 + $0x330] sm:$0xff]
    %v257 = vld [vmem:[#allocation5 + $0x338] sm:$0xff]
    %v258 = vld [vmem:[#allocation5 + $0x340] sm:$0xff]
    %v259 = vld [vmem:[#allocation5 + $0x348] sm:$0xff]
    %v260 = vld [vmem:[#allocation5 + $0x350] sm:$0xff]
    %v261 = vld [vmem:[#allocation5 + $0x358] sm:$0xff]
    %v262 = vld [vmem:[#allocation5 + $0x360] sm:$0xff]
    %v263 = vld [vmem:[#allocation5 + $0x368] sm:$0xff]
    %v264 = vld [vmem:[#allocation5 + $0x370] sm:$0xff]
    %v265 = vld [vmem:[#allocation5 + $0x378] sm:$0xff]
    %v266 = vld [vmem:[#allocation5 + $0x380] sm:$0xff]
    %v267 = vld [vmem:[#allocation5 + $0x388] sm:$0xff]
    %v268 = vld [vmem:[#allocation5 + $0x390] sm:$0xff]
    %v269 = vld [vmem:[#allocation5 + $0x398] sm:$0xff]
    %v270 = vld [vmem:[#allocation5 + $0x3a0] sm:$0xff]
    %v271 = vld [vmem:[#allocation5 + $0x3a8] sm:$0xff]
    %v272 = vld [vmem:[#allocation5 + $0x3b0] sm:$0xff]
    %v273 = vld [vmem:[#allocation5 + $0x3b8] sm:$0xff]
    %v274 = vld [vmem:[#allocation5 + $0x3c0] sm:$0xff]
    %v275 = vld [vmem:[#allocation5 + $0x3c8] sm:$0xff]
    %v276 = vld [vmem:[#allocation5 + $0x3d0] sm:$0xff]
    %v277 = vld [vmem:[#allocation5 + $0x3d8] sm:$0xff]
    %v278 = vld [vmem:[#allocation5 + $0x3e0] sm:$0xff]
    %v279 = vld [vmem:[#allocation5 + $0x3e8] sm:$0xff]
    %v280 = vld [vmem:[#allocation5 + $0x3f0] sm:$0xff]
    %v281 = vld [vmem:[#allocation5 + $0x3f8] sm:$0xff]
    %v410 = vunpack.c.l.b16 %v154
    %v411 = vunpack.c.h.b16 %v154
    %v412 = vunpack.c.l.b16 %v155
    %v413 = vunpack.c.h.b16 %v155
    %v414 = vunpack.c.l.b16 %v156
    %v415 = vunpack.c.h.b16 %v156
    %v416 = vunpack.c.l.b16 %v157
    %v417 = vunpack.c.h.b16 %v157
    %v418 = vunpack.c.l.b16 %v158
    %v419 = vunpack.c.h.b16 %v158
    %v420 = vunpack.c.l.b16 %v159
    %v421 = vunpack.c.h.b16 %v159
    %v422 = vunpack.c.l.b16 %v160
    %v423 = vunpack.c.h.b16 %v160
    %v424 = vunpack.c.l.b16 %v161
    %v425 = vunpack.c.h.b16 %v161
    %v426 = vunpack.c.l.b16 %v162
    %v427 = vunpack.c.h.b16 %v162
    %v428 = vunpack.c.l.b16 %v163
    %v429 = vunpack.c.h.b16 %v163
    %v430 = vunpack.c.l.b16 %v164
    %v431 = vunpack.c.h.b16 %v164
    %v432 = vunpack.c.l.b16 %v165
    %v433 = vunpack.c.h.b16 %v165
    %v434 = vunpack.c.l.b16 %v166
    %v435 = vunpack.c.h.b16 %v166
    %v436 = vunpack.c.l.b16 %v167
    %v437 = vunpack.c.h.b16 %v167
    %v438 = vunpack.c.l.b16 %v168
    %v439 = vunpack.c.h.b16 %v168
    %v440 = vunpack.c.l.b16 %v169
    %v441 = vunpack.c.h.b16 %v169
    %v442 = vunpack.c.l.b16 %v170
    %v443 = vunpack.c.h.b16 %v170
    %v444 = vunpack.c.l.b16 %v171
    %v445 = vunpack.c.h.b16 %v171
    %v446 = vunpack.c.l.b16 %v172
    %v447 = vunpack.c.h.b16 %v172
    %v448 = vunpack.c.l.b16 %v173
    %v449 = vunpack.c.h.b16 %v173
    %v450 = vunpack.c.l.b16 %v174
    %v451 = vunpack.c.h.b16 %v174
    %v452 = vunpack.c.l.b16 %v175
    %v453 = vunpack.c.h.b16 %v175
    %v454 = vunpack.c.l.b16 %v176
    %v455 = vunpack.c.h.b16 %v176
    %v456 = vunpack.c.l.b16 %v177
    %v457 = vunpack.c.h.b16 %v177
    %v458 = vunpack.c.l.b16 %v178
    %v459 = vunpack.c.h.b16 %v178
    %v460 = vunpack.c.l.b16 %v179
    %v461 = vunpack.c.h.b16 %v179
    %v462 = vunpack.c.l.b16 %v180
    %v463 = vunpack.c.h.b16 %v180
    %v464 = vunpack.c.l.b16 %v181
    %v465 = vunpack.c.h.b16 %v181
    %v466 = vunpack.c.l.b16 %v182
    %v467 = vunpack.c.h.b16 %v182
    %v468 = vunpack.c.l.b16 %v183
    %v469 = vunpack.c.h.b16 %v183
    %v470 = vunpack.c.l.b16 %v184
    %v471 = vunpack.c.h.b16 %v184
    %v472 = vunpack.c.l.b16 %v185
    %v473 = vunpack.c.h.b16 %v185
    %v474 = vunpack.c.l.b16 %v186
    %v475 = vunpack.c.h.b16 %v186
    %v476 = vunpack.c.l.b16 %v187
    %v477 = vunpack.c.h.b16 %v187
    %v478 = vunpack.c.l.b16 %v188
    %v479 = vunpack.c.h.b16 %v188
    %v480 = vunpack.c.l.b16 %v189
    %v481 = vunpack.c.h.b16 %v189
    %v482 = vunpack.c.l.b16 %v190
    %v483 = vunpack.c.h.b16 %v190
    %v484 = vunpack.c.l.b16 %v191
    %v485 = vunpack.c.h.b16 %v191
    %v486 = vunpack.c.l.b16 %v192
    %v487 = vunpack.c.h.b16 %v192
    %v488 = vunpack.c.l.b16 %v193
    %v489 = vunpack.c.h.b16 %v193
    %v490 = vunpack.c.l.b16 %v194
    %v491 = vunpack.c.h.b16 %v194
    %v492 = vunpack.c.l.b16 %v195
    %v493 = vunpack.c.h.b16 %v195
    %v494 = vunpack.c.l.b16 %v196
    %v495 = vunpack.c.h.b16 %v196
    %v496 = vunpack.c.l.b16 %v197
    %v497 = vunpack.c.h.b16 %v197
    %v498 = vunpack.c.l.b16 %v198
    %v499 = vunpack.c.h.b16 %v198
    %v500 = vunpack.c.l.b16 %v199
    %v501 = vunpack.c.h.b16 %v199
    %v502 = vunpack.c.l.b16 %v200
    %v503 = vunpack.c.h.b16 %v200
    %v504 = vunpack.c.l.b16 %v201
    %v505 = vunpack.c.h.b16 %v201
    %v506 = vunpack.c.l.b16 %v202
    %v507 = vunpack.c.h.b16 %v202
    %v508 = vunpack.c.l.b16 %v203
    %v509 = vunpack.c.h.b16 %v203
    %v510 = vunpack.c.l.b16 %v204
    %v511 = vunpack.c.h.b16 %v204
    %v512 = vunpack.c.l.b16 %v205
    %v513 = vunpack.c.h.b16 %v205
    %v514 = vunpack.c.l.b16 %v206
    %v515 = vunpack.c.h.b16 %v206
    %v516 = vunpack.c.l.b16 %v207
    %v517 = vunpack.c.h.b16 %v207
    %v518 = vunpack.c.l.b16 %v208
    %v519 = vunpack.c.h.b16 %v208
    %v520 = vunpack.c.l.b16 %v209
    %v521 = vunpack.c.h.b16 %v209
    %v522 = vunpack.c.l.b16 %v210
    %v523 = vunpack.c.h.b16 %v210
    %v524 = vunpack.c.l.b16 %v211
    %v525 = vunpack.c.h.b16 %v211
    %v526 = vunpack.c.l.b16 %v212
    %v527 = vunpack.c.h.b16 %v212
    %v528 = vunpack.c.l.b16 %v213
    %v529 = vunpack.c.h.b16 %v213
    %v530 = vunpack.c.l.b16 %v214
    %v531 = vunpack.c.h.b16 %v214
    %v532 = vunpack.c.l.b16 %v215
    %v533 = vunpack.c.h.b16 %v215
    %v534 = vunpack.c.l.b16 %v216
    %v535 = vunpack.c.h.b16 %v216
    %v536 = vunpack.c.l.b16 %v217
    %v537 = vunpack.c.h.b16 %v217
    %v538 = vunpack.c.l.b16 %v218
    %v539 = vunpack.c.h.b16 %v218
    %v540 = vunpack.c.l.b16 %v219
    %v541 = vunpack.c.h.b16 %v219
    %v542 = vunpack.c.l.b16 %v220
    %v543 = vunpack.c.h.b16 %v220
    %v544 = vunpack.c.l.b16 %v221
    %v545 = vunpack.c.h.b16 %v221
    %v546 = vunpack.c.l.b16 %v222
    %v547 = vunpack.c.h.b16 %v222
    %v548 = vunpack.c.l.b16 %v223
    %v549 = vunpack.c.h.b16 %v223
    %v550 = vunpack.c.l.b16 %v224
    %v551 = vunpack.c.h.b16 %v224
    %v552 = vunpack.c.l.b16 %v225
    %v553 = vunpack.c.h.b16 %v225
    %v554 = vunpack.c.l.b16 %v226
    %v555 = vunpack.c.h.b16 %v226
    %v556 = vunpack.c.l.b16 %v227
    %v557 = vunpack.c.h.b16 %v227
    %v558 = vunpack.c.l.b16 %v228
    %v559 = vunpack.c.h.b16 %v228
    %v560 = vunpack.c.l.b16 %v229
    %v561 = vunpack.c.h.b16 %v229
    %v562 = vunpack.c.l.b16 %v230
    %v563 = vunpack.c.h.b16 %v230
    %v564 = vunpack.c.l.b16 %v231
    %v565 = vunpack.c.h.b16 %v231
    %v566 = vunpack.c.l.b16 %v232
    %v567 = vunpack.c.h.b16 %v232
    %v568 = vunpack.c.l.b16 %v233
    %v569 = vunpack.c.h.b16 %v233
    %v570 = vunpack.c.l.b16 %v234
    %v571 = vunpack.c.h.b16 %v234
    %v572 = vunpack.c.l.b16 %v235
    %v573 = vunpack.c.h.b16 %v235
    %v574 = vunpack.c.l.b16 %v236
    %v575 = vunpack.c.h.b16 %v236
    %v576 = vunpack.c.l.b16 %v237
    %v577 = vunpack.c.h.b16 %v237
    %v578 = vunpack.c.l.b16 %v238
    %v579 = vunpack.c.h.b16 %v238
    %v580 = vunpack.c.l.b16 %v239
    %v581 = vunpack.c.h.b16 %v239
    %v582 = vunpack.c.l.b16 %v240
    %v583 = vunpack.c.h.b16 %v240
    %v584 = vunpack.c.l.b16 %v241
    %v585 = vunpack.c.h.b16 %v241
    %v586 = vunpack.c.l.b16 %v242
    %v587 = vunpack.c.h.b16 %v242
    %v588 = vunpack.c.l.b16 %v243
    %v589 = vunpack.c.h.b16 %v243
    %v590 = vunpack.c.l.b16 %v244
    %v591 = vunpack.c.h.b16 %v244
    %v592 = vunpack.c.l.b16 %v245
    %v593 = vunpack.c.h.b16 %v245
    %v594 = vunpack.c.l.b16 %v246
    %v595 = vunpack.c.h.b16 %v246
    %v596 = vunpack.c.l.b16 %v247
    %v597 = vunpack.c.h.b16 %v247
    %v598 = vunpack.c.l.b16 %v248
    %v599 = vunpack.c.h.b16 %v248
    %v600 = vunpack.c.l.b16 %v249
    %v601 = vunpack.c.h.b16 %v249
    %v602 = vunpack.c.l.b16 %v250
    %v603 = vunpack.c.h.b16 %v250
    %v604 = vunpack.c.l.b16 %v251
    %v605 = vunpack.c.h.b16 %v251
    %v606 = vunpack.c.l.b16 %v252
    %v607 = vunpack.c.h.b16 %v252
    %v608 = vunpack.c.l.b16 %v253
    %v609 = vunpack.c.h.b16 %v253
    %v610 = vunpack.c.l.b16 %v254
    %v611 = vunpack.c.h.b16 %v254
    %v612 = vunpack.c.l.b16 %v255
    %v613 = vunpack.c.h.b16 %v255
    %v614 = vunpack.c.l.b16 %v256
    %v615 = vunpack.c.h.b16 %v256
    %v616 = vunpack.c.l.b16 %v257
    %v617 = vunpack.c.h.b16 %v257
    %v618 = vunpack.c.l.b16 %v258
    %v619 = vunpack.c.h.b16 %v258
    %v620 = vunpack.c.l.b16 %v259
    %v621 = vunpack.c.h.b16 %v259
    %v622 = vunpack.c.l.b16 %v260
    %v623 = vunpack.c.h.b16 %v260
    %v624 = vunpack.c.l.b16 %v261
    %v625 = vunpack.c.h.b16 %v261
    %v626 = vunpack.c.l.b16 %v262
    %v627 = vunpack.c.h.b16 %v262
    %v628 = vunpack.c.l.b16 %v263
    %v629 = vunpack.c.h.b16 %v263
    %v630 = vunpack.c.l.b16 %v264
    %v631 = vunpack.c.h.b16 %v264
    %v632 = vunpack.c.l.b16 %v265
    %v633 = vunpack.c.h.b16 %v265
    %v634 = vunpack.c.l.b16 %v266
    %v635 = vunpack.c.h.b16 %v266
    %v636 = vunpack.c.l.b16 %v267
    %v637 = vunpack.c.h.b16 %v267
    %v638 = vunpack.c.l.b16 %v268
    %v639 = vunpack.c.h.b16 %v268
    %v640 = vunpack.c.l.b16 %v269
    %v641 = vunpack.c.h.b16 %v269
    %v642 = vunpack.c.l.b16 %v270
    %v643 = vunpack.c.h.b16 %v270
    %v644 = vunpack.c.l.b16 %v271
    %v645 = vunpack.c.h.b16 %v271
    %v646 = vunpack.c.l.b16 %v272
    %v647 = vunpack.c.h.b16 %v272
    %v648 = vunpack.c.l.b16 %v273
    %v649 = vunpack.c.h.b16 %v273
    %v650 = vunpack.c.l.b16 %v274
    %v651 = vunpack.c.h.b16 %v274
    %v652 = vunpack.c.l.b16 %v275
    %v653 = vunpack.c.h.b16 %v275
    %v654 = vunpack.c.l.b16 %v276
    %v655 = vunpack.c.h.b16 %v276
    %v656 = vunpack.c.l.b16 %v277
    %v657 = vunpack.c.h.b16 %v277
    %v658 = vunpack.c.l.b16 %v278
    %v659 = vunpack.c.h.b16 %v278
    %v660 = vunpack.c.l.b16 %v279
    %v661 = vunpack.c.h.b16 %v279
    %v662 = vunpack.c.l.b16 %v280
    %v663 = vunpack.c.h.b16 %v280
    %v664 = vunpack.c.l.b16 %v281
    %v665 = vunpack.c.h.b16 %v281
    %v666 = vpack.c.b16 %v412, %v410
    %v667 = vpack.c.b16 %v413, %v411
    %v668 = vpack.c.b16 %v416, %v414
    %v669 = vpack.c.b16 %v417, %v415
    %v670 = vpack.c.b16 %v420, %v418
    %v671 = vpack.c.b16 %v421, %v419
    %v672 = vpack.c.b16 %v424, %v422
    %v673 = vpack.c.b16 %v425, %v423
    %v674 = vpack.c.b16 %v428, %v426
    %v675 = vpack.c.b16 %v429, %v427
    %v676 = vpack.c.b16 %v432, %v430
    %v677 = vpack.c.b16 %v433, %v431
    %v678 = vpack.c.b16 %v436, %v434
    %v679 = vpack.c.b16 %v437, %v435
    %v680 = vpack.c.b16 %v440, %v438
    %v681 = vpack.c.b16 %v441, %v439
    %v682 = vpack.c.b16 %v444, %v442
    %v683 = vpack.c.b16 %v445, %v443
    %v684 = vpack.c.b16 %v448, %v446
    %v685 = vpack.c.b16 %v449, %v447
    %v686 = vpack.c.b16 %v452, %v450
    %v687 = vpack.c.b16 %v453, %v451
    %v688 = vpack.c.b16 %v456, %v454
    %v689 = vpack.c.b16 %v457, %v455
    %v690 = vpack.c.b16 %v460, %v458
    %v691 = vpack.c.b16 %v461, %v459
    %v692 = vpack.c.b16 %v464, %v462
    %v693 = vpack.c.b16 %v465, %v463
    %v694 = vpack.c.b16 %v468, %v466
    %v695 = vpack.c.b16 %v469, %v467
    %v696 = vpack.c.b16 %v472, %v470
    %v697 = vpack.c.b16 %v473, %v471
    %v698 = vpack.c.b16 %v476, %v474
    %v699 = vpack.c.b16 %v477, %v475
    %v700 = vpack.c.b16 %v480, %v478
    %v701 = vpack.c.b16 %v481, %v479
    %v702 = vpack.c.b16 %v484, %v482
    %v703 = vpack.c.b16 %v485, %v483
    %v704 = vpack.c.b16 %v488, %v486
    %v705 = vpack.c.b16 %v489, %v487
    %v706 = vpack.c.b16 %v492, %v490
    %v707 = vpack.c.b16 %v493, %v491
    %v708 = vpack.c.b16 %v496, %v494
    %v709 = vpack.c.b16 %v497, %v495
    %v710 = vpack.c.b16 %v500, %v498
    %v711 = vpack.c.b16 %v501, %v499
    %v712 = vpack.c.b16 %v504, %v502
    %v713 = vpack.c.b16 %v505, %v503
    %v714 = vpack.c.b16 %v508, %v506
    %v715 = vpack.c.b16 %v509, %v507
    %v716 = vpack.c.b16 %v512, %v510
    %v717 = vpack.c.b16 %v513, %v511
    %v718 = vpack.c.b16 %v516, %v514
    %v719 = vpack.c.b16 %v517, %v515
    %v720 = vpack.c.b16 %v520, %v518
    %v721 = vpack.c.b16 %v521, %v519
    %v722 = vpack.c.b16 %v524, %v522
    %v723 = vpack.c.b16 %v525, %v523
    %v724 = vpack.c.b16 %v528, %v526
    %v725 = vpack.c.b16 %v529, %v527
    %v726 = vpack.c.b16 %v532, %v530
    %v727 = vpack.c.b16 %v533, %v531
    %v728 = vpack.c.b16 %v536, %v534
    %v729 = vpack.c.b16 %v537, %v535
    %v730 = vpack.c.b16 %v540, %v538
    %v731 = vpack.c.b16 %v541, %v539
    %v732 = vpack.c.b16 %v544, %v542
    %v733 = vpack.c.b16 %v545, %v543
    %v734 = vpack.c.b16 %v548, %v546
    %v735 = vpack.c.b16 %v549, %v547
    %v736 = vpack.c.b16 %v552, %v550
    %v737 = vpack.c.b16 %v553, %v551
    %v738 = vpack.c.b16 %v556, %v554
    %v739 = vpack.c.b16 %v557, %v555
    %v740 = vpack.c.b16 %v560, %v558
    %v741 = vpack.c.b16 %v561, %v559
    %v742 = vpack.c.b16 %v564, %v562
    %v743 = vpack.c.b16 %v565, %v563
    %v744 = vpack.c.b16 %v568, %v566
    %v745 = vpack.c.b16 %v569, %v567
    %v746 = vpack.c.b16 %v572, %v570
    %v747 = vpack.c.b16 %v573, %v571
    %v748 = vpack.c.b16 %v576, %v574
    %v749 = vpack.c.b16 %v577, %v575
    %v750 = vpack.c.b16 %v580, %v578
    %v751 = vpack.c.b16 %v581, %v579
    %v752 = vpack.c.b16 %v584, %v582
    %v753 = vpack.c.b16 %v585, %v583
    %v754 = vpack.c.b16 %v588, %v586
    %v755 = vpack.c.b16 %v589, %v587
    %v756 = vpack.c.b16 %v592, %v590
    %v757 = vpack.c.b16 %v593, %v591
    %v758 = vpack.c.b16 %v596, %v594
    %v759 = vpack.c.b16 %v597, %v595
    %v760 = vpack.c.b16 %v600, %v598
    %v761 = vpack.c.b16 %v601, %v599
    %v762 = vpack.c.b16 %v604, %v602
    %v763 = vpack.c.b16 %v605, %v603
    %v764 = vpack.c.b16 %v608, %v606
    %v765 = vpack.c.b16 %v609, %v607
    %v766 = vpack.c.b16 %v612, %v610
    %v767 = vpack.c.b16 %v613, %v611
    %v768 = vpack.c.b16 %v616, %v614
    %v769 = vpack.c.b16 %v617, %v615
    %v770 = vpack.c.b16 %v620, %v618
    %v771 = vpack.c.b16 %v621, %v619
    %v772 = vpack.c.b16 %v624, %v622
    %v773 = vpack.c.b16 %v625, %v623
    %v774 = vpack.c.b16 %v628, %v626
    %v775 = vpack.c.b16 %v629, %v627
    %v776 = vpack.c.b16 %v632, %v630
    %v777 = vpack.c.b16 %v633, %v631
    %v778 = vpack.c.b16 %v636, %v634
    %v779 = vpack.c.b16 %v637, %v635
    %v780 = vpack.c.b16 %v640, %v638
    %v781 = vpack.c.b16 %v641, %v639
    %v782 = vpack.c.b16 %v644, %v642
    %v783 = vpack.c.b16 %v645, %v643
    %v784 = vpack.c.b16 %v648, %v646
    %v785 = vpack.c.b16 %v649, %v647
    %v786 = vpack.c.b16 %v652, %v650
    %v787 = vpack.c.b16 %v653, %v651
    %v788 = vpack.c.b16 %v656, %v654
    %v789 = vpack.c.b16 %v657, %v655
    %v790 = vpack.c.b16 %v660, %v658
    %v791 = vpack.c.b16 %v661, %v659
    %v792 = vpack.c.b16 %v664, %v662
    %v793 = vpack.c.b16 %v665, %v663
    %922 = vmatpush.bf16.msra.mxu0 %v680
    %923 = vmatpush.bf16.msra.mxu0 %v678
    %924 = vmatpush.bf16.msra.mxu0 %v676
    %925 = vmatpush.bf16.msra.mxu0 %v674
    %926 = vmatpush.bf16.msra.mxu0 %v672
    %927 = vmatpush.bf16.msra.mxu0 %v670
    %928 = vmatpush.bf16.msra.mxu0 %v668
    %929 = vmatpush.bf16.msra.mxu0 %v666
    %930 = vmatmul.bf16.gmra.mxu0 %v146
    %v931 = vpop.f32.mrf.mxu0
    %v932 = vadd.f32 0.0, %v931
    %v933 = vpop.f32.mrf.mxu0
    %934 = vdwg.mxu0
    %935 = vmatpush.bf16.msra.mxu0 %v696
    %936 = vmatpush.bf16.msra.mxu0 %v694
    %937 = vmatpush.bf16.msra.mxu0 %v692
    %938 = vmatpush.bf16.msra.mxu0 %v690
    %939 = vmatpush.bf16.msra.mxu0 %v688
    %940 = vmatpush.bf16.msra.mxu0 %v686
    %941 = vmatpush.bf16.msra.mxu0 %v684
    %942 = vmatpush.bf16.msra.mxu0 %v682
    %943 = vmatmul.bf16.gmra.mxu0 %v147
    %v944 = vpop.f32.mrf.mxu0
    %v945 = vadd.f32 %v932, %v944
    %v946 = vpop.f32.mrf.mxu0
    %947 = vdwg.mxu0
    %948 = vmatpush.bf16.msra.mxu0 %v712
    %949 = vmatpush.bf16.msra.mxu0 %v710
    %950 = vmatpush.bf16.msra.mxu0 %v708
    %951 = vmatpush.bf16.msra.mxu0 %v706
    %952 = vmatpush.bf16.msra.mxu0 %v704
    %953 = vmatpush.bf16.msra.mxu0 %v702
    %954 = vmatpush.bf16.msra.mxu0 %v700
    %955 = vmatpush.bf16.msra.mxu0 %v698
    %956 = vmatmul.bf16.gmra.mxu0 %v148
    %v957 = vpop.f32.mrf.mxu0
    %v958 = vadd.f32 %v945, %v957
    %v959 = vpop.f32.mrf.mxu0
    %960 = vdwg.mxu0
    %961 = vmatpush.bf16.msra.mxu0 %v728
    %962 = vmatpush.bf16.msra.mxu0 %v726
    %963 = vmatpush.bf16.msra.mxu0 %v724
    %964 = vmatpush.bf16.msra.mxu0 %v722
    %965 = vmatpush.bf16.msra.mxu0 %v720
    %966 = vmatpush.bf16.msra.mxu0 %v718
    %967 = vmatpush.bf16.msra.mxu0 %v716
    %968 = vmatpush.bf16.msra.mxu0 %v714
    %969 = vmatmul.bf16.gmra.mxu0 %v149
    %v970 = vpop.f32.mrf.mxu0
    %v971 = vadd.f32 %v958, %v970
    %v972 = vpop.f32.mrf.mxu0
    %973 = vdwg.mxu0
    %974 = vmatpush.bf16.msra.mxu0 %v744
    %975 = vmatpush.bf16.msra.mxu0 %v742
    %976 = vmatpush.bf16.msra.mxu0 %v740
    %977 = vmatpush.bf16.msra.mxu0 %v738
    %978 = vmatpush.bf16.msra.mxu0 %v736
    %979 = vmatpush.bf16.msra.mxu0 %v734
    %980 = vmatpush.bf16.msra.mxu0 %v732
    %981 = vmatpush.bf16.msra.mxu0 %v730
    %982 = vmatmul.bf16.gmra.mxu0 %v150
    %v983 = vpop.f32.mrf.mxu0
    %v984 = vadd.f32 %v971, %v983
    %v985 = vpop.f32.mrf.mxu0
    %986 = vdwg.mxu0
    %987 = vmatpush.bf16.msra.mxu0 %v760
    %988 = vmatpush.bf16.msra.mxu0 %v758
    %989 = vmatpush.bf16.msra.mxu0 %v756
    %990 = vmatpush.bf16.msra.mxu0 %v754
    %991 = vmatpush.bf16.msra.mxu0 %v752
    %992 = vmatpush.bf16.msra.mxu0 %v750
    %993 = vmatpush.bf16.msra.mxu0 %v748
    %994 = vmatpush.bf16.msra.mxu0 %v746
    %995 = vmatmul.bf16.gmra.mxu0 %v151
    %v996 = vpop.f32.mrf.mxu0
    %v997 = vadd.f32 %v984, %v996
    %v998 = vpop.f32.mrf.mxu0
    %999 = vdwg.mxu0
    %1000 = vmatpush.bf16.msra.mxu0 %v776
    %1001 = vmatpush.bf16.msra.mxu0 %v774
    %1002 = vmatpush.bf16.msra.mxu0 %v772
    %1003 = vmatpush.bf16.msra.mxu0 %v770
    %1004 = vmatpush.bf16.msra.mxu0 %v768
    %1005 = vmatpush.bf16.msra.mxu0 %v766
    %1006 = vmatpush.bf16.msra.mxu0 %v764
    %1007 = vmatpush.bf16.msra.mxu0 %v762
    %1008 = vmatmul.bf16.gmra.mxu0 %v152
    %v1009 = vpop.f32.mrf.mxu0
    %v1010 = vadd.f32 %v997, %v1009
    %v1011 = vpop.f32.mrf.mxu0
    %1012 = vdwg.mxu0
    %1013 = vmatpush.bf16.msra.mxu0 %v792
    %1014 = vmatpush.bf16.msra.mxu0 %v790
    %1015 = vmatpush.bf16.msra.mxu0 %v788
    %1016 = vmatpush.bf16.msra.mxu0 %v786
    %1017 = vmatpush.bf16.msra.mxu0 %v784
    %1018 = vmatpush.bf16.msra.mxu0 %v782
    %1019 = vmatpush.bf16.msra.mxu0 %v780
    %1020 = vmatpush.bf16.msra.mxu0 %v778
    %1021 = vmatmul.bf16.gmra.mxu0 %v153
    %v1022 = vpop.f32.mrf.mxu0
    %v1023 = vadd.f32 %v1010, %v1022
    %v1024 = vpop.f32.mrf.mxu0
    %1025 = vdwg.mxu0
    %1026 = vmatpush.bf16.msra.mxu0 %v681
    %1027 = vmatpush.bf16.msra.mxu0 %v679
    %1028 = vmatpush.bf16.msra.mxu0 %v677
    %1029 = vmatpush.bf16.msra.mxu0 %v675
    %1030 = vmatpush.bf16.msra.mxu0 %v673
    %1031 = vmatpush.bf16.msra.mxu0 %v671
    %1032 = vmatpush.bf16.msra.mxu0 %v669
    %1033 = vmatpush.bf16.msra.mxu0 %v667
    %1034 = vmatmul.bf16.gmra.mxu0 %v146
    %v1035 = vpop.f32.mrf.mxu0
    %v1036 = vadd.f32 0.0, %v1035
    %v1037 = vpop.f32.mrf.mxu0
    %1038 = vdwg.mxu0
    %1039 = vmatpush.bf16.msra.mxu0 %v697
    %1040 = vmatpush.bf16.msra.mxu0 %v695
    %1041 = vmatpush.bf16.msra.mxu0 %v693
    %1042 = vmatpush.bf16.msra.mxu0 %v691
    %1043 = vmatpush.bf16.msra.mxu0 %v689
    %1044 = vmatpush.bf16.msra.mxu0 %v687
    %1045 = vmatpush.bf16.msra.mxu0 %v685
    %1046 = vmatpush.bf16.msra.mxu0 %v683
    %1047 = vmatmul.bf16.gmra.mxu0 %v147
    %v1048 = vpop.f32.mrf.mxu0
    %v1049 = vadd.f32 %v1036, %v1048
    %v1050 = vpop.f32.mrf.mxu0
    %1051 = vdwg.mxu0
    %1052 = vmatpush.bf16.msra.mxu0 %v713
    %1053 = vmatpush.bf16.msra.mxu0 %v711
    %1054 = vmatpush.bf16.msra.mxu0 %v709
    %1055 = vmatpush.bf16.msra.mxu0 %v707
    %1056 = vmatpush.bf16.msra.mxu0 %v705
    %1057 = vmatpush.bf16.msra.mxu0 %v703
    %1058 = vmatpush.bf16.msra.mxu0 %v701
    %1059 = vmatpush.bf16.msra.mxu0 %v699
    %1060 = vmatmul.bf16.gmra.mxu0 %v148
    %v1061 = vpop.f32.mrf.mxu0
    %v1062 = vadd.f32 %v1049, %v1061
    %v1063 = vpop.f32.mrf.mxu0
    %1064 = vdwg.mxu0
    %1065 = vmatpush.bf16.msra.mxu0 %v729
    %1066 = vmatpush.bf16.msra.mxu0 %v727
    %1067 = vmatpush.bf16.msra.mxu0 %v725
    %1068 = vmatpush.bf16.msra.mxu0 %v723
    %1069 = vmatpush.bf16.msra.mxu0 %v721
    %1070 = vmatpush.bf16.msra.mxu0 %v719
    %1071 = vmatpush.bf16.msra.mxu0 %v717
    %1072 = vmatpush.bf16.msra.mxu0 %v715
    %1073 = vmatmul.bf16.gmra.mxu0 %v149
    %v1074 = vpop.f32.mrf.mxu0
    %v1075 = vadd.f32 %v1062, %v1074
    %v1076 = vpop.f32.mrf.mxu0
    %1077 = vdwg.mxu0
    %1078 = vmatpush.bf16.msra.mxu0 %v745
    %1079 = vmatpush.bf16.msra.mxu0 %v743
    %1080 = vmatpush.bf16.msra.mxu0 %v741
    %1081 = vmatpush.bf16.msra.mxu0 %v739
    %1082 = vmatpush.bf16.msra.mxu0 %v737
    %1083 = vmatpush.bf16.msra.mxu0 %v735
    %1084 = vmatpush.bf16.msra.mxu0 %v733
    %1085 = vmatpush.bf16.msra.mxu0 %v731
    %1086 = vmatmul.bf16.gmra.mxu0 %v150
    %v1087 = vpop.f32.mrf.mxu0
    %v1088 = vadd.f32 %v1075, %v1087
    %v1089 = vpop.f32.mrf.mxu0
    %1090 = vdwg.mxu0
    %1091 = vmatpush.bf16.msra.mxu0 %v761
    %1092 = vmatpush.bf16.msra.mxu0 %v759
    %1093 = vmatpush.bf16.msra.mxu0 %v757
    %1094 = vmatpush.bf16.msra.mxu0 %v755
    %1095 = vmatpush.bf16.msra.mxu0 %v753
    %1096 = vmatpush.bf16.msra.mxu0 %v751
    %1097 = vmatpush.bf16.msra.mxu0 %v749
    %1098 = vmatpush.bf16.msra.mxu0 %v747
    %1099 = vmatmul.bf16.gmra.mxu0 %v151
    %v1100 = vpop.f32.mrf.mxu0
    %v1101 = vadd.f32 %v1088, %v1100
    %v1102 = vpop.f32.mrf.mxu0
    %1103 = vdwg.mxu0
    %1104 = vmatpush.bf16.msra.mxu0 %v777
    %1105 = vmatpush.bf16.msra.mxu0 %v775
    %1106 = vmatpush.bf16.msra.mxu0 %v773
    %1107 = vmatpush.bf16.msra.mxu0 %v771
    %1108 = vmatpush.bf16.msra.mxu0 %v769
    %1109 = vmatpush.bf16.msra.mxu0 %v767
    %1110 = vmatpush.bf16.msra.mxu0 %v765
    %1111 = vmatpush.bf16.msra.mxu0 %v763
    %1112 = vmatmul.bf16.gmra.mxu0 %v152
    %v1113 = vpop.f32.mrf.mxu0
    %v1114 = vadd.f32 %v1101, %v1113
    %v1115 = vpop.f32.mrf.mxu0
    %1116 = vdwg.mxu0
    %1117 = vmatpush.bf16.msra.mxu0 %v793
    %1118 = vmatpush.bf16.msra.mxu0 %v791
    %1119 = vmatpush.bf16.msra.mxu0 %v789
    %1120 = vmatpush.bf16.msra.mxu0 %v787
    %1121 = vmatpush.bf16.msra.mxu0 %v785
    %1122 = vmatpush.bf16.msra.mxu0 %v783
    %1123 = vmatpush.bf16.msra.mxu0 %v781
    %1124 = vmatpush.bf16.msra.mxu0 %v779
    %1125 = vmatmul.bf16.gmra.mxu0 %v153
    %v1126 = vpop.f32.mrf.mxu0
    %v1127 = vadd.f32 %v1114, %v1126
    %v1128 = vpop.f32.mrf.mxu0
    %1129 = vdwg.mxu0
    %v1130 = vrot.slane %v1023, 4
    %v1131 = vadd.f32 %v1023, %v1130
    %v1132 = vrot.slane %v1131, 2
    %v1133 = vadd.f32 %v1131, %v1132
    %v1134 = vrot.slane %v1133, 1
    %v1135 = vadd.f32 %v1133, %v1134
    %v1136 = vrot.slane %v1127, 4
    %v1137 = vadd.f32 %v1127, %v1136
    %v1138 = vrot.slane %v1137, 2
    %v1139 = vadd.f32 %v1137, %v1138
    %v1140 = vrot.slane %v1139, 1
    %v1141 = vadd.f32 %v1139, %v1140
    %v1142 = vrcp.pop 8.0
    %v1143 = vmul.f32 8.0, %v1142
    %v1144 = vsub.f32 1.0, %v1143
    %v1145 = vmul.f32 %v1142, %v1144
    %v1146 = vadd.f32 %v1142, %v1145
    %vm1147 = vweird.f32 %v1142
    %v1148 = vsel %vm1147, %v1142, %v1146
    %v1149 = vmul.f32 %v1135, %v1148
    %v1150 = vmul.f32 %v1141, %v1148
    %v1151 = vsub.f32 %v1023, %v1149
    %v1152 = vsub.f32 %v1127, %v1150
    %v1153 = vmul.f32 %v1151, %v1151
    %v1154 = vmul.f32 %v1152, %v1152
    %v1155 = vrot.slane %v1153, 4
    %v1156 = vadd.f32 %v1153, %v1155
    %v1157 = vrot.slane %v1156, 2
    %v1158 = vadd.f32 %v1156, %v1157
    %v1159 = vrot.slane %v1158, 1
    %v1160 = vadd.f32 %v1158, %v1159
    %v1161 = vrot.slane %v1154, 4
    %v1162 = vadd.f32 %v1154, %v1161
    %v1163 = vrot.slane %v1162, 2
    %v1164 = vadd.f32 %v1162, %v1163
    %v1165 = vrot.slane %v1164, 1
    %v1166 = vadd.f32 %v1164, %v1165
    %v1167 = vmul.f32 %v1160, %v1148
    %v1168 = vmul.f32 %v1166, %v1148
    %v1169 = vadd.f32 %v1167, 1e-05
    %v1170 = vadd.f32 %v1168, 1e-05
    %v1171 = vrsqrt.pop %v1169
    %v1172 = vmul.f32 %v1171, %v1169
    %v1173 = vmul.f32 %v1172, %v1171
    %v1174 = vmul.f32 0.5, %v1173
    %v1175 = vsub.f32 1.5, %v1174
    %v1176 = vmul.f32 %v1171, %v1175
    %vm1177 = vweird.f32 %v1169
    %vm1178 = vweird.f32 %v1171
    %vm1179 = vmor %vm1177, %vm1178
    %v1180 = vsel %vm1179, %v1171, %v1176
    %v1181 = vrsqrt.pop %v1170
    %v1182 = vmul.f32 %v1181, %v1170
    %v1183 = vmul.f32 %v1182, %v1181
    %v1184 = vmul.f32 0.5, %v1183
    %v1185 = vsub.f32 1.5, %v1184
    %v1186 = vmul.f32 %v1181, %v1185
    %vm1187 = vweird.f32 %v1170
    %vm1188 = vweird.f32 %v1181
    %vm1189 = vmor %vm1187, %vm1188
    %v1190 = vsel %vm1189, %v1181, %v1186
    %v1192 = vperm.slane %v114, 0
    %v1193 = vperm.slane %v114, 1
    %v1196 = vmul.f32 %v1180, %v1192
    %v1197 = vmul.f32 %v1190, %v1193
    %v1198 = vmul.f32 %v1149, %v1196
    %v1199 = vmul.f32 %v1150, %v1197
    %v1202 = vrot.slane %v1199, 7
    %vm1203 = vcmask 1040384
    %v1204 = vsel %vm1203, %v1198, %v1202
    %v1206 = vsub.f32 %v116, %v1204
    %v1207 = vperm.slane %v1196, 0
    %v1208 = vperm.slane %v1197, 0
    %v1209 = vmul.f32 %v1023, %v1207
    %v1210 = vmul.f32 %v1127, %v1208
    %v1212 = vperm.slane %v1206, 0
    %v1213 = vperm.slane %v1206, 1
    %v1216 = vadd.f32 %v1209, %v1212
    %v1217 = vadd.f32 %v1210, %v1213
    %v1218 = vmax.f32 %v1216, 0.0
    %v1219 = vmax.f32 %v1217, 0.0
    %vm1220 = vcmp.ge.f32.partialorder %v1218, 0.0
    %vm1221 = vcmp.ge.f32.partialorder %v1219, 0.0
    %v1222 = vsel %vm1220, 1.0, -1.0
    %v1223 = vsel %vm1221, 1.0, -1.0
    %v1224 = vpack.c.bf16 %v1222, %v1222
    %v1225 = vpack.c.bf16 %v1223, %v1223
    %v1226 = vld [vmem:[#allocation7] sm:$0xf]
    %v1227 = vld [vmem:[#allocation7 + $0x4] sm:$0xf]
    %v1228 = vld [vmem:[#allocation7 + $0x8] sm:$0xf]
    %v1229 = vld [vmem:[#allocation7 + $0xc] sm:$0xf]
    %v1230 = vld [vmem:[#allocation7 + $0x10] sm:$0xf]
    %v1231 = vld [vmem:[#allocation7 + $0x14] sm:$0xf]
    %v1232 = vld [vmem:[#allocation7 + $0x18] sm:$0xf]
    %v1233 = vld [vmem:[#allocation7 + $0x1c] sm:$0xf]
    %v1234 = vld [vmem:[#allocation7 + $0x20] sm:$0xf]
    %v1235 = vld [vmem:[#allocation7 + $0x24] sm:$0xf]
    %v1236 = vld [vmem:[#allocation7 + $0x28] sm:$0xf]
    %v1237 = vld [vmem:[#allocation7 + $0x2c] sm:$0xf]
    %v1238 = vld [vmem:[#allocation7 + $0x30] sm:$0xf]
    %v1239 = vld [vmem:[#allocation7 + $0x34] sm:$0xf]
    %v1240 = vld [vmem:[#allocation7 + $0x38] sm:$0xf]
    %v1241 = vld [vmem:[#allocation7 + $0x3c] sm:$0xf]
    %v1242 = vld [vmem:[#allocation7 + $0x40] sm:$0xf]
    %v1243 = vld [vmem:[#allocation7 + $0x44] sm:$0xf]
    %v1244 = vld [vmem:[#allocation7 + $0x48] sm:$0xf]
    %v1245 = vld [vmem:[#allocation7 + $0x4c] sm:$0xf]
    %v1246 = vld [vmem:[#allocation7 + $0x50] sm:$0xf]
    %v1247 = vld [vmem:[#allocation7 + $0x54] sm:$0xf]
    %v1248 = vld [vmem:[#allocation7 + $0x58] sm:$0xf]
    %v1249 = vld [vmem:[#allocation7 + $0x5c] sm:$0xf]
    %v1250 = vld [vmem:[#allocation7 + $0x60] sm:$0xf]
    %v1251 = vld [vmem:[#allocation7 + $0x64] sm:$0xf]
    %v1252 = vld [vmem:[#allocation7 + $0x68] sm:$0xf]
    %v1253 = vld [vmem:[#allocation7 + $0x6c] sm:$0xf]
    %v1254 = vld [vmem:[#allocation7 + $0x70] sm:$0xf]
    %v1255 = vld [vmem:[#allocation7 + $0x74] sm:$0xf]
    %v1256 = vld [vmem:[#allocation7 + $0x78] sm:$0xf]
    %v1257 = vld [vmem:[#allocation7 + $0x7c] sm:$0xf]
    %v1290 = vunpack.c.l.b16 %v1226
    %v1291 = vunpack.c.l.b16 %v1227
    %v1292 = vunpack.c.l.b16 %v1228
    %v1293 = vunpack.c.l.b16 %v1229
    %v1294 = vunpack.c.l.b16 %v1230
    %v1295 = vunpack.c.l.b16 %v1231
    %v1296 = vunpack.c.l.b16 %v1232
    %v1297 = vunpack.c.l.b16 %v1233
    %v1298 = vunpack.c.l.b16 %v1234
    %v1299 = vunpack.c.l.b16 %v1235
    %v1300 = vunpack.c.l.b16 %v1236
    %v1301 = vunpack.c.l.b16 %v1237
    %v1302 = vunpack.c.l.b16 %v1238
    %v1303 = vunpack.c.l.b16 %v1239
    %v1304 = vunpack.c.l.b16 %v1240
    %v1305 = vunpack.c.l.b16 %v1241
    %v1306 = vunpack.c.l.b16 %v1242
    %v1307 = vunpack.c.l.b16 %v1243
    %v1308 = vunpack.c.l.b16 %v1244
    %v1309 = vunpack.c.l.b16 %v1245
    %v1310 = vunpack.c.l.b16 %v1246
    %v1311 = vunpack.c.l.b16 %v1247
    %v1312 = vunpack.c.l.b16 %v1248
    %v1313 = vunpack.c.l.b16 %v1249
    %v1314 = vunpack.c.l.b16 %v1250
    %v1315 = vunpack.c.l.b16 %v1251
    %v1316 = vunpack.c.l.b16 %v1252
    %v1317 = vunpack.c.l.b16 %v1253
    %v1318 = vunpack.c.l.b16 %v1254
    %v1319 = vunpack.c.l.b16 %v1255
    %v1320 = vunpack.c.l.b16 %v1256
    %v1321 = vunpack.c.l.b16 %v1257
    %v1322 = vpack.c.b16 %v1291, %v1290
    %v1323 = vpack.c.b16 %v1293, %v1292
    %v1324 = vpack.c.b16 %v1295, %v1294
    %v1325 = vpack.c.b16 %v1297, %v1296
    %v1326 = vpack.c.b16 %v1299, %v1298
    %v1327 = vpack.c.b16 %v1301, %v1300
    %v1328 = vpack.c.b16 %v1303, %v1302
    %v1329 = vpack.c.b16 %v1305, %v1304
    %v1330 = vpack.c.b16 %v1307, %v1306
    %v1331 = vpack.c.b16 %v1309, %v1308
    %v1332 = vpack.c.b16 %v1311, %v1310
    %v1333 = vpack.c.b16 %v1313, %v1312
    %v1334 = vpack.c.b16 %v1315, %v1314
    %v1335 = vpack.c.b16 %v1317, %v1316
    %v1336 = vpack.c.b16 %v1319, %v1318
    %v1337 = vpack.c.b16 %v1321, %v1320
    %1354 = vmatpush.bf16.msra.mxu0 %v1329
    %1355 = vmatpush.bf16.msra.mxu0 %v1328
    %1356 = vmatpush.bf16.msra.mxu0 %v1327
    %1357 = vmatpush.bf16.msra.mxu0 %v1326
    %1358 = vmatpush.bf16.msra.mxu0 %v1325
    %1359 = vmatpush.bf16.msra.mxu0 %v1324
    %1360 = vmatpush.bf16.msra.mxu0 %v1323
    %1361 = vmatpush.bf16.msra.mxu0 %v1322
    %1362 = vmatmul.bf16.gmra.mxu0 %v1224
    %v1363 = vpop.f32.mrf.mxu0
    %v1364 = vadd.f32 0.0, %v1363
    %v1365 = vpop.f32.mrf.mxu0
    %1366 = vdwg.mxu0
    %1367 = vmatpush.bf16.msra.mxu0 %v1337
    %1368 = vmatpush.bf16.msra.mxu0 %v1336
    %1369 = vmatpush.bf16.msra.mxu0 %v1335
    %1370 = vmatpush.bf16.msra.mxu0 %v1334
    %1371 = vmatpush.bf16.msra.mxu0 %v1333
    %1372 = vmatpush.bf16.msra.mxu0 %v1332
    %1373 = vmatpush.bf16.msra.mxu0 %v1331
    %1374 = vmatpush.bf16.msra.mxu0 %v1330
    %1375 = vmatmul.bf16.gmra.mxu0 %v1225
    %v1376 = vpop.f32.mrf.mxu0
    %v1377 = vadd.f32 %v1364, %v1376
    %v1378 = vpop.f32.mrf.mxu0
    %1379 = vdwg.mxu0
    %v1380 = vrot.slane %v1377, 4
    %v1381 = vadd.f32 %v1377, %v1380
    %v1382 = vrot.slane %v1381, 2
    %v1383 = vadd.f32 %v1381, %v1382
    %v1384 = vrot.slane %v1383, 1
    %v1385 = vadd.f32 %v1383, %v1384
    %v1386 = vmul.f32 %v1385, %v1148
    %v1387 = vsub.f32 %v1377, %v1386
    %v1388 = vmul.f32 %v1387, %v1387
    %v1389 = vrot.slane %v1388, 4
    %v1390 = vadd.f32 %v1388, %v1389
    %v1391 = vrot.slane %v1390, 2
    %v1392 = vadd.f32 %v1390, %v1391
    %v1393 = vrot.slane %v1392, 1
    %v1394 = vadd.f32 %v1392, %v1393
    %v1395 = vmul.f32 %v1394, %v1148
    %v1396 = vadd.f32 %v1395, 1e-05
    %v1397 = vrsqrt.pop %v1396
    %v1398 = vmul.f32 %v1397, %v1396
    %v1399 = vmul.f32 %v1398, %v1397
    %v1400 = vmul.f32 0.5, %v1399
    %v1401 = vsub.f32 1.5, %v1400
    %v1402 = vmul.f32 %v1397, %v1401
    %vm1403 = vweird.f32 %v1396
    %vm1404 = vweird.f32 %v1397
    %vm1405 = vmor %vm1403, %vm1404
    %v1406 = vsel %vm1405, %v1397, %v1402
    %v1407 = vmul.f32 %v1406, %v117
    %v1408 = vmul.f32 %v1386, %v1407
    %v1409 = vsub.f32 %v119, %v1408
    %v1410 = vmul.f32 %v1377, %v1407
    %v1411 = vadd.f32 %v1410, %v1409
    %v1412 = vmax.f32 %v1411, 0.0
    %vm1413 = vcmp.ge.f32.partialorder %v1412, 0.0
    %v1414 = vsel %vm1413, 1.0, -1.0
    %v1415 = vpack.c.bf16 %v1414, %v1414
    %v1416 = vld [vmem:[#allocation8] sm:$0xf]
    %v1417 = vld [vmem:[#allocation8 + $0x4] sm:$0xf]
    %v1418 = vld [vmem:[#allocation8 + $0x8] sm:$0xf]
    %v1419 = vld [vmem:[#allocation8 + $0xc] sm:$0xf]
    %v1420 = vld [vmem:[#allocation8 + $0x10] sm:$0xf]
    %v1421 = vld [vmem:[#allocation8 + $0x14] sm:$0xf]
    %v1422 = vld [vmem:[#allocation8 + $0x18] sm:$0xf]
    %v1423 = vld [vmem:[#allocation8 + $0x1c] sm:$0xf]
    %v1424 = vld [vmem:[#allocation8 + $0x20] sm:$0xf]
    %v1425 = vld [vmem:[#allocation8 + $0x24] sm:$0xf]
    %v1426 = vld [vmem:[#allocation8 + $0x28] sm:$0xf]
    %v1427 = vld [vmem:[#allocation8 + $0x2c] sm:$0xf]
    %v1428 = vld [vmem:[#allocation8 + $0x30] sm:$0xf]
    %v1429 = vld [vmem:[#allocation8 + $0x34] sm:$0xf]
    %v1430 = vld [vmem:[#allocation8 + $0x38] sm:$0xf]
    %v1431 = vld [vmem:[#allocation8 + $0x3c] sm:$0xf]
    %v1448 = vunpack.c.l.b16 %v1416
    %v1449 = vunpack.c.l.b16 %v1417
    %v1450 = vunpack.c.l.b16 %v1418
    %v1451 = vunpack.c.l.b16 %v1419
    %v1452 = vunpack.c.l.b16 %v1420
    %v1453 = vunpack.c.l.b16 %v1421
    %v1454 = vunpack.c.l.b16 %v1422
    %v1455 = vunpack.c.l.b16 %v1423
    %v1456 = vunpack.c.l.b16 %v1424
    %v1457 = vunpack.c.l.b16 %v1425
    %v1458 = vunpack.c.l.b16 %v1426
    %v1459 = vunpack.c.l.b16 %v1427
    %v1460 = vunpack.c.l.b16 %v1428
    %v1461 = vunpack.c.l.b16 %v1429
    %v1462 = vunpack.c.l.b16 %v1430
    %v1463 = vunpack.c.l.b16 %v1431
    %v1464 = vpack.c.b16 %v1449, %v1448
    %v1465 = vpack.c.b16 %v1451, %v1450
    %v1466 = vpack.c.b16 %v1453, %v1452
    %v1467 = vpack.c.b16 %v1455, %v1454
    %v1468 = vpack.c.b16 %v1457, %v1456
    %v1469 = vpack.c.b16 %v1459, %v1458
    %v1470 = vpack.c.b16 %v1461, %v1460
    %v1471 = vpack.c.b16 %v1463, %v1462
    %1480 = vmatpush.bf16.msra.mxu0 %v1471
    %1481 = vmatpush.bf16.msra.mxu0 %v1470
    %1482 = vmatpush.bf16.msra.mxu0 %v1469
    %1483 = vmatpush.bf16.msra.mxu0 %v1468
    %1484 = vmatpush.bf16.msra.mxu0 %v1467
    %1485 = vmatpush.bf16.msra.mxu0 %v1466
    %1486 = vmatpush.bf16.msra.mxu0 %v1465
    %1487 = vmatpush.bf16.msra.mxu0 %v1464
    %1488 = vmatmul.bf16.gmra.mxu0 %v1415
    %v1489 = vpop.f32.mrf.mxu0
    %v1490 = vadd.f32 0.0, %v1489
    %v1491 = vpop.f32.mrf.mxu0
    %1492 = vdwg.mxu0
    %v1493 = vrot.slane %v1490, 4
    %v1494 = vadd.f32 %v1490, %v1493
    %v1495 = vrot.slane %v1494, 2
    %v1496 = vadd.f32 %v1494, %v1495
    %v1497 = vrot.slane %v1496, 1
    %v1498 = vadd.f32 %v1496, %v1497
    %v1499 = vmul.f32 %v1498, %v1148
    %v1500 = vsub.f32 %v1490, %v1499
    %v1501 = vmul.f32 %v1500, %v1500
    %v1502 = vrot.slane %v1501, 4
    %v1503 = vadd.f32 %v1501, %v1502
    %v1504 = vrot.slane %v1503, 2
    %v1505 = vadd.f32 %v1503, %v1504
    %v1506 = vrot.slane %v1505, 1
    %v1507 = vadd.f32 %v1505, %v1506
    %v1508 = vmul.f32 %v1507, %v1148
    %v1509 = vadd.f32 %v1508, 1e-05
    %v1510 = vrsqrt.pop %v1509
    %v1511 = vmul.f32 %v1510, %v1509
    %v1512 = vmul.f32 %v1511, %v1510
    %v1513 = vmul.f32 0.5, %v1512
    %v1514 = vsub.f32 1.5, %v1513
    %v1515 = vmul.f32 %v1510, %v1514
    %vm1516 = vweird.f32 %v1509
    %vm1517 = vweird.f32 %v1510
    %vm1518 = vmor %vm1516, %vm1517
    %v1519 = vsel %vm1518, %v1510, %v1515
    %v1520 = vmul.f32 %v1519, %v118
    %v1521 = vmul.f32 %v1499, %v1520
    %v1522 = vsub.f32 %v120, %v1521
    %v1523 = vmul.f32 %v1490, %v1520
    %v1524 = vadd.f32 %v1523, %v1522
    %v1525 = vmax.f32 %v1524, 0.0
    %vm1526 = vcmp.ge.f32.partialorder %v1525, 0.0
    %v1527 = vsel %vm1526, 1.0, -1.0
    %v1528 = vpack.c.bf16 %v1527, %v1527
    %v1529 = vld [vmem:[#allocation10] sm:$0xf]
    %v1530 = vld [vmem:[#allocation10 + $0x4] sm:$0xf]
    %v1531 = vld [vmem:[#allocation10 + $0x8] sm:$0xf]
    %v1532 = vld [vmem:[#allocation10 + $0xc] sm:$0xf]
    %v1533 = vld [vmem:[#allocation10 + $0x10] sm:$0xf]
    %v1534 = vld [vmem:[#allocation10 + $0x14] sm:$0xf]
    %v1535 = vld [vmem:[#allocation10 + $0x18] sm:$0xf]
    %v1536 = vld [vmem:[#allocation10 + $0x1c] sm:$0xf]
    %v1537 = vld [vmem:[#allocation10 + $0x20] sm:$0xf]
    %v1538 = vld [vmem:[#allocation10 + $0x24] sm:$0xf]
    %v1539 = vld [vmem:[#allocation10 + $0x28] sm:$0xf]
    %v1540 = vld [vmem:[#allocation10 + $0x2c] sm:$0xf]
    %v1541 = vld [vmem:[#allocation10 + $0x30] sm:$0xf]
    %v1542 = vld [vmem:[#allocation10 + $0x34] sm:$0xf]
    %v1543 = vld [vmem:[#allocation10 + $0x38] sm:$0xf]
    %v1544 = vld [vmem:[#allocation10 + $0x3c] sm:$0xf]
    %v1561 = vunpack.c.l.b16 %v1529
    %v1562 = vunpack.c.l.b16 %v1530
    %v1563 = vunpack.c.l.b16 %v1531
    %v1564 = vunpack.c.l.b16 %v1532
    %v1565 = vunpack.c.l.b16 %v1533
    %v1566 = vunpack.c.l.b16 %v1534
    %v1567 = vunpack.c.l.b16 %v1535
    %v1568 = vunpack.c.l.b16 %v1536
    %v1569 = vunpack.c.l.b16 %v1537
    %v1570 = vunpack.c.l.b16 %v1538
    %v1571 = vunpack.c.l.b16 %v1539
    %v1572 = vunpack.c.l.b16 %v1540
    %v1573 = vunpack.c.l.b16 %v1541
    %v1574 = vunpack.c.l.b16 %v1542
    %v1575 = vunpack.c.l.b16 %v1543
    %v1576 = vunpack.c.l.b16 %v1544
    %v1577 = vpack.c.b16 %v1562, %v1561
    %v1578 = vpack.c.b16 %v1564, %v1563
    %v1579 = vpack.c.b16 %v1566, %v1565
    %v1580 = vpack.c.b16 %v1568, %v1567
    %v1581 = vpack.c.b16 %v1570, %v1569
    %v1582 = vpack.c.b16 %v1572, %v1571
    %v1583 = vpack.c.b16 %v1574, %v1573
    %v1584 = vpack.c.b16 %v1576, %v1575
    %1593 = vmatpush.bf16.msra.mxu0 %v1584
    %1594 = vmatpush.bf16.msra.mxu0 %v1583
    %1595 = vmatpush.bf16.msra.mxu0 %v1582
    %1596 = vmatpush.bf16.msra.mxu0 %v1581
    %1597 = vmatpush.bf16.msra.mxu0 %v1580
    %1598 = vmatpush.bf16.msra.mxu0 %v1579
    %1599 = vmatpush.bf16.msra.mxu0 %v1578
    %1600 = vmatpush.bf16.msra.mxu0 %v1577
    %1601 = vmatmul.bf16.gmra.mxu0 %v1528
    %v1602 = vpop.f32.mrf.mxu0
    %v1603 = vadd.f32 %v121, %v1602
    %v1604 = vpop.f32.mrf.mxu0
    %1605 = vdwg.mxu0
    %1606 = vst [vmem:[#allocation13] sm:$0xff] %v1603
    // Predicated region
    $region50: #{tpu_custom_call.1} parent=1 // pred_check
      _
    $region51: #{tpu_custom_call.1} parent=1 // pred_check_branch
      %1608 = sbr.rel (0) target = $region53
    $region52: #{tpu_custom_call.1} parent=1 // pred_region
      %1610 = vsyncadd [#allocation4], 0
      %s1612 = sshll.u32 [#allocation13], 4
      %s1613 = int_to_ptr.vmem [resolvable:$true] %s1612
      %s1614 = sshll.u32 %s6, 4
      %s1615 = int_to_ptr.hbm [resolvable:$true] %s1614
      %1617 = dma.vmem_to_hbm [thread:$0]  %s1613, 128, %s1615, [#allocation4]
    $region53: #{tpu_custom_call.1} parent=1 // pred_fallthru
      _
    // Predicated region
    $region54: #{tpu_custom_call.1} parent=1 // pred_check
      _
    $region55: #{tpu_custom_call.1} parent=1 // pred_check_branch
      %1619 = sbr.rel (0) target = $region57
    $region56: #{tpu_custom_call.1} parent=1 // pred_region
      %1621 = dma.done [#allocation4], 128
    $region57: #{tpu_custom_call.1} parent=1 // pred_fallthru
      _
    %1622 = vsyncpa [#allocation3], 1
    %1623 = vsyncpa [#allocation6], 1
    %1624 = vsyncpa [#allocation9], 1
    %1625 = vsyncpa [#allocation12], 1
    %1626 = vsyncpa [#allocation4], 1

</llo_original>
